<compile_context>
chip_gen: v7x
topology: tpu7x:2x2x1
jax: 0.10.0
libtpu: 0.0.40
codegen_flags: <defaults>
</compile_context>

<pallas_src>
import functools
import numpy as np
import jax
import jax.numpy as jnp
from jax import lax
from jax.experimental import pallas as pl
from jax.experimental.pallas import tpu as pltpu


def _round_up(x, m):
    return (x + m - 1) // m * m


def bigru_kernel(gi_f_ref, gi_b_ref, len_ref, h0_ref,
                 whf_ref, whb_ref, bhn_ref,
                 out_ref, hf_scr, hb_scr, *, chunk_t):
    """Fused bidirectional GRU recurrence over one T-chunk.

    gi_*_ref : (chunk_t, 3, Bp, H)  precomputed x@W_ih (+ folded biases),
               gate index on axis 1, backward stream already time-reversed.
    """
    step = pl.program_id(0)
    n_steps = pl.num_programs(0)
    t_total = n_steps * chunk_t           # padded sequence length
    t_base = step * chunk_t

    @pl.when(step == 0)
    def _init():
        hf_scr[...] = h0_ref[0]
        hb_scr[...] = h0_ref[1]

    lens = len_ref[...]                   # (Bp, 1) int32

    # hidden-to-hidden weights, one lane-aligned (H, H) matrix per gate
    whf_r, whf_z, whf_n = whf_ref[0], whf_ref[1], whf_ref[2]
    whb_r, whb_z, whb_n = whb_ref[0], whb_ref[1], whb_ref[2]
    bhn_f = bhn_ref[0]                    # (1, H)  (only n-gate b_hh survives)
    bhn_b = bhn_ref[1]

    def cell(x_r, x_z, x_n, h, w_r, w_z, w_n, b_n):
        # x_* already contain x @ W_ih + b_ih (+ b_hh for the r/z gates)
        r = jax.nn.sigmoid(x_r + jnp.dot(h, w_r, preferred_element_type=jnp.float32))
        z = jax.nn.sigmoid(x_z + jnp.dot(h, w_z, preferred_element_type=jnp.float32))
        n = jnp.tanh(x_n + r * (jnp.dot(h, w_n, preferred_element_type=jnp.float32) + b_n))
        return (1.0 - z) * n + z * h

    def body(i, carry):
        t_f = t_base + i                  # forward global time index
        t_b = t_total - 1 - t_f           # backward global time index
        hf = hf_scr[...]
        hb = hb_scr[...]
        hf_new = cell(gi_f_ref[i, 0], gi_f_ref[i, 1], gi_f_ref[i, 2],
                      hf, whf_r, whf_z, whf_n, bhn_f)
        hb_new = cell(gi_b_ref[i, 0], gi_b_ref[i, 1], gi_b_ref[i, 2],
                      hb, whb_r, whb_z, whb_n, bhn_b)
        # pack_padded_sequence semantics: freeze fwd once t >= len, bwd
        # effectively starts at t = len-1 (earlier reversed steps are masked).
        hf_scr[...] = jnp.where(t_f < lens, hf_new, hf)
        hb_scr[...] = jnp.where(t_b < lens, hb_new, hb)
        return carry

    lax.fori_loop(0, chunk_t, body, 0,
                  unroll=True if chunk_t <= 16 else 8)

    @pl.when(step == n_steps - 1)
    def _finalize():
        # hidden.sum(axis=0) over the 2 directions, then tanh
        out_ref[...] = jnp.tanh(hf_scr[...] + hb_scr[...])


def utterance_encoder_forward(inpt, lengths, params, h0, *, max_chunk_t=128):
    """inpt: (T, B) int32 token ids; lengths: (B,) int32; h0: (2, B, H)."""
    T, B = inpt.shape
    E = params["embed"].shape[1]
    H = params["w_hh_f"].shape[0]

    # ---- JAX glue: embedding gather + hoisted input projection ----
    # TODO(synk): the gather materializes emb[T,B,E] in HBM; a scalar-prefetch
    # per-chunk DMA gather of embed rows would avoid that round trip.
    emb = jnp.take(params["embed"], inpt, axis=0).astype(jnp.float32)   # (T,B,E)

    Bp = _round_up(max(B, 8), 8)                 # pad batch to f32 sublane tile
    # T-chunk sized so double-buffered gi tiles stay well under scoped VMEM
    # (re-derived per call; conservative enough for v7x's 64 MiB VMEM).
    bytes_per_t = 2 * 3 * Bp * H * 4
    chunk_t = int(max(1, min(max_chunk_t, (4 * 1024 * 1024) // (2 * bytes_per_t), T)))
    Tp = _round_up(T, chunk_t)

    emb = jnp.pad(emb, ((0, Tp - T), (0, Bp - B), (0, 0)))
    lens_p = jnp.pad(lengths.astype(jnp.int32), (0, Bp - B)).reshape(Bp, 1)
    h0_p = jnp.pad(h0.astype(jnp.float32), ((0, 0), (0, Bp - B), (0, 0)))

    def input_proj(w_ih, b_ih, b_hh):
        # one big (Tp*Bp, E) @ (E, 3H) matmul; fold b_ih (+ b_hh for r/z gates)
        bias = b_ih + jnp.concatenate(
            [b_hh[:, :H], b_hh[:, H:2 * H], jnp.zeros((1, H), jnp.float32)], axis=1)
        gi = jnp.dot(emb.reshape(Tp * Bp, E), w_ih,
                     preferred_element_type=jnp.float32) + bias          # (Tp*Bp, 3H)
        return gi.reshape(Tp, Bp, 3, H).transpose(0, 2, 1, 3)            # (Tp,3,Bp,H)

    gi_f = input_proj(params["w_ih_f"], params["b_ih_f"], params["b_hh_f"])
    gi_b = input_proj(params["w_ih_b"], params["b_ih_b"], params["b_hh_b"])
    gi_b = gi_b[::-1]    # reverse time so both directions stream forward together

    def split_gates(w_hh):                                # (H,3H) -> (3,H,H)
        return jnp.stack([w_hh[:, :H], w_hh[:, H:2 * H], w_hh[:, 2 * H:]], axis=0)

    whf = split_gates(params["w_hh_f"])
    whb = split_gates(params["w_hh_b"])
    bhn = jnp.stack([params["b_hh_f"][:, 2 * H:],
                     params["b_hh_b"][:, 2 * H:]], axis=0)               # (2,1,H)

    grid = (Tp // chunk_t,)
    kernel = functools.partial(bigru_kernel, chunk_t=chunk_t)

    out_p = pl.pallas_call(
        kernel,
        out_shape=jax.ShapeDtypeStruct((Bp, H), jnp.float32),
        grid=grid,
        in_specs=[
            pl.BlockSpec((chunk_t, 3, Bp, H), lambda s: (s, 0, 0, 0)),   # gi fwd
            pl.BlockSpec((chunk_t, 3, Bp, H), lambda s: (s, 0, 0, 0)),   # gi bwd (rev)
            pl.BlockSpec((Bp, 1), lambda s: (0, 0)),                     # lengths
            pl.BlockSpec((2, Bp, H), lambda s: (0, 0, 0)),               # h0
            pl.BlockSpec((3, H, H), lambda s: (0, 0, 0)),                # W_hh fwd
            pl.BlockSpec((3, H, H), lambda s: (0, 0, 0)),                # W_hh bwd
            pl.BlockSpec((2, 1, H), lambda s: (0, 0, 0)),                # b_hh n-gate
        ],
        out_specs=pl.BlockSpec((Bp, H), lambda s: (0, 0)),
        scratch_shapes=[pltpu.VMEM((Bp, H), jnp.float32),                # h_fwd
                        pltpu.VMEM((Bp, H), jnp.float32)],               # h_bwd
        compiler_params=pltpu.CompilerParams(
            dimension_semantics=("arbitrary",)),
    )(gi_f, gi_b, lens_p, h0_p, whf, whb, bhn)

    return out_p[:B]


def make_params(key, vocab, E, H):
    ks = jax.random.split(key, 6)
    xavier = lambda k, shape: (jax.random.normal(k, shape, jnp.float32)
                               * np.sqrt(2.0 / (shape[0] + shape[1])))
    return {
        "embed":  jax.random.normal(ks[0], (vocab, E), jnp.float32) * 0.1,
        # stored transposed relative to PyTorch (E,3H)/(H,3H), gate order [r,z,n]
        "w_ih_f": xavier(ks[1], (E, 3 * H)),
        "w_hh_f": xavier(ks[2], (H, 3 * H)),
        "b_ih_f": jnp.zeros((1, 3 * H), jnp.float32),
        "b_hh_f": jnp.zeros((1, 3 * H), jnp.float32),
        "w_ih_b": xavier(ks[3], (E, 3 * H)),
        "w_hh_b": xavier(ks[4], (H, 3 * H)),
        "b_ih_b": jnp.zeros((1, 3 * H), jnp.float32),
        "b_hh_b": jnp.zeros((1, 3 * H), jnp.float32),
    }


def reference_forward(inpt, lengths, params, h0):
    """Pure-JAX reference of the same semantics for correctness checking."""
    T, B = inpt.shape
    H = params["w_hh_f"].shape[0]
    emb = jnp.take(params["embed"], inpt, axis=0).astype(jnp.float32)
    lens = lengths.astype(jnp.int32).reshape(B, 1)

    def cell(x, h, wi, wh, bi, bh):
        gi = x @ wi + bi
        gh = h @ wh + bh
        r = jax.nn.sigmoid(gi[:, :H] + gh[:, :H])
        z = jax.nn.sigmoid(gi[:, H:2 * H] + gh[:, H:2 * H])
        n = jnp.tanh(gi[:, 2 * H:] + r * gh[:, 2 * H:])
        return (1.0 - z) * n + z * h

    hf = h0[0]
    for t in range(T):
        hn = cell(emb[t], hf, params["w_ih_f"], params["w_hh_f"],
                  params["b_ih_f"], params["b_hh_f"])
        hf = jnp.where(t < lens, hn, hf)
    hb = h0[1]
    for t in range(T - 1, -1, -1):
        hn = cell(emb[t], hb, params["w_ih_b"], params["w_hh_b"],
                  params["b_ih_b"], params["b_hh_b"])
        hb = jnp.where(t < lens, hn, hb)
    return jnp.tanh(hf + hb)


if __name__ == "__main__":
    vocab, E, H = 50, 32, 32
    T, B = 8, 4

    key = jax.random.PRNGKey(0)
    k_par, k_tok, k_h0 = jax.random.split(key, 3)

    params = make_params(k_par, vocab, E, H)
    inpt = jax.random.randint(k_tok, (T, B), 0, vocab, dtype=jnp.int32)
    lengths = jnp.array([8, 5, 7, 3], dtype=jnp.int32)
    # equivalent of `hidden = torch.randn(n_layer*2, len(lengths), hidden_size)`
    h0 = jax.random.normal(k_h0, (2, B, H), jnp.float32)

    out = utterance_encoder_forward(inpt, lengths, params, h0)
    out = jax.block_until_ready(out)

    ref = reference_forward(inpt, lengths, params, h0)
    np.testing.assert_allclose(np.asarray(out), np.asarray(ref),
                               rtol=1e-5, atol=1e-5)
    assert out.shape == (B, H)
    print("KERNEL_OK")
</pallas_src>

<mosaic_0001>
module attributes {stable_mosaic.version = 11 : i64} {
  func.func @bigru_kernel(%arg0: i32, %arg1: memref<8x3x8x32xf32, #tpu.memory_space<vmem>>, %arg2: memref<8x3x8x32xf32, #tpu.memory_space<vmem>>, %arg3: memref<8x1xi32, #tpu.memory_space<vmem>>, %arg4: memref<2x8x32xf32, #tpu.memory_space<vmem>>, %arg5: memref<3x32x32xf32, #tpu.memory_space<vmem>>, %arg6: memref<3x32x32xf32, #tpu.memory_space<vmem>>, %arg7: memref<2x1x32xf32, #tpu.memory_space<vmem>>, %arg8: memref<8x32xf32, #tpu.memory_space<vmem>>, %arg9: memref<8x32xf32, #tpu.memory_space<vmem>>, %arg10: memref<8x32xf32, #tpu.memory_space<vmem>>) attributes {dimension_semantics = [#tpu.dimension_semantics<arbitrary>], iteration_bounds = array<i64: 1>, scalar_prefetch = 0 : i64, scratch_operands = 2 : i64, tpu.core_type = #tpu.core_type<tc>, window_params = [{transform_indices = @transform_0, window_bounds = array<i64: 8, 3, 8, 32>}, {transform_indices = @transform_1, window_bounds = array<i64: 8, 3, 8, 32>}, {pipeline_mode = #tpu.pipeline_mode<synchronous>, transform_indices = @transform_2, window_bounds = array<i64: 8, 1>}, {pipeline_mode = #tpu.pipeline_mode<synchronous>, transform_indices = @transform_3, window_bounds = array<i64: 2, 8, 32>}, {pipeline_mode = #tpu.pipeline_mode<synchronous>, transform_indices = @transform_4, window_bounds = array<i64: 3, 32, 32>}, {pipeline_mode = #tpu.pipeline_mode<synchronous>, transform_indices = @transform_5, window_bounds = array<i64: 3, 32, 32>}, {pipeline_mode = #tpu.pipeline_mode<synchronous>, transform_indices = @transform_6, window_bounds = array<i64: 2, 1, 32>}, {pipeline_mode = #tpu.pipeline_mode<synchronous>, transform_indices = @transform_7, window_bounds = array<i64: 8, 32>}]} {
    %c8_i32 = arith.constant 8 : i32
    %0 = arith.muli %arg0, %c8_i32 : i32
    %c0_i32 = arith.constant 0 : i32
    %1 = arith.cmpi eq, %arg0, %c0_i32 : i32
    %2 = arith.extui %1 : i1 to i32
    %c0_i32_0 = arith.constant 0 : i32
    %3 = arith.cmpi ne, %2, %c0_i32_0 : i32
    scf.if %3 {
      %c0_339 = arith.constant 0 : index
      %c0_340 = arith.constant 0 : index
      %c0_341 = arith.constant 0 : index
      %696 = vector.load %arg4[%c0_339, %c0_340, %c0_341] : memref<2x8x32xf32, #tpu.memory_space<vmem>>, vector<1x8x32xf32>
      %697 = vector.shape_cast %696 : vector<1x8x32xf32> to vector<8x32xf32>
      %c0_342 = arith.constant 0 : index
      %c0_343 = arith.constant 0 : index
      %698 = vector.load %arg9[%c0_342, %c0_343] : memref<8x32xf32, #tpu.memory_space<vmem>>, vector<8x32xf32>
      tpu.vector_store %arg9[%c0_342, %c0_343], %697 {strides = array<i32>} : memref<8x32xf32, #tpu.memory_space<vmem>>, vector<8x32xf32>,
      %c1_344 = arith.constant 1 : index
      %c0_345 = arith.constant 0 : index
      %c0_346 = arith.constant 0 : index
      %699 = vector.load %arg4[%c1_344, %c0_345, %c0_346] : memref<2x8x32xf32, #tpu.memory_space<vmem>>, vector<1x8x32xf32>
      %700 = vector.shape_cast %699 : vector<1x8x32xf32> to vector<8x32xf32>
      %c0_347 = arith.constant 0 : index
      %c0_348 = arith.constant 0 : index
      %701 = vector.load %arg10[%c0_347, %c0_348] : memref<8x32xf32, #tpu.memory_space<vmem>>, vector<8x32xf32>
      tpu.vector_store %arg10[%c0_347, %c0_348], %700 {strides = array<i32>} : memref<8x32xf32, #tpu.memory_space<vmem>>, vector<8x32xf32>,
    } else {
    }
    %c0 = arith.constant 0 : index
    %c0_1 = arith.constant 0 : index
    %4 = vector.load %arg3[%c0, %c0_1] : memref<8x1xi32, #tpu.memory_space<vmem>>, vector<8x1xi32>
    %c0_2 = arith.constant 0 : index
    %c0_3 = arith.constant 0 : index
    %c0_4 = arith.constant 0 : index
    %5 = vector.load %arg5[%c0_2, %c0_3, %c0_4] : memref<3x32x32xf32, #tpu.memory_space<vmem>>, vector<1x32x32xf32>
    %6 = vector.shape_cast %5 : vector<1x32x32xf32> to vector<32x32xf32>
    %c1 = arith.constant 1 : index
    %c0_5 = arith.constant 0 : index
    %c0_6 = arith.constant 0 : index
    %7 = vector.load %arg5[%c1, %c0_5, %c0_6] : memref<3x32x32xf32, #tpu.memory_space<vmem>>, vector<1x32x32xf32>
    %8 = vector.shape_cast %7 : vector<1x32x32xf32> to vector<32x32xf32>
    %c2 = arith.constant 2 : index
    %c0_7 = arith.constant 0 : index
    %c0_8 = arith.constant 0 : index
    %9 = vector.load %arg5[%c2, %c0_7, %c0_8] : memref<3x32x32xf32, #tpu.memory_space<vmem>>, vector<1x32x32xf32>
    %10 = vector.shape_cast %9 : vector<1x32x32xf32> to vector<32x32xf32>
    %c0_9 = arith.constant 0 : index
    %c0_10 = arith.constant 0 : index
    %c0_11 = arith.constant 0 : index
    %11 = vector.load %arg6[%c0_9, %c0_10, %c0_11] : memref<3x32x32xf32, #tpu.memory_space<vmem>>, vector<1x32x32xf32>
    %12 = vector.shape_cast %11 : vector<1x32x32xf32> to vector<32x32xf32>
    %c1_12 = arith.constant 1 : index
    %c0_13 = arith.constant 0 : index
    %c0_14 = arith.constant 0 : index
    %13 = vector.load %arg6[%c1_12, %c0_13, %c0_14] : memref<3x32x32xf32, #tpu.memory_space<vmem>>, vector<1x32x32xf32>
    %14 = vector.shape_cast %13 : vector<1x32x32xf32> to vector<32x32xf32>
    %c2_15 = arith.constant 2 : index
    %c0_16 = arith.constant 0 : index
    %c0_17 = arith.constant 0 : index
    %15 = vector.load %arg6[%c2_15, %c0_16, %c0_17] : memref<3x32x32xf32, #tpu.memory_space<vmem>>, vector<1x32x32xf32>
    %16 = vector.shape_cast %15 : vector<1x32x32xf32> to vector<32x32xf32>
    %c0_18 = arith.constant 0 : index
    %c0_19 = arith.constant 0 : index
    %c0_20 = arith.constant 0 : index
    %17 = vector.load %arg7[%c0_18, %c0_19, %c0_20] : memref<2x1x32xf32, #tpu.memory_space<vmem>>, vector<1x1x32xf32>
    %18 = vector.shape_cast %17 : vector<1x1x32xf32> to vector<1x32xf32>
    %c1_21 = arith.constant 1 : index
    %c0_22 = arith.constant 0 : index
    %c0_23 = arith.constant 0 : index
    %19 = vector.load %arg7[%c1_21, %c0_22, %c0_23] : memref<2x1x32xf32, #tpu.memory_space<vmem>>, vector<1x1x32xf32>
    %20 = vector.shape_cast %19 : vector<1x1x32xf32> to vector<1x32xf32>
    %c0_i32_24 = arith.constant 0 : i32
    %21 = arith.addi %0, %c0_i32_24 : i32
    %c7_i32 = arith.constant 7 : i32
    %22 = arith.subi %c7_i32, %21 : i32
    %c0_25 = arith.constant 0 : index
    %c0_26 = arith.constant 0 : index
    %23 = vector.load %arg9[%c0_25, %c0_26] : memref<8x32xf32, #tpu.memory_space<vmem>>, vector<8x32xf32>
    %c0_27 = arith.constant 0 : index
    %c0_28 = arith.constant 0 : index
    %24 = vector.load %arg10[%c0_27, %c0_28] : memref<8x32xf32, #tpu.memory_space<vmem>>, vector<8x32xf32>
    %25 = arith.index_cast %c0_i32_24 : i32 to index
    %c0_29 = arith.constant 0 : index
    %c0_30 = arith.constant 0 : index
    %c0_31 = arith.constant 0 : index
    %26 = vector.load %arg1[%25, %c0_29, %c0_30, %c0_31] : memref<8x3x8x32xf32, #tpu.memory_space<vmem>>, vector<1x1x8x32xf32>
    %27 = vector.shape_cast %26 : vector<1x1x8x32xf32> to vector<8x32xf32>
    %28 = arith.index_cast %c0_i32_24 : i32 to index
    %c1_32 = arith.constant 1 : index
    %c0_33 = arith.constant 0 : index
    %c0_34 = arith.constant 0 : index
    %29 = vector.load %arg1[%28, %c1_32, %c0_33, %c0_34] : memref<8x3x8x32xf32, #tpu.memory_space<vmem>>, vector<1x1x8x32xf32>
    %30 = vector.shape_cast %29 : vector<1x1x8x32xf32> to vector<8x32xf32>
    %31 = arith.index_cast %c0_i32_24 : i32 to index
    %c2_35 = arith.constant 2 : index
    %c0_36 = arith.constant 0 : index
    %c0_37 = arith.constant 0 : index
    %32 = vector.load %arg1[%31, %c2_35, %c0_36, %c0_37] : memref<8x3x8x32xf32, #tpu.memory_space<vmem>>, vector<1x1x8x32xf32>
    %33 = vector.shape_cast %32 : vector<1x1x8x32xf32> to vector<8x32xf32>
    %cst = arith.constant dense<0.000000e+00> : vector<8x32xf32>
    %34 = tpu.matmul %23, %6, %cst {dimension_numbers = #tpu.dot_dimension_numbers<[1], [0], [0], [1], [0, 0, 1, 1], [], []>} : vector<8x32xf32>, vector<32x32xf32>, vector<8x32xf32> -> vector<8x32xf32>
    %35 = arith.addf %27, %34 : vector<8x32xf32>
    %36 = arith.negf %35 : vector<8x32xf32>
    %37 = math.exp %36 : vector<8x32xf32>
    %cst_38 = arith.constant 1.000000e+00 : f32
    %38 = vector.broadcast %cst_38 : f32 to vector<8x32xf32>
    %39 = arith.addf %38, %37 : vector<8x32xf32>
    %40 = arith.divf %38, %39 : vector<8x32xf32>
    %cst_39 = arith.constant dense<0.000000e+00> : vector<8x32xf32>
    %41 = tpu.matmul %23, %8, %cst_39 {dimension_numbers = #tpu.dot_dimension_numbers<[1], [0], [0], [1], [0, 0, 1, 1], [], []>} : vector<8x32xf32>, vector<32x32xf32>, vector<8x32xf32> -> vector<8x32xf32>
    %42 = arith.addf %30, %41 : vector<8x32xf32>
    %43 = arith.negf %42 : vector<8x32xf32>
    %44 = math.exp %43 : vector<8x32xf32>
    %cst_40 = arith.constant 1.000000e+00 : f32
    %45 = vector.broadcast %cst_40 : f32 to vector<8x32xf32>
    %46 = arith.addf %45, %44 : vector<8x32xf32>
    %47 = arith.divf %45, %46 : vector<8x32xf32>
    %cst_41 = arith.constant dense<0.000000e+00> : vector<8x32xf32>
    %48 = tpu.matmul %23, %10, %cst_41 {dimension_numbers = #tpu.dot_dimension_numbers<[1], [0], [0], [1], [0, 0, 1, 1], [], []>} : vector<8x32xf32>, vector<32x32xf32>, vector<8x32xf32> -> vector<8x32xf32>
    %49 = vector.broadcast %18 : vector<1x32xf32> to vector<8x32xf32>
    %50 = arith.addf %48, %49 : vector<8x32xf32>
    %51 = arith.mulf %40, %50 : vector<8x32xf32>
    %52 = arith.addf %33, %51 : vector<8x32xf32>
    %53 = math.tanh %52 : vector<8x32xf32>
    %cst_42 = arith.constant 1.000000e+00 : f32
    %54 = vector.broadcast %cst_42 : f32 to vector<8x32xf32>
    %55 = arith.subf %54, %47 : vector<8x32xf32>
    %56 = arith.mulf %55, %53 : vector<8x32xf32>
    %57 = arith.mulf %47, %23 : vector<8x32xf32>
    %58 = arith.addf %56, %57 : vector<8x32xf32>
    %59 = arith.index_cast %c0_i32_24 : i32 to index
    %c0_43 = arith.constant 0 : index
    %c0_44 = arith.constant 0 : index
    %c0_45 = arith.constant 0 : index
    %60 = vector.load %arg2[%59, %c0_43, %c0_44, %c0_45] : memref<8x3x8x32xf32, #tpu.memory_space<vmem>>, vector<1x1x8x32xf32>
    %61 = vector.shape_cast %60 : vector<1x1x8x32xf32> to vector<8x32xf32>
    %62 = arith.index_cast %c0_i32_24 : i32 to index
    %c1_46 = arith.constant 1 : index
    %c0_47 = arith.constant 0 : index
    %c0_48 = arith.constant 0 : index
    %63 = vector.load %arg2[%62, %c1_46, %c0_47, %c0_48] : memref<8x3x8x32xf32, #tpu.memory_space<vmem>>, vector<1x1x8x32xf32>
    %64 = vector.shape_cast %63 : vector<1x1x8x32xf32> to vector<8x32xf32>
    %65 = arith.index_cast %c0_i32_24 : i32 to index
    %c2_49 = arith.constant 2 : index
    %c0_50 = arith.constant 0 : index
    %c0_51 = arith.constant 0 : index
    %66 = vector.load %arg2[%65, %c2_49, %c0_50, %c0_51] : memref<8x3x8x32xf32, #tpu.memory_space<vmem>>, vector<1x1x8x32xf32>
    %67 = vector.shape_cast %66 : vector<1x1x8x32xf32> to vector<8x32xf32>
    %cst_52 = arith.constant dense<0.000000e+00> : vector<8x32xf32>
    %68 = tpu.matmul %24, %12, %cst_52 {dimension_numbers = #tpu.dot_dimension_numbers<[1], [0], [0], [1], [0, 0, 1, 1], [], []>} : vector<8x32xf32>, vector<32x32xf32>, vector<8x32xf32> -> vector<8x32xf32>
    %69 = arith.addf %61, %68 : vector<8x32xf32>
    %70 = arith.negf %69 : vector<8x32xf32>
    %71 = math.exp %70 : vector<8x32xf32>
    %cst_53 = arith.constant 1.000000e+00 : f32
    %72 = vector.broadcast %cst_53 : f32 to vector<8x32xf32>
    %73 = arith.addf %72, %71 : vector<8x32xf32>
    %74 = arith.divf %72, %73 : vector<8x32xf32>
    %cst_54 = arith.constant dense<0.000000e+00> : vector<8x32xf32>
    %75 = tpu.matmul %24, %14, %cst_54 {dimension_numbers = #tpu.dot_dimension_numbers<[1], [0], [0], [1], [0, 0, 1, 1], [], []>} : vector<8x32xf32>, vector<32x32xf32>, vector<8x32xf32> -> vector<8x32xf32>
    %76 = arith.addf %64, %75 : vector<8x32xf32>
    %77 = arith.negf %76 : vector<8x32xf32>
    %78 = math.exp %77 : vector<8x32xf32>
    %cst_55 = arith.constant 1.000000e+00 : f32
    %79 = vector.broadcast %cst_55 : f32 to vector<8x32xf32>
    %80 = arith.addf %79, %78 : vector<8x32xf32>
    %81 = arith.divf %79, %80 : vector<8x32xf32>
    %cst_56 = arith.constant dense<0.000000e+00> : vector<8x32xf32>
    %82 = tpu.matmul %24, %16, %cst_56 {dimension_numbers = #tpu.dot_dimension_numbers<[1], [0], [0], [1], [0, 0, 1, 1], [], []>} : vector<8x32xf32>, vector<32x32xf32>, vector<8x32xf32> -> vector<8x32xf32>
    %83 = vector.broadcast %20 : vector<1x32xf32> to vector<8x32xf32>
    %84 = arith.addf %82, %83 : vector<8x32xf32>
    %85 = arith.mulf %74, %84 : vector<8x32xf32>
    %86 = arith.addf %67, %85 : vector<8x32xf32>
    %87 = math.tanh %86 : vector<8x32xf32>
    %cst_57 = arith.constant 1.000000e+00 : f32
    %88 = vector.broadcast %cst_57 : f32 to vector<8x32xf32>
    %89 = arith.subf %88, %81 : vector<8x32xf32>
    %90 = arith.mulf %89, %87 : vector<8x32xf32>
    %91 = arith.mulf %81, %24 : vector<8x32xf32>
    %92 = arith.addf %90, %91 : vector<8x32xf32>
    %93 = vector.broadcast %21 : i32 to vector<8x1xi32>
    %94 = arith.cmpi slt, %93, %4 : vector<8x1xi32>
    %95 = vector.shape_cast %94 : vector<8x1xi1> to vector<8x1xi1>
    %96 = vector.broadcast %95 : vector<8x1xi1> to vector<8x32xi1>
    %97 = arith.select %96, %58, %23 : vector<8x32xi1>, vector<8x32xf32>
    %c0_58 = arith.constant 0 : index
    %c0_59 = arith.constant 0 : index
    %98 = vector.load %arg9[%c0_58, %c0_59] : memref<8x32xf32, #tpu.memory_space<vmem>>, vector<8x32xf32>
    tpu.vector_store %arg9[%c0_58, %c0_59], %97 {strides = array<i32>} : memref<8x32xf32, #tpu.memory_space<vmem>>, vector<8x32xf32>,
    %99 = vector.broadcast %22 : i32 to vector<8x1xi32>
    %100 = arith.cmpi slt, %99, %4 : vector<8x1xi32>
    %101 = vector.shape_cast %100 : vector<8x1xi1> to vector<8x1xi1>
    %102 = vector.broadcast %101 : vector<8x1xi1> to vector<8x32xi1>
    %103 = arith.select %102, %92, %24 : vector<8x32xi1>, vector<8x32xf32>
    %c0_60 = arith.constant 0 : index
    %c0_61 = arith.constant 0 : index
    %104 = vector.load %arg10[%c0_60, %c0_61] : memref<8x32xf32, #tpu.memory_space<vmem>>, vector<8x32xf32>
    tpu.vector_store %arg10[%c0_60, %c0_61], %103 {strides = array<i32>} : memref<8x32xf32, #tpu.memory_space<vmem>>, vector<8x32xf32>,
    %c1_i32 = arith.constant 1 : i32
    %105 = arith.addi %0, %c1_i32 : i32
    %c7_i32_62 = arith.constant 7 : i32
    %106 = arith.subi %c7_i32_62, %105 : i32
    %c0_63 = arith.constant 0 : index
    %c0_64 = arith.constant 0 : index
    %107 = vector.load %arg9[%c0_63, %c0_64] : memref<8x32xf32, #tpu.memory_space<vmem>>, vector<8x32xf32>
    %c0_65 = arith.constant 0 : index
    %c0_66 = arith.constant 0 : index
    %108 = vector.load %arg10[%c0_65, %c0_66] : memref<8x32xf32, #tpu.memory_space<vmem>>, vector<8x32xf32>
    %109 = arith.index_cast %c1_i32 : i32 to index
    %c0_67 = arith.constant 0 : index
    %c0_68 = arith.constant 0 : index
    %c0_69 = arith.constant 0 : index
    %110 = vector.load %arg1[%109, %c0_67, %c0_68, %c0_69] : memref<8x3x8x32xf32, #tpu.memory_space<vmem>>, vector<1x1x8x32xf32>
    %111 = vector.shape_cast %110 : vector<1x1x8x32xf32> to vector<8x32xf32>
    %112 = arith.index_cast %c1_i32 : i32 to index
    %c1_70 = arith.constant 1 : index
    %c0_71 = arith.constant 0 : index
    %c0_72 = arith.constant 0 : index
    %113 = vector.load %arg1[%112, %c1_70, %c0_71, %c0_72] : memref<8x3x8x32xf32, #tpu.memory_space<vmem>>, vector<1x1x8x32xf32>
    %114 = vector.shape_cast %113 : vector<1x1x8x32xf32> to vector<8x32xf32>
    %115 = arith.index_cast %c1_i32 : i32 to index
    %c2_73 = arith.constant 2 : index
    %c0_74 = arith.constant 0 : index
    %c0_75 = arith.constant 0 : index
    %116 = vector.load %arg1[%115, %c2_73, %c0_74, %c0_75] : memref<8x3x8x32xf32, #tpu.memory_space<vmem>>, vector<1x1x8x32xf32>
    %117 = vector.shape_cast %116 : vector<1x1x8x32xf32> to vector<8x32xf32>
    %cst_76 = arith.constant dense<0.000000e+00> : vector<8x32xf32>
    %118 = tpu.matmul %107, %6, %cst_76 {dimension_numbers = #tpu.dot_dimension_numbers<[1], [0], [0], [1], [0, 0, 1, 1], [], []>} : vector<8x32xf32>, vector<32x32xf32>, vector<8x32xf32> -> vector<8x32xf32>
    %119 = arith.addf %111, %118 : vector<8x32xf32>
    %120 = arith.negf %119 : vector<8x32xf32>
    %121 = math.exp %120 : vector<8x32xf32>
    %cst_77 = arith.constant 1.000000e+00 : f32
    %122 = vector.broadcast %cst_77 : f32 to vector<8x32xf32>
    %123 = arith.addf %122, %121 : vector<8x32xf32>
    %124 = arith.divf %122, %123 : vector<8x32xf32>
    %cst_78 = arith.constant dense<0.000000e+00> : vector<8x32xf32>
    %125 = tpu.matmul %107, %8, %cst_78 {dimension_numbers = #tpu.dot_dimension_numbers<[1], [0], [0], [1], [0, 0, 1, 1], [], []>} : vector<8x32xf32>, vector<32x32xf32>, vector<8x32xf32> -> vector<8x32xf32>
    %126 = arith.addf %114, %125 : vector<8x32xf32>
    %127 = arith.negf %126 : vector<8x32xf32>
    %128 = math.exp %127 : vector<8x32xf32>
    %cst_79 = arith.constant 1.000000e+00 : f32
    %129 = vector.broadcast %cst_79 : f32 to vector<8x32xf32>
    %130 = arith.addf %129, %128 : vector<8x32xf32>
    %131 = arith.divf %129, %130 : vector<8x32xf32>
    %cst_80 = arith.constant dense<0.000000e+00> : vector<8x32xf32>
    %132 = tpu.matmul %107, %10, %cst_80 {dimension_numbers = #tpu.dot_dimension_numbers<[1], [0], [0], [1], [0, 0, 1, 1], [], []>} : vector<8x32xf32>, vector<32x32xf32>, vector<8x32xf32> -> vector<8x32xf32>
    %133 = vector.broadcast %18 : vector<1x32xf32> to vector<8x32xf32>
    %134 = arith.addf %132, %133 : vector<8x32xf32>
    %135 = arith.mulf %124, %134 : vector<8x32xf32>
    %136 = arith.addf %117, %135 : vector<8x32xf32>
    %137 = math.tanh %136 : vector<8x32xf32>
    %cst_81 = arith.constant 1.000000e+00 : f32
    %138 = vector.broadcast %cst_81 : f32 to vector<8x32xf32>
    %139 = arith.subf %138, %131 : vector<8x32xf32>
    %140 = arith.mulf %139, %137 : vector<8x32xf32>
    %141 = arith.mulf %131, %107 : vector<8x32xf32>
    %142 = arith.addf %140, %141 : vector<8x32xf32>
    %143 = arith.index_cast %c1_i32 : i32 to index
    %c0_82 = arith.constant 0 : index
    %c0_83 = arith.constant 0 : index
    %c0_84 = arith.constant 0 : index
    %144 = vector.load %arg2[%143, %c0_82, %c0_83, %c0_84] : memref<8x3x8x32xf32, #tpu.memory_space<vmem>>, vector<1x1x8x32xf32>
    %145 = vector.shape_cast %144 : vector<1x1x8x32xf32> to vector<8x32xf32>
    %146 = arith.index_cast %c1_i32 : i32 to index
    %c1_85 = arith.constant 1 : index
    %c0_86 = arith.constant 0 : index
    %c0_87 = arith.constant 0 : index
    %147 = vector.load %arg2[%146, %c1_85, %c0_86, %c0_87] : memref<8x3x8x32xf32, #tpu.memory_space<vmem>>, vector<1x1x8x32xf32>
    %148 = vector.shape_cast %147 : vector<1x1x8x32xf32> to vector<8x32xf32>
    %149 = arith.index_cast %c1_i32 : i32 to index
    %c2_88 = arith.constant 2 : index
    %c0_89 = arith.constant 0 : index
    %c0_90 = arith.constant 0 : index
    %150 = vector.load %arg2[%149, %c2_88, %c0_89, %c0_90] : memref<8x3x8x32xf32, #tpu.memory_space<vmem>>, vector<1x1x8x32xf32>
    %151 = vector.shape_cast %150 : vector<1x1x8x32xf32> to vector<8x32xf32>
    %cst_91 = arith.constant dense<0.000000e+00> : vector<8x32xf32>
    %152 = tpu.matmul %108, %12, %cst_91 {dimension_numbers = #tpu.dot_dimension_numbers<[1], [0], [0], [1], [0, 0, 1, 1], [], []>} : vector<8x32xf32>, vector<32x32xf32>, vector<8x32xf32> -> vector<8x32xf32>
    %153 = arith.addf %145, %152 : vector<8x32xf32>
    %154 = arith.negf %153 : vector<8x32xf32>
    %155 = math.exp %154 : vector<8x32xf32>
    %cst_92 = arith.constant 1.000000e+00 : f32
    %156 = vector.broadcast %cst_92 : f32 to vector<8x32xf32>
    %157 = arith.addf %156, %155 : vector<8x32xf32>
    %158 = arith.divf %156, %157 : vector<8x32xf32>
    %cst_93 = arith.constant dense<0.000000e+00> : vector<8x32xf32>
    %159 = tpu.matmul %108, %14, %cst_93 {dimension_numbers = #tpu.dot_dimension_numbers<[1], [0], [0], [1], [0, 0, 1, 1], [], []>} : vector<8x32xf32>, vector<32x32xf32>, vector<8x32xf32> -> vector<8x32xf32>
    %160 = arith.addf %148, %159 : vector<8x32xf32>
    %161 = arith.negf %160 : vector<8x32xf32>
    %162 = math.exp %161 : vector<8x32xf32>
    %cst_94 = arith.constant 1.000000e+00 : f32
    %163 = vector.broadcast %cst_94 : f32 to vector<8x32xf32>
    %164 = arith.addf %163, %162 : vector<8x32xf32>
    %165 = arith.divf %163, %164 : vector<8x32xf32>
    %cst_95 = arith.constant dense<0.000000e+00> : vector<8x32xf32>
    %166 = tpu.matmul %108, %16, %cst_95 {dimension_numbers = #tpu.dot_dimension_numbers<[1], [0], [0], [1], [0, 0, 1, 1], [], []>} : vector<8x32xf32>, vector<32x32xf32>, vector<8x32xf32> -> vector<8x32xf32>
    %167 = vector.broadcast %20 : vector<1x32xf32> to vector<8x32xf32>
    %168 = arith.addf %166, %167 : vector<8x32xf32>
    %169 = arith.mulf %158, %168 : vector<8x32xf32>
    %170 = arith.addf %151, %169 : vector<8x32xf32>
    %171 = math.tanh %170 : vector<8x32xf32>
    %cst_96 = arith.constant 1.000000e+00 : f32
    %172 = vector.broadcast %cst_96 : f32 to vector<8x32xf32>
    %173 = arith.subf %172, %165 : vector<8x32xf32>
    %174 = arith.mulf %173, %171 : vector<8x32xf32>
    %175 = arith.mulf %165, %108 : vector<8x32xf32>
    %176 = arith.addf %174, %175 : vector<8x32xf32>
    %177 = vector.broadcast %105 : i32 to vector<8x1xi32>
    %178 = arith.cmpi slt, %177, %4 : vector<8x1xi32>
    %179 = vector.shape_cast %178 : vector<8x1xi1> to vector<8x1xi1>
    %180 = vector.broadcast %179 : vector<8x1xi1> to vector<8x32xi1>
    %181 = arith.select %180, %142, %107 : vector<8x32xi1>, vector<8x32xf32>
    %c0_97 = arith.constant 0 : index
    %c0_98 = arith.constant 0 : index
    %182 = vector.load %arg9[%c0_97, %c0_98] : memref<8x32xf32, #tpu.memory_space<vmem>>, vector<8x32xf32>
    tpu.vector_store %arg9[%c0_97, %c0_98], %181 {strides = array<i32>} : memref<8x32xf32, #tpu.memory_space<vmem>>, vector<8x32xf32>,
    %183 = vector.broadcast %106 : i32 to vector<8x1xi32>
    %184 = arith.cmpi slt, %183, %4 : vector<8x1xi32>
    %185 = vector.shape_cast %184 : vector<8x1xi1> to vector<8x1xi1>
    %186 = vector.broadcast %185 : vector<8x1xi1> to vector<8x32xi1>
    %187 = arith.select %186, %176, %108 : vector<8x32xi1>, vector<8x32xf32>
    %c0_99 = arith.constant 0 : index
    %c0_100 = arith.constant 0 : index
    %188 = vector.load %arg10[%c0_99, %c0_100] : memref<8x32xf32, #tpu.memory_space<vmem>>, vector<8x32xf32>
    tpu.vector_store %arg10[%c0_99, %c0_100], %187 {strides = array<i32>} : memref<8x32xf32, #tpu.memory_space<vmem>>, vector<8x32xf32>,
    %c2_i32 = arith.constant 2 : i32
    %189 = arith.addi %0, %c2_i32 : i32
    %c7_i32_101 = arith.constant 7 : i32
    %190 = arith.subi %c7_i32_101, %189 : i32
    %c0_102 = arith.constant 0 : index
    %c0_103 = arith.constant 0 : index
    %191 = vector.load %arg9[%c0_102, %c0_103] : memref<8x32xf32, #tpu.memory_space<vmem>>, vector<8x32xf32>
    %c0_104 = arith.constant 0 : index
    %c0_105 = arith.constant 0 : index
    %192 = vector.load %arg10[%c0_104, %c0_105] : memref<8x32xf32, #tpu.memory_space<vmem>>, vector<8x32xf32>
    %193 = arith.index_cast %c2_i32 : i32 to index
    %c0_106 = arith.constant 0 : index
    %c0_107 = arith.constant 0 : index
    %c0_108 = arith.constant 0 : index
    %194 = vector.load %arg1[%193, %c0_106, %c0_107, %c0_108] : memref<8x3x8x32xf32, #tpu.memory_space<vmem>>, vector<1x1x8x32xf32>
    %195 = vector.shape_cast %194 : vector<1x1x8x32xf32> to vector<8x32xf32>
    %196 = arith.index_cast %c2_i32 : i32 to index
    %c1_109 = arith.constant 1 : index
    %c0_110 = arith.constant 0 : index
    %c0_111 = arith.constant 0 : index
    %197 = vector.load %arg1[%196, %c1_109, %c0_110, %c0_111] : memref<8x3x8x32xf32, #tpu.memory_space<vmem>>, vector<1x1x8x32xf32>
    %198 = vector.shape_cast %197 : vector<1x1x8x32xf32> to vector<8x32xf32>
    %199 = arith.index_cast %c2_i32 : i32 to index
    %c2_112 = arith.constant 2 : index
    %c0_113 = arith.constant 0 : index
    %c0_114 = arith.constant 0 : index
    %200 = vector.load %arg1[%199, %c2_112, %c0_113, %c0_114] : memref<8x3x8x32xf32, #tpu.memory_space<vmem>>, vector<1x1x8x32xf32>
    %201 = vector.shape_cast %200 : vector<1x1x8x32xf32> to vector<8x32xf32>
    %cst_115 = arith.constant dense<0.000000e+00> : vector<8x32xf32>
    %202 = tpu.matmul %191, %6, %cst_115 {dimension_numbers = #tpu.dot_dimension_numbers<[1], [0], [0], [1], [0, 0, 1, 1], [], []>} : vector<8x32xf32>, vector<32x32xf32>, vector<8x32xf32> -> vector<8x32xf32>
    %203 = arith.addf %195, %202 : vector<8x32xf32>
    %204 = arith.negf %203 : vector<8x32xf32>
    %205 = math.exp %204 : vector<8x32xf32>
    %cst_116 = arith.constant 1.000000e+00 : f32
    %206 = vector.broadcast %cst_116 : f32 to vector<8x32xf32>
    %207 = arith.addf %206, %205 : vector<8x32xf32>
    %208 = arith.divf %206, %207 : vector<8x32xf32>
    %cst_117 = arith.constant dense<0.000000e+00> : vector<8x32xf32>
    %209 = tpu.matmul %191, %8, %cst_117 {dimension_numbers = #tpu.dot_dimension_numbers<[1], [0], [0], [1], [0, 0, 1, 1], [], []>} : vector<8x32xf32>, vector<32x32xf32>, vector<8x32xf32> -> vector<8x32xf32>
    %210 = arith.addf %198, %209 : vector<8x32xf32>
    %211 = arith.negf %210 : vector<8x32xf32>
    %212 = math.exp %211 : vector<8x32xf32>
    %cst_118 = arith.constant 1.000000e+00 : f32
    %213 = vector.broadcast %cst_118 : f32 to vector<8x32xf32>
    %214 = arith.addf %213, %212 : vector<8x32xf32>
    %215 = arith.divf %213, %214 : vector<8x32xf32>
    %cst_119 = arith.constant dense<0.000000e+00> : vector<8x32xf32>
    %216 = tpu.matmul %191, %10, %cst_119 {dimension_numbers = #tpu.dot_dimension_numbers<[1], [0], [0], [1], [0, 0, 1, 1], [], []>} : vector<8x32xf32>, vector<32x32xf32>, vector<8x32xf32> -> vector<8x32xf32>
    %217 = vector.broadcast %18 : vector<1x32xf32> to vector<8x32xf32>
    %218 = arith.addf %216, %217 : vector<8x32xf32>
    %219 = arith.mulf %208, %218 : vector<8x32xf32>
    %220 = arith.addf %201, %219 : vector<8x32xf32>
    %221 = math.tanh %220 : vector<8x32xf32>
    %cst_120 = arith.constant 1.000000e+00 : f32
    %222 = vector.broadcast %cst_120 : f32 to vector<8x32xf32>
    %223 = arith.subf %222, %215 : vector<8x32xf32>
    %224 = arith.mulf %223, %221 : vector<8x32xf32>
    %225 = arith.mulf %215, %191 : vector<8x32xf32>
    %226 = arith.addf %224, %225 : vector<8x32xf32>
    %227 = arith.index_cast %c2_i32 : i32 to index
    %c0_121 = arith.constant 0 : index
    %c0_122 = arith.constant 0 : index
    %c0_123 = arith.constant 0 : index
    %228 = vector.load %arg2[%227, %c0_121, %c0_122, %c0_123] : memref<8x3x8x32xf32, #tpu.memory_space<vmem>>, vector<1x1x8x32xf32>
    %229 = vector.shape_cast %228 : vector<1x1x8x32xf32> to vector<8x32xf32>
    %230 = arith.index_cast %c2_i32 : i32 to index
    %c1_124 = arith.constant 1 : index
    %c0_125 = arith.constant 0 : index
    %c0_126 = arith.constant 0 : index
    %231 = vector.load %arg2[%230, %c1_124, %c0_125, %c0_126] : memref<8x3x8x32xf32, #tpu.memory_space<vmem>>, vector<1x1x8x32xf32>
    %232 = vector.shape_cast %231 : vector<1x1x8x32xf32> to vector<8x32xf32>
    %233 = arith.index_cast %c2_i32 : i32 to index
    %c2_127 = arith.constant 2 : index
    %c0_128 = arith.constant 0 : index
    %c0_129 = arith.constant 0 : index
    %234 = vector.load %arg2[%233, %c2_127, %c0_128, %c0_129] : memref<8x3x8x32xf32, #tpu.memory_space<vmem>>, vector<1x1x8x32xf32>
    %235 = vector.shape_cast %234 : vector<1x1x8x32xf32> to vector<8x32xf32>
    %cst_130 = arith.constant dense<0.000000e+00> : vector<8x32xf32>
    %236 = tpu.matmul %192, %12, %cst_130 {dimension_numbers = #tpu.dot_dimension_numbers<[1], [0], [0], [1], [0, 0, 1, 1], [], []>} : vector<8x32xf32>, vector<32x32xf32>, vector<8x32xf32> -> vector<8x32xf32>
    %237 = arith.addf %229, %236 : vector<8x32xf32>
    %238 = arith.negf %237 : vector<8x32xf32>
    %239 = math.exp %238 : vector<8x32xf32>
    %cst_131 = arith.constant 1.000000e+00 : f32
    %240 = vector.broadcast %cst_131 : f32 to vector<8x32xf32>
    %241 = arith.addf %240, %239 : vector<8x32xf32>
    %242 = arith.divf %240, %241 : vector<8x32xf32>
    %cst_132 = arith.constant dense<0.000000e+00> : vector<8x32xf32>
    %243 = tpu.matmul %192, %14, %cst_132 {dimension_numbers = #tpu.dot_dimension_numbers<[1], [0], [0], [1], [0, 0, 1, 1], [], []>} : vector<8x32xf32>, vector<32x32xf32>, vector<8x32xf32> -> vector<8x32xf32>
    %244 = arith.addf %232, %243 : vector<8x32xf32>
    %245 = arith.negf %244 : vector<8x32xf32>
    %246 = math.exp %245 : vector<8x32xf32>
    %cst_133 = arith.constant 1.000000e+00 : f32
    %247 = vector.broadcast %cst_133 : f32 to vector<8x32xf32>
    %248 = arith.addf %247, %246 : vector<8x32xf32>
    %249 = arith.divf %247, %248 : vector<8x32xf32>
    %cst_134 = arith.constant dense<0.000000e+00> : vector<8x32xf32>
    %250 = tpu.matmul %192, %16, %cst_134 {dimension_numbers = #tpu.dot_dimension_numbers<[1], [0], [0], [1], [0, 0, 1, 1], [], []>} : vector<8x32xf32>, vector<32x32xf32>, vector<8x32xf32> -> vector<8x32xf32>
    %251 = vector.broadcast %20 : vector<1x32xf32> to vector<8x32xf32>
    %252 = arith.addf %250, %251 : vector<8x32xf32>
    %253 = arith.mulf %242, %252 : vector<8x32xf32>
    %254 = arith.addf %235, %253 : vector<8x32xf32>
    %255 = math.tanh %254 : vector<8x32xf32>
    %cst_135 = arith.constant 1.000000e+00 : f32
    %256 = vector.broadcast %cst_135 : f32 to vector<8x32xf32>
    %257 = arith.subf %256, %249 : vector<8x32xf32>
    %258 = arith.mulf %257, %255 : vector<8x32xf32>
    %259 = arith.mulf %249, %192 : vector<8x32xf32>
    %260 = arith.addf %258, %259 : vector<8x32xf32>
    %261 = vector.broadcast %189 : i32 to vector<8x1xi32>
    %262 = arith.cmpi slt, %261, %4 : vector<8x1xi32>
    %263 = vector.shape_cast %262 : vector<8x1xi1> to vector<8x1xi1>
    %264 = vector.broadcast %263 : vector<8x1xi1> to vector<8x32xi1>
    %265 = arith.select %264, %226, %191 : vector<8x32xi1>, vector<8x32xf32>
    %c0_136 = arith.constant 0 : index
    %c0_137 = arith.constant 0 : index
    %266 = vector.load %arg9[%c0_136, %c0_137] : memref<8x32xf32, #tpu.memory_space<vmem>>, vector<8x32xf32>
    tpu.vector_store %arg9[%c0_136, %c0_137], %265 {strides = array<i32>} : memref<8x32xf32, #tpu.memory_space<vmem>>, vector<8x32xf32>,
    %267 = vector.broadcast %190 : i32 to vector<8x1xi32>
    %268 = arith.cmpi slt, %267, %4 : vector<8x1xi32>
    %269 = vector.shape_cast %268 : vector<8x1xi1> to vector<8x1xi1>
    %270 = vector.broadcast %269 : vector<8x1xi1> to vector<8x32xi1>
    %271 = arith.select %270, %260, %192 : vector<8x32xi1>, vector<8x32xf32>
    %c0_138 = arith.constant 0 : index
    %c0_139 = arith.constant 0 : index
    %272 = vector.load %arg10[%c0_138, %c0_139] : memref<8x32xf32, #tpu.memory_space<vmem>>, vector<8x32xf32>
    tpu.vector_store %arg10[%c0_138, %c0_139], %271 {strides = array<i32>} : memref<8x32xf32, #tpu.memory_space<vmem>>, vector<8x32xf32>,
    %c3_i32 = arith.constant 3 : i32
    %273 = arith.addi %0, %c3_i32 : i32
    %c7_i32_140 = arith.constant 7 : i32
    %274 = arith.subi %c7_i32_140, %273 : i32
    %c0_141 = arith.constant 0 : index
    %c0_142 = arith.constant 0 : index
    %275 = vector.load %arg9[%c0_141, %c0_142] : memref<8x32xf32, #tpu.memory_space<vmem>>, vector<8x32xf32>
    %c0_143 = arith.constant 0 : index
    %c0_144 = arith.constant 0 : index
    %276 = vector.load %arg10[%c0_143, %c0_144] : memref<8x32xf32, #tpu.memory_space<vmem>>, vector<8x32xf32>
    %277 = arith.index_cast %c3_i32 : i32 to index
    %c0_145 = arith.constant 0 : index
    %c0_146 = arith.constant 0 : index
    %c0_147 = arith.constant 0 : index
    %278 = vector.load %arg1[%277, %c0_145, %c0_146, %c0_147] : memref<8x3x8x32xf32, #tpu.memory_space<vmem>>, vector<1x1x8x32xf32>
    %279 = vector.shape_cast %278 : vector<1x1x8x32xf32> to vector<8x32xf32>
    %280 = arith.index_cast %c3_i32 : i32 to index
    %c1_148 = arith.constant 1 : index
    %c0_149 = arith.constant 0 : index
    %c0_150 = arith.constant 0 : index
    %281 = vector.load %arg1[%280, %c1_148, %c0_149, %c0_150] : memref<8x3x8x32xf32, #tpu.memory_space<vmem>>, vector<1x1x8x32xf32>
    %282 = vector.shape_cast %281 : vector<1x1x8x32xf32> to vector<8x32xf32>
    %283 = arith.index_cast %c3_i32 : i32 to index
    %c2_151 = arith.constant 2 : index
    %c0_152 = arith.constant 0 : index
    %c0_153 = arith.constant 0 : index
    %284 = vector.load %arg1[%283, %c2_151, %c0_152, %c0_153] : memref<8x3x8x32xf32, #tpu.memory_space<vmem>>, vector<1x1x8x32xf32>
    %285 = vector.shape_cast %284 : vector<1x1x8x32xf32> to vector<8x32xf32>
    %cst_154 = arith.constant dense<0.000000e+00> : vector<8x32xf32>
    %286 = tpu.matmul %275, %6, %cst_154 {dimension_numbers = #tpu.dot_dimension_numbers<[1], [0], [0], [1], [0, 0, 1, 1], [], []>} : vector<8x32xf32>, vector<32x32xf32>, vector<8x32xf32> -> vector<8x32xf32>
    %287 = arith.addf %279, %286 : vector<8x32xf32>
    %288 = arith.negf %287 : vector<8x32xf32>
    %289 = math.exp %288 : vector<8x32xf32>
    %cst_155 = arith.constant 1.000000e+00 : f32
    %290 = vector.broadcast %cst_155 : f32 to vector<8x32xf32>
    %291 = arith.addf %290, %289 : vector<8x32xf32>
    %292 = arith.divf %290, %291 : vector<8x32xf32>
    %cst_156 = arith.constant dense<0.000000e+00> : vector<8x32xf32>
    %293 = tpu.matmul %275, %8, %cst_156 {dimension_numbers = #tpu.dot_dimension_numbers<[1], [0], [0], [1], [0, 0, 1, 1], [], []>} : vector<8x32xf32>, vector<32x32xf32>, vector<8x32xf32> -> vector<8x32xf32>
    %294 = arith.addf %282, %293 : vector<8x32xf32>
    %295 = arith.negf %294 : vector<8x32xf32>
    %296 = math.exp %295 : vector<8x32xf32>
    %cst_157 = arith.constant 1.000000e+00 : f32
    %297 = vector.broadcast %cst_157 : f32 to vector<8x32xf32>
    %298 = arith.addf %297, %296 : vector<8x32xf32>
    %299 = arith.divf %297, %298 : vector<8x32xf32>
    %cst_158 = arith.constant dense<0.000000e+00> : vector<8x32xf32>
    %300 = tpu.matmul %275, %10, %cst_158 {dimension_numbers = #tpu.dot_dimension_numbers<[1], [0], [0], [1], [0, 0, 1, 1], [], []>} : vector<8x32xf32>, vector<32x32xf32>, vector<8x32xf32> -> vector<8x32xf32>
    %301 = vector.broadcast %18 : vector<1x32xf32> to vector<8x32xf32>
    %302 = arith.addf %300, %301 : vector<8x32xf32>
    %303 = arith.mulf %292, %302 : vector<8x32xf32>
    %304 = arith.addf %285, %303 : vector<8x32xf32>
    %305 = math.tanh %304 : vector<8x32xf32>
    %cst_159 = arith.constant 1.000000e+00 : f32
    %306 = vector.broadcast %cst_159 : f32 to vector<8x32xf32>
    %307 = arith.subf %306, %299 : vector<8x32xf32>
    %308 = arith.mulf %307, %305 : vector<8x32xf32>
    %309 = arith.mulf %299, %275 : vector<8x32xf32>
    %310 = arith.addf %308, %309 : vector<8x32xf32>
    %311 = arith.index_cast %c3_i32 : i32 to index
    %c0_160 = arith.constant 0 : index
    %c0_161 = arith.constant 0 : index
    %c0_162 = arith.constant 0 : index
    %312 = vector.load %arg2[%311, %c0_160, %c0_161, %c0_162] : memref<8x3x8x32xf32, #tpu.memory_space<vmem>>, vector<1x1x8x32xf32>
    %313 = vector.shape_cast %312 : vector<1x1x8x32xf32> to vector<8x32xf32>
    %314 = arith.index_cast %c3_i32 : i32 to index
    %c1_163 = arith.constant 1 : index
    %c0_164 = arith.constant 0 : index
    %c0_165 = arith.constant 0 : index
    %315 = vector.load %arg2[%314, %c1_163, %c0_164, %c0_165] : memref<8x3x8x32xf32, #tpu.memory_space<vmem>>, vector<1x1x8x32xf32>
    %316 = vector.shape_cast %315 : vector<1x1x8x32xf32> to vector<8x32xf32>
    %317 = arith.index_cast %c3_i32 : i32 to index
    %c2_166 = arith.constant 2 : index
    %c0_167 = arith.constant 0 : index
    %c0_168 = arith.constant 0 : index
    %318 = vector.load %arg2[%317, %c2_166, %c0_167, %c0_168] : memref<8x3x8x32xf32, #tpu.memory_space<vmem>>, vector<1x1x8x32xf32>
    %319 = vector.shape_cast %318 : vector<1x1x8x32xf32> to vector<8x32xf32>
    %cst_169 = arith.constant dense<0.000000e+00> : vector<8x32xf32>
    %320 = tpu.matmul %276, %12, %cst_169 {dimension_numbers = #tpu.dot_dimension_numbers<[1], [0], [0], [1], [0, 0, 1, 1], [], []>} : vector<8x32xf32>, vector<32x32xf32>, vector<8x32xf32> -> vector<8x32xf32>
    %321 = arith.addf %313, %320 : vector<8x32xf32>
    %322 = arith.negf %321 : vector<8x32xf32>
    %323 = math.exp %322 : vector<8x32xf32>
    %cst_170 = arith.constant 1.000000e+00 : f32
    %324 = vector.broadcast %cst_170 : f32 to vector<8x32xf32>
    %325 = arith.addf %324, %323 : vector<8x32xf32>
    %326 = arith.divf %324, %325 : vector<8x32xf32>
    %cst_171 = arith.constant dense<0.000000e+00> : vector<8x32xf32>
    %327 = tpu.matmul %276, %14, %cst_171 {dimension_numbers = #tpu.dot_dimension_numbers<[1], [0], [0], [1], [0, 0, 1, 1], [], []>} : vector<8x32xf32>, vector<32x32xf32>, vector<8x32xf32> -> vector<8x32xf32>
    %328 = arith.addf %316, %327 : vector<8x32xf32>
    %329 = arith.negf %328 : vector<8x32xf32>
    %330 = math.exp %329 : vector<8x32xf32>
    %cst_172 = arith.constant 1.000000e+00 : f32
    %331 = vector.broadcast %cst_172 : f32 to vector<8x32xf32>
    %332 = arith.addf %331, %330 : vector<8x32xf32>
    %333 = arith.divf %331, %332 : vector<8x32xf32>
    %cst_173 = arith.constant dense<0.000000e+00> : vector<8x32xf32>
    %334 = tpu.matmul %276, %16, %cst_173 {dimension_numbers = #tpu.dot_dimension_numbers<[1], [0], [0], [1], [0, 0, 1, 1], [], []>} : vector<8x32xf32>, vector<32x32xf32>, vector<8x32xf32> -> vector<8x32xf32>
    %335 = vector.broadcast %20 : vector<1x32xf32> to vector<8x32xf32>
    %336 = arith.addf %334, %335 : vector<8x32xf32>
    %337 = arith.mulf %326, %336 : vector<8x32xf32>
    %338 = arith.addf %319, %337 : vector<8x32xf32>
    %339 = math.tanh %338 : vector<8x32xf32>
    %cst_174 = arith.constant 1.000000e+00 : f32
    %340 = vector.broadcast %cst_174 : f32 to vector<8x32xf32>
    %341 = arith.subf %340, %333 : vector<8x32xf32>
    %342 = arith.mulf %341, %339 : vector<8x32xf32>
    %343 = arith.mulf %333, %276 : vector<8x32xf32>
    %344 = arith.addf %342, %343 : vector<8x32xf32>
    %345 = vector.broadcast %273 : i32 to vector<8x1xi32>
    %346 = arith.cmpi slt, %345, %4 : vector<8x1xi32>
    %347 = vector.shape_cast %346 : vector<8x1xi1> to vector<8x1xi1>
    %348 = vector.broadcast %347 : vector<8x1xi1> to vector<8x32xi1>
    %349 = arith.select %348, %310, %275 : vector<8x32xi1>, vector<8x32xf32>
    %c0_175 = arith.constant 0 : index
    %c0_176 = arith.constant 0 : index
    %350 = vector.load %arg9[%c0_175, %c0_176] : memref<8x32xf32, #tpu.memory_space<vmem>>, vector<8x32xf32>
    tpu.vector_store %arg9[%c0_175, %c0_176], %349 {strides = array<i32>} : memref<8x32xf32, #tpu.memory_space<vmem>>, vector<8x32xf32>,
    %351 = vector.broadcast %274 : i32 to vector<8x1xi32>
    %352 = arith.cmpi slt, %351, %4 : vector<8x1xi32>
    %353 = vector.shape_cast %352 : vector<8x1xi1> to vector<8x1xi1>
    %354 = vector.broadcast %353 : vector<8x1xi1> to vector<8x32xi1>
    %355 = arith.select %354, %344, %276 : vector<8x32xi1>, vector<8x32xf32>
    %c0_177 = arith.constant 0 : index
    %c0_178 = arith.constant 0 : index
    %356 = vector.load %arg10[%c0_177, %c0_178] : memref<8x32xf32, #tpu.memory_space<vmem>>, vector<8x32xf32>
    tpu.vector_store %arg10[%c0_177, %c0_178], %355 {strides = array<i32>} : memref<8x32xf32, #tpu.memory_space<vmem>>, vector<8x32xf32>,
    %c4_i32 = arith.constant 4 : i32
    %357 = arith.addi %0, %c4_i32 : i32
    %c7_i32_179 = arith.constant 7 : i32
    %358 = arith.subi %c7_i32_179, %357 : i32
    %c0_180 = arith.constant 0 : index
    %c0_181 = arith.constant 0 : index
    %359 = vector.load %arg9[%c0_180, %c0_181] : memref<8x32xf32, #tpu.memory_space<vmem>>, vector<8x32xf32>
    %c0_182 = arith.constant 0 : index
    %c0_183 = arith.constant 0 : index
    %360 = vector.load %arg10[%c0_182, %c0_183] : memref<8x32xf32, #tpu.memory_space<vmem>>, vector<8x32xf32>
    %361 = arith.index_cast %c4_i32 : i32 to index
    %c0_184 = arith.constant 0 : index
    %c0_185 = arith.constant 0 : index
    %c0_186 = arith.constant 0 : index
    %362 = vector.load %arg1[%361, %c0_184, %c0_185, %c0_186] : memref<8x3x8x32xf32, #tpu.memory_space<vmem>>, vector<1x1x8x32xf32>
    %363 = vector.shape_cast %362 : vector<1x1x8x32xf32> to vector<8x32xf32>
    %364 = arith.index_cast %c4_i32 : i32 to index
    %c1_187 = arith.constant 1 : index
    %c0_188 = arith.constant 0 : index
    %c0_189 = arith.constant 0 : index
    %365 = vector.load %arg1[%364, %c1_187, %c0_188, %c0_189] : memref<8x3x8x32xf32, #tpu.memory_space<vmem>>, vector<1x1x8x32xf32>
    %366 = vector.shape_cast %365 : vector<1x1x8x32xf32> to vector<8x32xf32>
    %367 = arith.index_cast %c4_i32 : i32 to index
    %c2_190 = arith.constant 2 : index
    %c0_191 = arith.constant 0 : index
    %c0_192 = arith.constant 0 : index
    %368 = vector.load %arg1[%367, %c2_190, %c0_191, %c0_192] : memref<8x3x8x32xf32, #tpu.memory_space<vmem>>, vector<1x1x8x32xf32>
    %369 = vector.shape_cast %368 : vector<1x1x8x32xf32> to vector<8x32xf32>
    %cst_193 = arith.constant dense<0.000000e+00> : vector<8x32xf32>
    %370 = tpu.matmul %359, %6, %cst_193 {dimension_numbers = #tpu.dot_dimension_numbers<[1], [0], [0], [1], [0, 0, 1, 1], [], []>} : vector<8x32xf32>, vector<32x32xf32>, vector<8x32xf32> -> vector<8x32xf32>
    %371 = arith.addf %363, %370 : vector<8x32xf32>
    %372 = arith.negf %371 : vector<8x32xf32>
    %373 = math.exp %372 : vector<8x32xf32>
    %cst_194 = arith.constant 1.000000e+00 : f32
    %374 = vector.broadcast %cst_194 : f32 to vector<8x32xf32>
    %375 = arith.addf %374, %373 : vector<8x32xf32>
    %376 = arith.divf %374, %375 : vector<8x32xf32>
    %cst_195 = arith.constant dense<0.000000e+00> : vector<8x32xf32>
    %377 = tpu.matmul %359, %8, %cst_195 {dimension_numbers = #tpu.dot_dimension_numbers<[1], [0], [0], [1], [0, 0, 1, 1], [], []>} : vector<8x32xf32>, vector<32x32xf32>, vector<8x32xf32> -> vector<8x32xf32>
    %378 = arith.addf %366, %377 : vector<8x32xf32>
    %379 = arith.negf %378 : vector<8x32xf32>
    %380 = math.exp %379 : vector<8x32xf32>
    %cst_196 = arith.constant 1.000000e+00 : f32
    %381 = vector.broadcast %cst_196 : f32 to vector<8x32xf32>
    %382 = arith.addf %381, %380 : vector<8x32xf32>
    %383 = arith.divf %381, %382 : vector<8x32xf32>
    %cst_197 = arith.constant dense<0.000000e+00> : vector<8x32xf32>
    %384 = tpu.matmul %359, %10, %cst_197 {dimension_numbers = #tpu.dot_dimension_numbers<[1], [0], [0], [1], [0, 0, 1, 1], [], []>} : vector<8x32xf32>, vector<32x32xf32>, vector<8x32xf32> -> vector<8x32xf32>
    %385 = vector.broadcast %18 : vector<1x32xf32> to vector<8x32xf32>
    %386 = arith.addf %384, %385 : vector<8x32xf32>
    %387 = arith.mulf %376, %386 : vector<8x32xf32>
    %388 = arith.addf %369, %387 : vector<8x32xf32>
    %389 = math.tanh %388 : vector<8x32xf32>
    %cst_198 = arith.constant 1.000000e+00 : f32
    %390 = vector.broadcast %cst_198 : f32 to vector<8x32xf32>
    %391 = arith.subf %390, %383 : vector<8x32xf32>
    %392 = arith.mulf %391, %389 : vector<8x32xf32>
    %393 = arith.mulf %383, %359 : vector<8x32xf32>
    %394 = arith.addf %392, %393 : vector<8x32xf32>
    %395 = arith.index_cast %c4_i32 : i32 to index
    %c0_199 = arith.constant 0 : index
    %c0_200 = arith.constant 0 : index
    %c0_201 = arith.constant 0 : index
    %396 = vector.load %arg2[%395, %c0_199, %c0_200, %c0_201] : memref<8x3x8x32xf32, #tpu.memory_space<vmem>>, vector<1x1x8x32xf32>
    %397 = vector.shape_cast %396 : vector<1x1x8x32xf32> to vector<8x32xf32>
    %398 = arith.index_cast %c4_i32 : i32 to index
    %c1_202 = arith.constant 1 : index
    %c0_203 = arith.constant 0 : index
    %c0_204 = arith.constant 0 : index
    %399 = vector.load %arg2[%398, %c1_202, %c0_203, %c0_204] : memref<8x3x8x32xf32, #tpu.memory_space<vmem>>, vector<1x1x8x32xf32>
    %400 = vector.shape_cast %399 : vector<1x1x8x32xf32> to vector<8x32xf32>
    %401 = arith.index_cast %c4_i32 : i32 to index
    %c2_205 = arith.constant 2 : index
    %c0_206 = arith.constant 0 : index
    %c0_207 = arith.constant 0 : index
    %402 = vector.load %arg2[%401, %c2_205, %c0_206, %c0_207] : memref<8x3x8x32xf32, #tpu.memory_space<vmem>>, vector<1x1x8x32xf32>
    %403 = vector.shape_cast %402 : vector<1x1x8x32xf32> to vector<8x32xf32>
    %cst_208 = arith.constant dense<0.000000e+00> : vector<8x32xf32>
    %404 = tpu.matmul %360, %12, %cst_208 {dimension_numbers = #tpu.dot_dimension_numbers<[1], [0], [0], [1], [0, 0, 1, 1], [], []>} : vector<8x32xf32>, vector<32x32xf32>, vector<8x32xf32> -> vector<8x32xf32>
    %405 = arith.addf %397, %404 : vector<8x32xf32>
    %406 = arith.negf %405 : vector<8x32xf32>
    %407 = math.exp %406 : vector<8x32xf32>
    %cst_209 = arith.constant 1.000000e+00 : f32
    %408 = vector.broadcast %cst_209 : f32 to vector<8x32xf32>
    %409 = arith.addf %408, %407 : vector<8x32xf32>
    %410 = arith.divf %408, %409 : vector<8x32xf32>
    %cst_210 = arith.constant dense<0.000000e+00> : vector<8x32xf32>
    %411 = tpu.matmul %360, %14, %cst_210 {dimension_numbers = #tpu.dot_dimension_numbers<[1], [0], [0], [1], [0, 0, 1, 1], [], []>} : vector<8x32xf32>, vector<32x32xf32>, vector<8x32xf32> -> vector<8x32xf32>
    %412 = arith.addf %400, %411 : vector<8x32xf32>
    %413 = arith.negf %412 : vector<8x32xf32>
    %414 = math.exp %413 : vector<8x32xf32>
    %cst_211 = arith.constant 1.000000e+00 : f32
    %415 = vector.broadcast %cst_211 : f32 to vector<8x32xf32>
    %416 = arith.addf %415, %414 : vector<8x32xf32>
    %417 = arith.divf %415, %416 : vector<8x32xf32>
    %cst_212 = arith.constant dense<0.000000e+00> : vector<8x32xf32>
    %418 = tpu.matmul %360, %16, %cst_212 {dimension_numbers = #tpu.dot_dimension_numbers<[1], [0], [0], [1], [0, 0, 1, 1], [], []>} : vector<8x32xf32>, vector<32x32xf32>, vector<8x32xf32> -> vector<8x32xf32>
    %419 = vector.broadcast %20 : vector<1x32xf32> to vector<8x32xf32>
    %420 = arith.addf %418, %419 : vector<8x32xf32>
    %421 = arith.mulf %410, %420 : vector<8x32xf32>
    %422 = arith.addf %403, %421 : vector<8x32xf32>
    %423 = math.tanh %422 : vector<8x32xf32>
    %cst_213 = arith.constant 1.000000e+00 : f32
    %424 = vector.broadcast %cst_213 : f32 to vector<8x32xf32>
    %425 = arith.subf %424, %417 : vector<8x32xf32>
    %426 = arith.mulf %425, %423 : vector<8x32xf32>
    %427 = arith.mulf %417, %360 : vector<8x32xf32>
    %428 = arith.addf %426, %427 : vector<8x32xf32>
    %429 = vector.broadcast %357 : i32 to vector<8x1xi32>
    %430 = arith.cmpi slt, %429, %4 : vector<8x1xi32>
    %431 = vector.shape_cast %430 : vector<8x1xi1> to vector<8x1xi1>
    %432 = vector.broadcast %431 : vector<8x1xi1> to vector<8x32xi1>
    %433 = arith.select %432, %394, %359 : vector<8x32xi1>, vector<8x32xf32>
    %c0_214 = arith.constant 0 : index
    %c0_215 = arith.constant 0 : index
    %434 = vector.load %arg9[%c0_214, %c0_215] : memref<8x32xf32, #tpu.memory_space<vmem>>, vector<8x32xf32>
    tpu.vector_store %arg9[%c0_214, %c0_215], %433 {strides = array<i32>} : memref<8x32xf32, #tpu.memory_space<vmem>>, vector<8x32xf32>,
    %435 = vector.broadcast %358 : i32 to vector<8x1xi32>
    %436 = arith.cmpi slt, %435, %4 : vector<8x1xi32>
    %437 = vector.shape_cast %436 : vector<8x1xi1> to vector<8x1xi1>
    %438 = vector.broadcast %437 : vector<8x1xi1> to vector<8x32xi1>
    %439 = arith.select %438, %428, %360 : vector<8x32xi1>, vector<8x32xf32>
    %c0_216 = arith.constant 0 : index
    %c0_217 = arith.constant 0 : index
    %440 = vector.load %arg10[%c0_216, %c0_217] : memref<8x32xf32, #tpu.memory_space<vmem>>, vector<8x32xf32>
    tpu.vector_store %arg10[%c0_216, %c0_217], %439 {strides = array<i32>} : memref<8x32xf32, #tpu.memory_space<vmem>>, vector<8x32xf32>,
    %c5_i32 = arith.constant 5 : i32
    %441 = arith.addi %0, %c5_i32 : i32
    %c7_i32_218 = arith.constant 7 : i32
    %442 = arith.subi %c7_i32_218, %441 : i32
    %c0_219 = arith.constant 0 : index
    %c0_220 = arith.constant 0 : index
    %443 = vector.load %arg9[%c0_219, %c0_220] : memref<8x32xf32, #tpu.memory_space<vmem>>, vector<8x32xf32>
    %c0_221 = arith.constant 0 : index
    %c0_222 = arith.constant 0 : index
    %444 = vector.load %arg10[%c0_221, %c0_222] : memref<8x32xf32, #tpu.memory_space<vmem>>, vector<8x32xf32>
    %445 = arith.index_cast %c5_i32 : i32 to index
    %c0_223 = arith.constant 0 : index
    %c0_224 = arith.constant 0 : index
    %c0_225 = arith.constant 0 : index
    %446 = vector.load %arg1[%445, %c0_223, %c0_224, %c0_225] : memref<8x3x8x32xf32, #tpu.memory_space<vmem>>, vector<1x1x8x32xf32>
    %447 = vector.shape_cast %446 : vector<1x1x8x32xf32> to vector<8x32xf32>
    %448 = arith.index_cast %c5_i32 : i32 to index
    %c1_226 = arith.constant 1 : index
    %c0_227 = arith.constant 0 : index
    %c0_228 = arith.constant 0 : index
    %449 = vector.load %arg1[%448, %c1_226, %c0_227, %c0_228] : memref<8x3x8x32xf32, #tpu.memory_space<vmem>>, vector<1x1x8x32xf32>
    %450 = vector.shape_cast %449 : vector<1x1x8x32xf32> to vector<8x32xf32>
    %451 = arith.index_cast %c5_i32 : i32 to index
    %c2_229 = arith.constant 2 : index
    %c0_230 = arith.constant 0 : index
    %c0_231 = arith.constant 0 : index
    %452 = vector.load %arg1[%451, %c2_229, %c0_230, %c0_231] : memref<8x3x8x32xf32, #tpu.memory_space<vmem>>, vector<1x1x8x32xf32>
    %453 = vector.shape_cast %452 : vector<1x1x8x32xf32> to vector<8x32xf32>
    %cst_232 = arith.constant dense<0.000000e+00> : vector<8x32xf32>
    %454 = tpu.matmul %443, %6, %cst_232 {dimension_numbers = #tpu.dot_dimension_numbers<[1], [0], [0], [1], [0, 0, 1, 1], [], []>} : vector<8x32xf32>, vector<32x32xf32>, vector<8x32xf32> -> vector<8x32xf32>
    %455 = arith.addf %447, %454 : vector<8x32xf32>
    %456 = arith.negf %455 : vector<8x32xf32>
    %457 = math.exp %456 : vector<8x32xf32>
    %cst_233 = arith.constant 1.000000e+00 : f32
    %458 = vector.broadcast %cst_233 : f32 to vector<8x32xf32>
    %459 = arith.addf %458, %457 : vector<8x32xf32>
    %460 = arith.divf %458, %459 : vector<8x32xf32>
    %cst_234 = arith.constant dense<0.000000e+00> : vector<8x32xf32>
    %461 = tpu.matmul %443, %8, %cst_234 {dimension_numbers = #tpu.dot_dimension_numbers<[1], [0], [0], [1], [0, 0, 1, 1], [], []>} : vector<8x32xf32>, vector<32x32xf32>, vector<8x32xf32> -> vector<8x32xf32>
    %462 = arith.addf %450, %461 : vector<8x32xf32>
    %463 = arith.negf %462 : vector<8x32xf32>
    %464 = math.exp %463 : vector<8x32xf32>
    %cst_235 = arith.constant 1.000000e+00 : f32
    %465 = vector.broadcast %cst_235 : f32 to vector<8x32xf32>
    %466 = arith.addf %465, %464 : vector<8x32xf32>
    %467 = arith.divf %465, %466 : vector<8x32xf32>
    %cst_236 = arith.constant dense<0.000000e+00> : vector<8x32xf32>
    %468 = tpu.matmul %443, %10, %cst_236 {dimension_numbers = #tpu.dot_dimension_numbers<[1], [0], [0], [1], [0, 0, 1, 1], [], []>} : vector<8x32xf32>, vector<32x32xf32>, vector<8x32xf32> -> vector<8x32xf32>
    %469 = vector.broadcast %18 : vector<1x32xf32> to vector<8x32xf32>
    %470 = arith.addf %468, %469 : vector<8x32xf32>
    %471 = arith.mulf %460, %470 : vector<8x32xf32>
    %472 = arith.addf %453, %471 : vector<8x32xf32>
    %473 = math.tanh %472 : vector<8x32xf32>
    %cst_237 = arith.constant 1.000000e+00 : f32
    %474 = vector.broadcast %cst_237 : f32 to vector<8x32xf32>
    %475 = arith.subf %474, %467 : vector<8x32xf32>
    %476 = arith.mulf %475, %473 : vector<8x32xf32>
    %477 = arith.mulf %467, %443 : vector<8x32xf32>
    %478 = arith.addf %476, %477 : vector<8x32xf32>
    %479 = arith.index_cast %c5_i32 : i32 to index
    %c0_238 = arith.constant 0 : index
    %c0_239 = arith.constant 0 : index
    %c0_240 = arith.constant 0 : index
    %480 = vector.load %arg2[%479, %c0_238, %c0_239, %c0_240] : memref<8x3x8x32xf32, #tpu.memory_space<vmem>>, vector<1x1x8x32xf32>
    %481 = vector.shape_cast %480 : vector<1x1x8x32xf32> to vector<8x32xf32>
    %482 = arith.index_cast %c5_i32 : i32 to index
    %c1_241 = arith.constant 1 : index
    %c0_242 = arith.constant 0 : index
    %c0_243 = arith.constant 0 : index
    %483 = vector.load %arg2[%482, %c1_241, %c0_242, %c0_243] : memref<8x3x8x32xf32, #tpu.memory_space<vmem>>, vector<1x1x8x32xf32>
    %484 = vector.shape_cast %483 : vector<1x1x8x32xf32> to vector<8x32xf32>
    %485 = arith.index_cast %c5_i32 : i32 to index
    %c2_244 = arith.constant 2 : index
    %c0_245 = arith.constant 0 : index
    %c0_246 = arith.constant 0 : index
    %486 = vector.load %arg2[%485, %c2_244, %c0_245, %c0_246] : memref<8x3x8x32xf32, #tpu.memory_space<vmem>>, vector<1x1x8x32xf32>
    %487 = vector.shape_cast %486 : vector<1x1x8x32xf32> to vector<8x32xf32>
    %cst_247 = arith.constant dense<0.000000e+00> : vector<8x32xf32>
    %488 = tpu.matmul %444, %12, %cst_247 {dimension_numbers = #tpu.dot_dimension_numbers<[1], [0], [0], [1], [0, 0, 1, 1], [], []>} : vector<8x32xf32>, vector<32x32xf32>, vector<8x32xf32> -> vector<8x32xf32>
    %489 = arith.addf %481, %488 : vector<8x32xf32>
    %490 = arith.negf %489 : vector<8x32xf32>
    %491 = math.exp %490 : vector<8x32xf32>
    %cst_248 = arith.constant 1.000000e+00 : f32
    %492 = vector.broadcast %cst_248 : f32 to vector<8x32xf32>
    %493 = arith.addf %492, %491 : vector<8x32xf32>
    %494 = arith.divf %492, %493 : vector<8x32xf32>
    %cst_249 = arith.constant dense<0.000000e+00> : vector<8x32xf32>
    %495 = tpu.matmul %444, %14, %cst_249 {dimension_numbers = #tpu.dot_dimension_numbers<[1], [0], [0], [1], [0, 0, 1, 1], [], []>} : vector<8x32xf32>, vector<32x32xf32>, vector<8x32xf32> -> vector<8x32xf32>
    %496 = arith.addf %484, %495 : vector<8x32xf32>
    %497 = arith.negf %496 : vector<8x32xf32>
    %498 = math.exp %497 : vector<8x32xf32>
    %cst_250 = arith.constant 1.000000e+00 : f32
    %499 = vector.broadcast %cst_250 : f32 to vector<8x32xf32>
    %500 = arith.addf %499, %498 : vector<8x32xf32>
    %501 = arith.divf %499, %500 : vector<8x32xf32>
    %cst_251 = arith.constant dense<0.000000e+00> : vector<8x32xf32>
    %502 = tpu.matmul %444, %16, %cst_251 {dimension_numbers = #tpu.dot_dimension_numbers<[1], [0], [0], [1], [0, 0, 1, 1], [], []>} : vector<8x32xf32>, vector<32x32xf32>, vector<8x32xf32> -> vector<8x32xf32>
    %503 = vector.broadcast %20 : vector<1x32xf32> to vector<8x32xf32>
    %504 = arith.addf %502, %503 : vector<8x32xf32>
    %505 = arith.mulf %494, %504 : vector<8x32xf32>
    %506 = arith.addf %487, %505 : vector<8x32xf32>
    %507 = math.tanh %506 : vector<8x32xf32>
    %cst_252 = arith.constant 1.000000e+00 : f32
    %508 = vector.broadcast %cst_252 : f32 to vector<8x32xf32>
    %509 = arith.subf %508, %501 : vector<8x32xf32>
    %510 = arith.mulf %509, %507 : vector<8x32xf32>
    %511 = arith.mulf %501, %444 : vector<8x32xf32>
    %512 = arith.addf %510, %511 : vector<8x32xf32>
    %513 = vector.broadcast %441 : i32 to vector<8x1xi32>
    %514 = arith.cmpi slt, %513, %4 : vector<8x1xi32>
    %515 = vector.shape_cast %514 : vector<8x1xi1> to vector<8x1xi1>
    %516 = vector.broadcast %515 : vector<8x1xi1> to vector<8x32xi1>
    %517 = arith.select %516, %478, %443 : vector<8x32xi1>, vector<8x32xf32>
    %c0_253 = arith.constant 0 : index
    %c0_254 = arith.constant 0 : index
    %518 = vector.load %arg9[%c0_253, %c0_254] : memref<8x32xf32, #tpu.memory_space<vmem>>, vector<8x32xf32>
    tpu.vector_store %arg9[%c0_253, %c0_254], %517 {strides = array<i32>} : memref<8x32xf32, #tpu.memory_space<vmem>>, vector<8x32xf32>,
    %519 = vector.broadcast %442 : i32 to vector<8x1xi32>
    %520 = arith.cmpi slt, %519, %4 : vector<8x1xi32>
    %521 = vector.shape_cast %520 : vector<8x1xi1> to vector<8x1xi1>
    %522 = vector.broadcast %521 : vector<8x1xi1> to vector<8x32xi1>
    %523 = arith.select %522, %512, %444 : vector<8x32xi1>, vector<8x32xf32>
    %c0_255 = arith.constant 0 : index
    %c0_256 = arith.constant 0 : index
    %524 = vector.load %arg10[%c0_255, %c0_256] : memref<8x32xf32, #tpu.memory_space<vmem>>, vector<8x32xf32>
    tpu.vector_store %arg10[%c0_255, %c0_256], %523 {strides = array<i32>} : memref<8x32xf32, #tpu.memory_space<vmem>>, vector<8x32xf32>,
    %c6_i32 = arith.constant 6 : i32
    %525 = arith.addi %0, %c6_i32 : i32
    %c7_i32_257 = arith.constant 7 : i32
    %526 = arith.subi %c7_i32_257, %525 : i32
    %c0_258 = arith.constant 0 : index
    %c0_259 = arith.constant 0 : index
    %527 = vector.load %arg9[%c0_258, %c0_259] : memref<8x32xf32, #tpu.memory_space<vmem>>, vector<8x32xf32>
    %c0_260 = arith.constant 0 : index
    %c0_261 = arith.constant 0 : index
    %528 = vector.load %arg10[%c0_260, %c0_261] : memref<8x32xf32, #tpu.memory_space<vmem>>, vector<8x32xf32>
    %529 = arith.index_cast %c6_i32 : i32 to index
    %c0_262 = arith.constant 0 : index
    %c0_263 = arith.constant 0 : index
    %c0_264 = arith.constant 0 : index
    %530 = vector.load %arg1[%529, %c0_262, %c0_263, %c0_264] : memref<8x3x8x32xf32, #tpu.memory_space<vmem>>, vector<1x1x8x32xf32>
    %531 = vector.shape_cast %530 : vector<1x1x8x32xf32> to vector<8x32xf32>
    %532 = arith.index_cast %c6_i32 : i32 to index
    %c1_265 = arith.constant 1 : index
    %c0_266 = arith.constant 0 : index
    %c0_267 = arith.constant 0 : index
    %533 = vector.load %arg1[%532, %c1_265, %c0_266, %c0_267] : memref<8x3x8x32xf32, #tpu.memory_space<vmem>>, vector<1x1x8x32xf32>
    %534 = vector.shape_cast %533 : vector<1x1x8x32xf32> to vector<8x32xf32>
    %535 = arith.index_cast %c6_i32 : i32 to index
    %c2_268 = arith.constant 2 : index
    %c0_269 = arith.constant 0 : index
    %c0_270 = arith.constant 0 : index
    %536 = vector.load %arg1[%535, %c2_268, %c0_269, %c0_270] : memref<8x3x8x32xf32, #tpu.memory_space<vmem>>, vector<1x1x8x32xf32>
    %537 = vector.shape_cast %536 : vector<1x1x8x32xf32> to vector<8x32xf32>
    %cst_271 = arith.constant dense<0.000000e+00> : vector<8x32xf32>
    %538 = tpu.matmul %527, %6, %cst_271 {dimension_numbers = #tpu.dot_dimension_numbers<[1], [0], [0], [1], [0, 0, 1, 1], [], []>} : vector<8x32xf32>, vector<32x32xf32>, vector<8x32xf32> -> vector<8x32xf32>
    %539 = arith.addf %531, %538 : vector<8x32xf32>
    %540 = arith.negf %539 : vector<8x32xf32>
    %541 = math.exp %540 : vector<8x32xf32>
    %cst_272 = arith.constant 1.000000e+00 : f32
    %542 = vector.broadcast %cst_272 : f32 to vector<8x32xf32>
    %543 = arith.addf %542, %541 : vector<8x32xf32>
    %544 = arith.divf %542, %543 : vector<8x32xf32>
    %cst_273 = arith.constant dense<0.000000e+00> : vector<8x32xf32>
    %545 = tpu.matmul %527, %8, %cst_273 {dimension_numbers = #tpu.dot_dimension_numbers<[1], [0], [0], [1], [0, 0, 1, 1], [], []>} : vector<8x32xf32>, vector<32x32xf32>, vector<8x32xf32> -> vector<8x32xf32>
    %546 = arith.addf %534, %545 : vector<8x32xf32>
    %547 = arith.negf %546 : vector<8x32xf32>
    %548 = math.exp %547 : vector<8x32xf32>
    %cst_274 = arith.constant 1.000000e+00 : f32
    %549 = vector.broadcast %cst_274 : f32 to vector<8x32xf32>
    %550 = arith.addf %549, %548 : vector<8x32xf32>
    %551 = arith.divf %549, %550 : vector<8x32xf32>
    %cst_275 = arith.constant dense<0.000000e+00> : vector<8x32xf32>
    %552 = tpu.matmul %527, %10, %cst_275 {dimension_numbers = #tpu.dot_dimension_numbers<[1], [0], [0], [1], [0, 0, 1, 1], [], []>} : vector<8x32xf32>, vector<32x32xf32>, vector<8x32xf32> -> vector<8x32xf32>
    %553 = vector.broadcast %18 : vector<1x32xf32> to vector<8x32xf32>
    %554 = arith.addf %552, %553 : vector<8x32xf32>
    %555 = arith.mulf %544, %554 : vector<8x32xf32>
    %556 = arith.addf %537, %555 : vector<8x32xf32>
    %557 = math.tanh %556 : vector<8x32xf32>
    %cst_276 = arith.constant 1.000000e+00 : f32
    %558 = vector.broadcast %cst_276 : f32 to vector<8x32xf32>
    %559 = arith.subf %558, %551 : vector<8x32xf32>
    %560 = arith.mulf %559, %557 : vector<8x32xf32>
    %561 = arith.mulf %551, %527 : vector<8x32xf32>
    %562 = arith.addf %560, %561 : vector<8x32xf32>
    %563 = arith.index_cast %c6_i32 : i32 to index
    %c0_277 = arith.constant 0 : index
    %c0_278 = arith.constant 0 : index
    %c0_279 = arith.constant 0 : index
    %564 = vector.load %arg2[%563, %c0_277, %c0_278, %c0_279] : memref<8x3x8x32xf32, #tpu.memory_space<vmem>>, vector<1x1x8x32xf32>
    %565 = vector.shape_cast %564 : vector<1x1x8x32xf32> to vector<8x32xf32>
    %566 = arith.index_cast %c6_i32 : i32 to index
    %c1_280 = arith.constant 1 : index
    %c0_281 = arith.constant 0 : index
    %c0_282 = arith.constant 0 : index
    %567 = vector.load %arg2[%566, %c1_280, %c0_281, %c0_282] : memref<8x3x8x32xf32, #tpu.memory_space<vmem>>, vector<1x1x8x32xf32>
    %568 = vector.shape_cast %567 : vector<1x1x8x32xf32> to vector<8x32xf32>
    %569 = arith.index_cast %c6_i32 : i32 to index
    %c2_283 = arith.constant 2 : index
    %c0_284 = arith.constant 0 : index
    %c0_285 = arith.constant 0 : index
    %570 = vector.load %arg2[%569, %c2_283, %c0_284, %c0_285] : memref<8x3x8x32xf32, #tpu.memory_space<vmem>>, vector<1x1x8x32xf32>
    %571 = vector.shape_cast %570 : vector<1x1x8x32xf32> to vector<8x32xf32>
    %cst_286 = arith.constant dense<0.000000e+00> : vector<8x32xf32>
    %572 = tpu.matmul %528, %12, %cst_286 {dimension_numbers = #tpu.dot_dimension_numbers<[1], [0], [0], [1], [0, 0, 1, 1], [], []>} : vector<8x32xf32>, vector<32x32xf32>, vector<8x32xf32> -> vector<8x32xf32>
    %573 = arith.addf %565, %572 : vector<8x32xf32>
    %574 = arith.negf %573 : vector<8x32xf32>
    %575 = math.exp %574 : vector<8x32xf32>
    %cst_287 = arith.constant 1.000000e+00 : f32
    %576 = vector.broadcast %cst_287 : f32 to vector<8x32xf32>
    %577 = arith.addf %576, %575 : vector<8x32xf32>
    %578 = arith.divf %576, %577 : vector<8x32xf32>
    %cst_288 = arith.constant dense<0.000000e+00> : vector<8x32xf32>
    %579 = tpu.matmul %528, %14, %cst_288 {dimension_numbers = #tpu.dot_dimension_numbers<[1], [0], [0], [1], [0, 0, 1, 1], [], []>} : vector<8x32xf32>, vector<32x32xf32>, vector<8x32xf32> -> vector<8x32xf32>
    %580 = arith.addf %568, %579 : vector<8x32xf32>
    %581 = arith.negf %580 : vector<8x32xf32>
    %582 = math.exp %581 : vector<8x32xf32>
    %cst_289 = arith.constant 1.000000e+00 : f32
    %583 = vector.broadcast %cst_289 : f32 to vector<8x32xf32>
    %584 = arith.addf %583, %582 : vector<8x32xf32>
    %585 = arith.divf %583, %584 : vector<8x32xf32>
    %cst_290 = arith.constant dense<0.000000e+00> : vector<8x32xf32>
    %586 = tpu.matmul %528, %16, %cst_290 {dimension_numbers = #tpu.dot_dimension_numbers<[1], [0], [0], [1], [0, 0, 1, 1], [], []>} : vector<8x32xf32>, vector<32x32xf32>, vector<8x32xf32> -> vector<8x32xf32>
    %587 = vector.broadcast %20 : vector<1x32xf32> to vector<8x32xf32>
    %588 = arith.addf %586, %587 : vector<8x32xf32>
    %589 = arith.mulf %578, %588 : vector<8x32xf32>
    %590 = arith.addf %571, %589 : vector<8x32xf32>
    %591 = math.tanh %590 : vector<8x32xf32>
    %cst_291 = arith.constant 1.000000e+00 : f32
    %592 = vector.broadcast %cst_291 : f32 to vector<8x32xf32>
    %593 = arith.subf %592, %585 : vector<8x32xf32>
    %594 = arith.mulf %593, %591 : vector<8x32xf32>
    %595 = arith.mulf %585, %528 : vector<8x32xf32>
    %596 = arith.addf %594, %595 : vector<8x32xf32>
    %597 = vector.broadcast %525 : i32 to vector<8x1xi32>
    %598 = arith.cmpi slt, %597, %4 : vector<8x1xi32>
    %599 = vector.shape_cast %598 : vector<8x1xi1> to vector<8x1xi1>
    %600 = vector.broadcast %599 : vector<8x1xi1> to vector<8x32xi1>
    %601 = arith.select %600, %562, %527 : vector<8x32xi1>, vector<8x32xf32>
    %c0_292 = arith.constant 0 : index
    %c0_293 = arith.constant 0 : index
    %602 = vector.load %arg9[%c0_292, %c0_293] : memref<8x32xf32, #tpu.memory_space<vmem>>, vector<8x32xf32>
    tpu.vector_store %arg9[%c0_292, %c0_293], %601 {strides = array<i32>} : memref<8x32xf32, #tpu.memory_space<vmem>>, vector<8x32xf32>,
    %603 = vector.broadcast %526 : i32 to vector<8x1xi32>
    %604 = arith.cmpi slt, %603, %4 : vector<8x1xi32>
    %605 = vector.shape_cast %604 : vector<8x1xi1> to vector<8x1xi1>
    %606 = vector.broadcast %605 : vector<8x1xi1> to vector<8x32xi1>
    %607 = arith.select %606, %596, %528 : vector<8x32xi1>, vector<8x32xf32>
    %c0_294 = arith.constant 0 : index
    %c0_295 = arith.constant 0 : index
    %608 = vector.load %arg10[%c0_294, %c0_295] : memref<8x32xf32, #tpu.memory_space<vmem>>, vector<8x32xf32>
    tpu.vector_store %arg10[%c0_294, %c0_295], %607 {strides = array<i32>} : memref<8x32xf32, #tpu.memory_space<vmem>>, vector<8x32xf32>,
    %c7_i32_296 = arith.constant 7 : i32
    %609 = arith.addi %0, %c7_i32_296 : i32
    %c7_i32_297 = arith.constant 7 : i32
    %610 = arith.subi %c7_i32_297, %609 : i32
    %c0_298 = arith.constant 0 : index
    %c0_299 = arith.constant 0 : index
    %611 = vector.load %arg9[%c0_298, %c0_299] : memref<8x32xf32, #tpu.memory_space<vmem>>, vector<8x32xf32>
    %c0_300 = arith.constant 0 : index
    %c0_301 = arith.constant 0 : index
    %612 = vector.load %arg10[%c0_300, %c0_301] : memref<8x32xf32, #tpu.memory_space<vmem>>, vector<8x32xf32>
    %613 = arith.index_cast %c7_i32_296 : i32 to index
    %c0_302 = arith.constant 0 : index
    %c0_303 = arith.constant 0 : index
    %c0_304 = arith.constant 0 : index
    %614 = vector.load %arg1[%613, %c0_302, %c0_303, %c0_304] : memref<8x3x8x32xf32, #tpu.memory_space<vmem>>, vector<1x1x8x32xf32>
    %615 = vector.shape_cast %614 : vector<1x1x8x32xf32> to vector<8x32xf32>
    %616 = arith.index_cast %c7_i32_296 : i32 to index
    %c1_305 = arith.constant 1 : index
    %c0_306 = arith.constant 0 : index
    %c0_307 = arith.constant 0 : index
    %617 = vector.load %arg1[%616, %c1_305, %c0_306, %c0_307] : memref<8x3x8x32xf32, #tpu.memory_space<vmem>>, vector<1x1x8x32xf32>
    %618 = vector.shape_cast %617 : vector<1x1x8x32xf32> to vector<8x32xf32>
    %619 = arith.index_cast %c7_i32_296 : i32 to index
    %c2_308 = arith.constant 2 : index
    %c0_309 = arith.constant 0 : index
    %c0_310 = arith.constant 0 : index
    %620 = vector.load %arg1[%619, %c2_308, %c0_309, %c0_310] : memref<8x3x8x32xf32, #tpu.memory_space<vmem>>, vector<1x1x8x32xf32>
    %621 = vector.shape_cast %620 : vector<1x1x8x32xf32> to vector<8x32xf32>
    %cst_311 = arith.constant dense<0.000000e+00> : vector<8x32xf32>
    %622 = tpu.matmul %611, %6, %cst_311 {dimension_numbers = #tpu.dot_dimension_numbers<[1], [0], [0], [1], [0, 0, 1, 1], [], []>} : vector<8x32xf32>, vector<32x32xf32>, vector<8x32xf32> -> vector<8x32xf32>
    %623 = arith.addf %615, %622 : vector<8x32xf32>
    %624 = arith.negf %623 : vector<8x32xf32>
    %625 = math.exp %624 : vector<8x32xf32>
    %cst_312 = arith.constant 1.000000e+00 : f32
    %626 = vector.broadcast %cst_312 : f32 to vector<8x32xf32>
    %627 = arith.addf %626, %625 : vector<8x32xf32>
    %628 = arith.divf %626, %627 : vector<8x32xf32>
    %cst_313 = arith.constant dense<0.000000e+00> : vector<8x32xf32>
    %629 = tpu.matmul %611, %8, %cst_313 {dimension_numbers = #tpu.dot_dimension_numbers<[1], [0], [0], [1], [0, 0, 1, 1], [], []>} : vector<8x32xf32>, vector<32x32xf32>, vector<8x32xf32> -> vector<8x32xf32>
    %630 = arith.addf %618, %629 : vector<8x32xf32>
    %631 = arith.negf %630 : vector<8x32xf32>
    %632 = math.exp %631 : vector<8x32xf32>
    %cst_314 = arith.constant 1.000000e+00 : f32
    %633 = vector.broadcast %cst_314 : f32 to vector<8x32xf32>
    %634 = arith.addf %633, %632 : vector<8x32xf32>
    %635 = arith.divf %633, %634 : vector<8x32xf32>
    %cst_315 = arith.constant dense<0.000000e+00> : vector<8x32xf32>
    %636 = tpu.matmul %611, %10, %cst_315 {dimension_numbers = #tpu.dot_dimension_numbers<[1], [0], [0], [1], [0, 0, 1, 1], [], []>} : vector<8x32xf32>, vector<32x32xf32>, vector<8x32xf32> -> vector<8x32xf32>
    %637 = vector.broadcast %18 : vector<1x32xf32> to vector<8x32xf32>
    %638 = arith.addf %636, %637 : vector<8x32xf32>
    %639 = arith.mulf %628, %638 : vector<8x32xf32>
    %640 = arith.addf %621, %639 : vector<8x32xf32>
    %641 = math.tanh %640 : vector<8x32xf32>
    %cst_316 = arith.constant 1.000000e+00 : f32
    %642 = vector.broadcast %cst_316 : f32 to vector<8x32xf32>
    %643 = arith.subf %642, %635 : vector<8x32xf32>
    %644 = arith.mulf %643, %641 : vector<8x32xf32>
    %645 = arith.mulf %635, %611 : vector<8x32xf32>
    %646 = arith.addf %644, %645 : vector<8x32xf32>
    %647 = arith.index_cast %c7_i32_296 : i32 to index
    %c0_317 = arith.constant 0 : index
    %c0_318 = arith.constant 0 : index
    %c0_319 = arith.constant 0 : index
    %648 = vector.load %arg2[%647, %c0_317, %c0_318, %c0_319] : memref<8x3x8x32xf32, #tpu.memory_space<vmem>>, vector<1x1x8x32xf32>
    %649 = vector.shape_cast %648 : vector<1x1x8x32xf32> to vector<8x32xf32>
    %650 = arith.index_cast %c7_i32_296 : i32 to index
    %c1_320 = arith.constant 1 : index
    %c0_321 = arith.constant 0 : index
    %c0_322 = arith.constant 0 : index
    %651 = vector.load %arg2[%650, %c1_320, %c0_321, %c0_322] : memref<8x3x8x32xf32, #tpu.memory_space<vmem>>, vector<1x1x8x32xf32>
    %652 = vector.shape_cast %651 : vector<1x1x8x32xf32> to vector<8x32xf32>
    %653 = arith.index_cast %c7_i32_296 : i32 to index
    %c2_323 = arith.constant 2 : index
    %c0_324 = arith.constant 0 : index
    %c0_325 = arith.constant 0 : index
    %654 = vector.load %arg2[%653, %c2_323, %c0_324, %c0_325] : memref<8x3x8x32xf32, #tpu.memory_space<vmem>>, vector<1x1x8x32xf32>
    %655 = vector.shape_cast %654 : vector<1x1x8x32xf32> to vector<8x32xf32>
    %cst_326 = arith.constant dense<0.000000e+00> : vector<8x32xf32>
    %656 = tpu.matmul %612, %12, %cst_326 {dimension_numbers = #tpu.dot_dimension_numbers<[1], [0], [0], [1], [0, 0, 1, 1], [], []>} : vector<8x32xf32>, vector<32x32xf32>, vector<8x32xf32> -> vector<8x32xf32>
    %657 = arith.addf %649, %656 : vector<8x32xf32>
    %658 = arith.negf %657 : vector<8x32xf32>
    %659 = math.exp %658 : vector<8x32xf32>
    %cst_327 = arith.constant 1.000000e+00 : f32
    %660 = vector.broadcast %cst_327 : f32 to vector<8x32xf32>
    %661 = arith.addf %660, %659 : vector<8x32xf32>
    %662 = arith.divf %660, %661 : vector<8x32xf32>
    %cst_328 = arith.constant dense<0.000000e+00> : vector<8x32xf32>
    %663 = tpu.matmul %612, %14, %cst_328 {dimension_numbers = #tpu.dot_dimension_numbers<[1], [0], [0], [1], [0, 0, 1, 1], [], []>} : vector<8x32xf32>, vector<32x32xf32>, vector<8x32xf32> -> vector<8x32xf32>
    %664 = arith.addf %652, %663 : vector<8x32xf32>
    %665 = arith.negf %664 : vector<8x32xf32>
    %666 = math.exp %665 : vector<8x32xf32>
    %cst_329 = arith.constant 1.000000e+00 : f32
    %667 = vector.broadcast %cst_329 : f32 to vector<8x32xf32>
    %668 = arith.addf %667, %666 : vector<8x32xf32>
    %669 = arith.divf %667, %668 : vector<8x32xf32>
    %cst_330 = arith.constant dense<0.000000e+00> : vector<8x32xf32>
    %670 = tpu.matmul %612, %16, %cst_330 {dimension_numbers = #tpu.dot_dimension_numbers<[1], [0], [0], [1], [0, 0, 1, 1], [], []>} : vector<8x32xf32>, vector<32x32xf32>, vector<8x32xf32> -> vector<8x32xf32>
    %671 = vector.broadcast %20 : vector<1x32xf32> to vector<8x32xf32>
    %672 = arith.addf %670, %671 : vector<8x32xf32>
    %673 = arith.mulf %662, %672 : vector<8x32xf32>
    %674 = arith.addf %655, %673 : vector<8x32xf32>
    %675 = math.tanh %674 : vector<8x32xf32>
    %cst_331 = arith.constant 1.000000e+00 : f32
    %676 = vector.broadcast %cst_331 : f32 to vector<8x32xf32>
    %677 = arith.subf %676, %669 : vector<8x32xf32>
    %678 = arith.mulf %677, %675 : vector<8x32xf32>
    %679 = arith.mulf %669, %612 : vector<8x32xf32>
    %680 = arith.addf %678, %679 : vector<8x32xf32>
    %681 = vector.broadcast %609 : i32 to vector<8x1xi32>
    %682 = arith.cmpi slt, %681, %4 : vector<8x1xi32>
    %683 = vector.shape_cast %682 : vector<8x1xi1> to vector<8x1xi1>
    %684 = vector.broadcast %683 : vector<8x1xi1> to vector<8x32xi1>
    %685 = arith.select %684, %646, %611 : vector<8x32xi1>, vector<8x32xf32>
    %c0_332 = arith.constant 0 : index
    %c0_333 = arith.constant 0 : index
    %686 = vector.load %arg9[%c0_332, %c0_333] : memref<8x32xf32, #tpu.memory_space<vmem>>, vector<8x32xf32>
    tpu.vector_store %arg9[%c0_332, %c0_333], %685 {strides = array<i32>} : memref<8x32xf32, #tpu.memory_space<vmem>>, vector<8x32xf32>,
    %687 = vector.broadcast %610 : i32 to vector<8x1xi32>
    %688 = arith.cmpi slt, %687, %4 : vector<8x1xi32>
    %689 = vector.shape_cast %688 : vector<8x1xi1> to vector<8x1xi1>
    %690 = vector.broadcast %689 : vector<8x1xi1> to vector<8x32xi1>
    %691 = arith.select %690, %680, %612 : vector<8x32xi1>, vector<8x32xf32>
    %c0_334 = arith.constant 0 : index
    %c0_335 = arith.constant 0 : index
    %692 = vector.load %arg10[%c0_334, %c0_335] : memref<8x32xf32, #tpu.memory_space<vmem>>, vector<8x32xf32>
    tpu.vector_store %arg10[%c0_334, %c0_335], %691 {strides = array<i32>} : memref<8x32xf32, #tpu.memory_space<vmem>>, vector<8x32xf32>,
    %c8_i32_336 = arith.constant 8 : i32
    %c0_i32_337 = arith.constant 0 : i32
    %693 = arith.cmpi eq, %arg0, %c0_i32_337 : i32
    %694 = arith.extui %693 : i1 to i32
    %c0_i32_338 = arith.constant 0 : i32
    %695 = arith.cmpi ne, %694, %c0_i32_338 : i32
    scf.if %695 {
      %c0_339 = arith.constant 0 : index
      %c0_340 = arith.constant 0 : index
      %696 = vector.load %arg9[%c0_339, %c0_340] : memref<8x32xf32, #tpu.memory_space<vmem>>, vector<8x32xf32>
      %c0_341 = arith.constant 0 : index
      %c0_342 = arith.constant 0 : index
      %697 = vector.load %arg10[%c0_341, %c0_342] : memref<8x32xf32, #tpu.memory_space<vmem>>, vector<8x32xf32>
      %698 = arith.addf %696, %697 : vector<8x32xf32>
      %699 = math.tanh %698 : vector<8x32xf32>
      %c0_343 = arith.constant 0 : index
      %c0_344 = arith.constant 0 : index
      %700 = vector.load %arg8[%c0_343, %c0_344] : memref<8x32xf32, #tpu.memory_space<vmem>>, vector<8x32xf32>
      tpu.vector_store %arg8[%c0_343, %c0_344], %699 {strides = array<i32>} : memref<8x32xf32, #tpu.memory_space<vmem>>, vector<8x32xf32>,
    } else {
    }
    return
  }
  func.func @transform_0(%arg0: i32) -> (i32, i32, i32, i32) {
    %c0_i32 = arith.constant 0 : i32
    %c0_i32_0 = arith.constant 0 : i32
    %c0_i32_1 = arith.constant 0 : i32
    %c0_i32_2 = arith.constant 0 : i32
    return %arg0, %c0_i32, %c0_i32_0, %c0_i32_1 : i32, i32, i32, i32
  }
  func.func @transform_1(%arg0: i32) -> (i32, i32, i32, i32) {
    %c0_i32 = arith.constant 0 : i32
    %c0_i32_0 = arith.constant 0 : i32
    %c0_i32_1 = arith.constant 0 : i32
    %c0_i32_2 = arith.constant 0 : i32
    return %arg0, %c0_i32, %c0_i32_0, %c0_i32_1 : i32, i32, i32, i32
  }
  func.func @transform_2(%arg0: i32) -> (i32, i32) {
    %c0_i32 = arith.constant 0 : i32
    %c0_i32_0 = arith.constant 0 : i32
    %c0_i32_1 = arith.constant 0 : i32
    return %c0_i32, %c0_i32_0 : i32, i32
  }
  func.func @transform_3(%arg0: i32) -> (i32, i32, i32) {
    %c0_i32 = arith.constant 0 : i32
    %c0_i32_0 = arith.constant 0 : i32
    %c0_i32_1 = arith.constant 0 : i32
    %c0_i32_2 = arith.constant 0 : i32
    return %c0_i32, %c0_i32_0, %c0_i32_1 : i32, i32, i32
  }
  func.func @transform_4(%arg0: i32) -> (i32, i32, i32) {
    %c0_i32 = arith.constant 0 : i32
    %c0_i32_0 = arith.constant 0 : i32
    %c0_i32_1 = arith.constant 0 : i32
    %c0_i32_2 = arith.constant 0 : i32
    return %c0_i32, %c0_i32_0, %c0_i32_1 : i32, i32, i32
  }
  func.func @transform_5(%arg0: i32) -> (i32, i32, i32) {
    %c0_i32 = arith.constant 0 : i32
    %c0_i32_0 = arith.constant 0 : i32
    %c0_i32_1 = arith.constant 0 : i32
    %c0_i32_2 = arith.constant 0 : i32
    return %c0_i32, %c0_i32_0, %c0_i32_1 : i32, i32, i32
  }
  func.func @transform_6(%arg0: i32) -> (i32, i32, i32) {
    %c0_i32 = arith.constant 0 : i32
    %c0_i32_0 = arith.constant 0 : i32
    %c0_i32_1 = arith.constant 0 : i32
    %c0_i32_2 = arith.constant 0 : i32
    return %c0_i32, %c0_i32_0, %c0_i32_1 : i32, i32, i32
  }
  func.func @transform_7(%arg0: i32) -> (i32, i32) {
    %c0_i32 = arith.constant 0 : i32
    %c0_i32_0 = arith.constant 0 : i32
    %c0_i32_1 = arith.constant 0 : i32
    return %c0_i32, %c0_i32_0 : i32, i32
  }
}

</mosaic_0001>

<llo_original>
// kernel: tpu_custom_call.1
$region0: #{tpu_custom_call.1}
  #allocation0 [shape = 'u32[]', space=smem, size = 0x4, offset = 0x4, fixed_abs, tag = 'smem constant byte address 0x4 - core index']
  #allocation1 [shape = 'u32[144,128]{1,0:T(1,128)}', space=vmem, size = 0x12000, scoped, tag = 'internal scratch']
  #allocation2 [shape = 'f32[8,32]{1,0:T(8,128)}', space=vmem, size = 0x1000, scoped, tag = 'scratch operand']
  #allocation3 [shape = 'f32[8,32]{1,0:T(8,128)}', space=vmem, size = 0x1000, scoped, tag = 'scratch operand']
  %s0 = inlined_call_operand.hbm [shape: f32[8,3,8,32], index: 0, kind: input, shape index: {}]
  %s1 = inlined_call_operand.hbm [shape: f32[8,3,8,32], index: 1, kind: input, shape index: {}]
  %s2 = inlined_call_operand.vmem [shape: s32[8,1], index: 2, kind: input, shape index: {}]
  %s3 = inlined_call_operand.vmem [shape: f32[2,8,32], index: 3, kind: input, shape index: {}]
  %s4 = inlined_call_operand.hbm [shape: f32[3,32,32], index: 4, kind: input, shape index: {}]
  %s5 = inlined_call_operand.hbm [shape: f32[3,32,32], index: 5, kind: input, shape index: {}]
  %s6 = inlined_call_operand.vmem [shape: f32[2,1,32], index: 6, kind: input, shape index: {}]
  %s7 = inlined_call_operand.hbm [shape: f32[8,32], index: 7, kind: output, shape index: {}]
  %s8 = sld [smem:[#allocation0]]
  $region62: #{tpu_custom_call.1} parent=0
    _
  %s10 = ssub.s32 1, %s8
  %s11 = scalar_select 0, %s10, %s8
  $region1: #{tpu_custom_call.1} parent=0
    #allocation4 [shape = 'u8[98304]{0}', space=vmem, size = 0x18000, scoped, tag = 'input window, operand 0, single buffered']
    #allocation5 [shape = 's32[1]{0}', space=sflag, size = 0x4, scoped, tag = 'scoped memory for tpu_custom_call.1']
    #allocation6 [shape = 's32[1]{0}', space=sflag, size = 0x4, scoped, tag = 'scoped memory for tpu_custom_call.1']
    #allocation7 [shape = 'u8[98304]{0}', space=vmem, size = 0x18000, scoped, tag = 'input window, operand 1, single buffered']
    #allocation8 [shape = 's32[1]{0}', space=sflag, size = 0x4, scoped, tag = 'scoped memory for tpu_custom_call.1']
    #allocation9 [shape = 'u8[49152]{0}', space=vmem, size = 0xc000, scoped, tag = 'input window, operand 4, single buffered']
    #allocation10 [shape = 'u8[49152]{0}', space=vmem, size = 0xc000, scoped, tag = 'input window, operand 5, single buffered']
    #allocation11 [shape = 's32[1]{0}', space=sflag, size = 0x4, scoped, tag = 'scoped memory for tpu_custom_call.1']
    #allocation12 [shape = 'u8[4096]{0}', space=vmem, size = 0x1000, scoped, tag = 'output window, operand 0, single buffered']
    %12 = vsyncpa [#allocation5], 0
    %13 = vsyncpa [#allocation8], 0
    %14 = vsyncpa [#allocation11], 0
    %15 = vsyncpa [#allocation6], 0
    // Predicated region
    $region2: #{tpu_custom_call.1} parent=1 // pred_check
      _
    $region3: #{tpu_custom_call.1} parent=1 // pred_check_branch
      %17 = sbr.rel (0) target = $region5
    $region4: #{tpu_custom_call.1} parent=1 // pred_region
      %s19 = ssub.s32 3072, 3072
      %20 = vsyncadd [#allocation5], %s19
      %s21 = sshll.u32 [#allocation4], 4
      %s22 = int_to_ptr.vmem [resolvable:$true] %s21
      %27 = dma.hbm_to_vmem [thread:$0]  %s0, 3072, %s22, [#allocation5], 128, 128, 8
    $region5: #{tpu_custom_call.1} parent=1 // pred_fallthru
      _
    // Predicated region
    $region6: #{tpu_custom_call.1} parent=1 // pred_check
      _
    $region7: #{tpu_custom_call.1} parent=1 // pred_check_branch
      %29 = sbr.rel (0) target = $region9
    $region8: #{tpu_custom_call.1} parent=1 // pred_region
      %s31 = ssub.s32 3072, 3072
      %32 = vsyncadd [#allocation8], %s31
      %s33 = sshll.u32 [#allocation7], 4
      %s34 = int_to_ptr.vmem [resolvable:$true] %s33
      %39 = dma.hbm_to_vmem [thread:$0]  %s1, 3072, %s34, [#allocation8], 128, 128, 8
    $region9: #{tpu_custom_call.1} parent=1 // pred_fallthru
      _
    // Predicated region
    $region10: #{tpu_custom_call.1} parent=1 // pred_check
      _
    $region11: #{tpu_custom_call.1} parent=1 // pred_check_branch
      %41 = sbr.rel (0) target = $region13
    $region12: #{tpu_custom_call.1} parent=1 // pred_region
      _
    $region13: #{tpu_custom_call.1} parent=1 // pred_fallthru
      _
    // Predicated region
    $region14: #{tpu_custom_call.1} parent=1 // pred_check
      _
    $region15: #{tpu_custom_call.1} parent=1 // pred_check_branch
      %43 = sbr.rel (0) target = $region17
    $region16: #{tpu_custom_call.1} parent=1 // pred_region
      _
    $region17: #{tpu_custom_call.1} parent=1 // pred_fallthru
      _
    // Predicated region
    $region18: #{tpu_custom_call.1} parent=1 // pred_check
      _
    $region19: #{tpu_custom_call.1} parent=1 // pred_check_branch
      %45 = sbr.rel (0) target = $region21
    $region20: #{tpu_custom_call.1} parent=1 // pred_region
      %s47 = ssub.s32 1536, 1536
      %48 = vsyncadd [#allocation8], %s47
      %s49 = sshll.u32 [#allocation9], 4
      %s50 = int_to_ptr.vmem [resolvable:$true] %s49
      %55 = dma.hbm_to_vmem [thread:$0]  %s4, 1536, %s50, [#allocation8], 128, 128, 8
    $region21: #{tpu_custom_call.1} parent=1 // pred_fallthru
      _
    // Predicated region
    $region22: #{tpu_custom_call.1} parent=1 // pred_check
      _
    $region23: #{tpu_custom_call.1} parent=1 // pred_check_branch
      %57 = sbr.rel (0) target = $region25
    $region24: #{tpu_custom_call.1} parent=1 // pred_region
      %s59 = ssub.s32 1536, 1536
      %60 = vsyncadd [#allocation11], %s59
      %s61 = sshll.u32 [#allocation10], 4
      %s62 = int_to_ptr.vmem [resolvable:$true] %s61
      %67 = dma.hbm_to_vmem [thread:$0]  %s5, 1536, %s62, [#allocation11], 128, 128, 8
    $region25: #{tpu_custom_call.1} parent=1 // pred_fallthru
      _
    // Predicated region
    $region26: #{tpu_custom_call.1} parent=1 // pred_check
      _
    $region27: #{tpu_custom_call.1} parent=1 // pred_check_branch
      %69 = sbr.rel (0) target = $region29
    $region28: #{tpu_custom_call.1} parent=1 // pred_region
      _
    $region29: #{tpu_custom_call.1} parent=1 // pred_fallthru
      _
    // Predicated region
    $region30: #{tpu_custom_call.1} parent=1 // pred_check
      _
    $region31: #{tpu_custom_call.1} parent=1 // pred_check_branch
      %71 = sbr.rel (0) target = $region33
    $region32: #{tpu_custom_call.1} parent=1 // pred_region
      %72 = dma.done [#allocation5], 3072
    $region33: #{tpu_custom_call.1} parent=1 // pred_fallthru
      _
    // Predicated region
    $region34: #{tpu_custom_call.1} parent=1 // pred_check
      _
    $region35: #{tpu_custom_call.1} parent=1 // pred_check_branch
      %74 = sbr.rel (0) target = $region37
    $region36: #{tpu_custom_call.1} parent=1 // pred_region
      %75 = dma.done [#allocation8], 3072
    $region37: #{tpu_custom_call.1} parent=1 // pred_fallthru
      _
    // Predicated region
    $region38: #{tpu_custom_call.1} parent=1 // pred_check
      _
    $region39: #{tpu_custom_call.1} parent=1 // pred_check_branch
      %77 = sbr.rel (0) target = $region41
    $region40: #{tpu_custom_call.1} parent=1 // pred_region
      %78 = dma.done [#allocation8], 1536
    $region41: #{tpu_custom_call.1} parent=1 // pred_fallthru
      _
    // Predicated region
    $region42: #{tpu_custom_call.1} parent=1 // pred_check
      _
    $region43: #{tpu_custom_call.1} parent=1 // pred_check_branch
      %80 = sbr.rel (0) target = $region45
    $region44: #{tpu_custom_call.1} parent=1 // pred_region
      %81 = dma.done [#allocation11], 1536
    $region45: #{tpu_custom_call.1} parent=1 // pred_fallthru
      _
    %s82 = smul.u32 0, 8
    %p83 = scmp.eq.s32.totalorder 0, 0
    // Predicated region
    $region46: #{tpu_custom_call.1} parent=1 // pred_check
      %p84 = pneg %p83
    $region47: #{tpu_custom_call.1} parent=1 // pred_check_branch
      %86 = sbr.rel (%p84) target = $region49
    $region48: #{tpu_custom_call.1} parent=1 // pred_region
      %v87 = vld [vmem:[%s3] sm:$0xff]
      %vm88 = vcmask 261120
      %89 = vst.msk [vmem:[#allocation2] sm:$0xff] %vm88, %v87
      %s90 = scalar_lea.vmem %s3, 8
      %v91 = vld [vmem:[%s90] sm:$0xff]
      %92 = vst.msk [vmem:[#allocation3] sm:$0xff] %vm88, %v91
    $region49: #{tpu_custom_call.1} parent=1 // pred_fallthru
      _
    %v93 = vld [vmem:[%s2] sm:$0xff]
    %v94 = vld [vmem:[#allocation9] sm:$0xff]
    %v95 = vld [vmem:[#allocation9 + $0x8] sm:$0xff]
    %v96 = vld [vmem:[#allocation9 + $0x10] sm:$0xff]
    %v97 = vld [vmem:[#allocation9 + $0x18] sm:$0xff]
    %s98 = scalar_lea.vmem [#allocation9], 32
    %v99 = vld [vmem:[%s98] sm:$0xff]
    %v100 = vld [vmem:[%s98 + $0x8] sm:$0xff]
    %v101 = vld [vmem:[%s98 + $0x10] sm:$0xff]
    %v102 = vld [vmem:[%s98 + $0x18] sm:$0xff]
    %s103 = scalar_lea.vmem [#allocation9], 64
    %v104 = vld [vmem:[%s103] sm:$0xff]
    %v105 = vld [vmem:[%s103 + $0x8] sm:$0xff]
    %v106 = vld [vmem:[%s103 + $0x10] sm:$0xff]
    %v107 = vld [vmem:[%s103 + $0x18] sm:$0xff]
    %v108 = vld [vmem:[#allocation10] sm:$0xff]
    %v109 = vld [vmem:[#allocation10 + $0x8] sm:$0xff]
    %v110 = vld [vmem:[#allocation10 + $0x10] sm:$0xff]
    %v111 = vld [vmem:[#allocation10 + $0x18] sm:$0xff]
    %s112 = scalar_lea.vmem [#allocation10], 32
    %v113 = vld [vmem:[%s112] sm:$0xff]
    %v114 = vld [vmem:[%s112 + $0x8] sm:$0xff]
    %v115 = vld [vmem:[%s112 + $0x10] sm:$0xff]
    %v116 = vld [vmem:[%s112 + $0x18] sm:$0xff]
    %s117 = scalar_lea.vmem [#allocation10], 64
    %v118 = vld [vmem:[%s117] sm:$0xff]
    %v119 = vld [vmem:[%s117 + $0x8] sm:$0xff]
    %v120 = vld [vmem:[%s117 + $0x10] sm:$0xff]
    %v121 = vld [vmem:[%s117 + $0x18] sm:$0xff]
    %v122 = vld [vmem:[%s6] sm:$0x1]
    %s123 = scalar_lea.vmem %s6, 1
    %v124 = vld [vmem:[%s123] sm:$0x1]
    %s125 = ssub.s32 7, %s82
    %v126 = vld [vmem:[#allocation2] sm:$0xff]
    %v127 = vld [vmem:[#allocation3] sm:$0xff]
    %v128 = vld [vmem:[#allocation4] sm:$0xff]
    %s129 = scalar_lea.vmem [#allocation4], 8
    %v130 = vld [vmem:[%s129] sm:$0xff]
    %s131 = scalar_lea.vmem [#allocation4], 16
    %v132 = vld [vmem:[%s131] sm:$0xff]
    %vm133 = vcmask 261120
    %v135 = vsel %vm133, %v126, 0
    %137 = vmatprep.subr.mxu0 0.0
    %138 = vmatpush1.msra.mxu0 %v94
    %139 = vmatprep.subr.mxu0 0.0
    %140 = vmatpush1.msra.mxu0 %v95
    %141 = vmatprep.subr.mxu0 0.0
    %142 = vmatpush1.msra.mxu0 %v96
    %143 = vmatprep.subr.mxu0 0.0
    %144 = vmatpush1.msra.mxu0 %v97
    %145 = vmatprep.subr.mxu0 0.0
    %146 = vmatpush1.msra.mxu0 0.0
    %147 = vmatprep.subr.mxu0 0.0
    %148 = vmatpush1.msra.mxu0 0.0
    %149 = vmatprep.subr.mxu0 0.0
    %150 = vmatpush1.msra.mxu0 0.0
    %151 = vmatprep.subr.mxu0 0.0
    %152 = vmatpush1.msra.mxu0 0.0
    %153 = vmatprep.subr.mxu0 0.0
    %154 = vmatpush1.msra.mxu0 0.0
    %155 = vmatprep.subr.mxu0 0.0
    %156 = vmatpush1.msra.mxu0 0.0
    %157 = vmatprep.subr.mxu0 0.0
    %158 = vmatpush1.msra.mxu0 0.0
    %159 = vmatprep.subr.mxu0 0.0
    %160 = vmatpush1.msra.mxu0 0.0
    %161 = vmatprep.subr.mxu0 0.0
    %162 = vmatpush1.msra.mxu0 0.0
    %163 = vmatprep.subr.mxu0 0.0
    %164 = vmatpush1.msra.mxu0 0.0
    %165 = vmatprep.subr.mxu0 0.0
    %166 = vmatpush1.msra.mxu0 0.0
    %167 = vmatprep.subr.mxu0 0.0
    %168 = vmatpush1.msra.mxu0 0.0
    %169 = vmatprep.subr.mxu0 0.0
    %170 = vmatpush1.msra.mxu0 0.0
    %171 = vmatprep.subr.mxu0 0.0
    %172 = vmatpush1.msra.mxu0 0.0
    %173 = vmatprep.subr.mxu0 0.0
    %174 = vmatpush1.msra.mxu0 0.0
    %175 = vmatprep.subr.mxu0 0.0
    %176 = vmatpush1.msra.mxu0 0.0
    %177 = vmatprep.subr.mxu0 0.0
    %178 = vmatpush1.msra.mxu0 0.0
    %179 = vmatprep.subr.mxu0 0.0
    %180 = vmatpush1.msra.mxu0 0.0
    %181 = vmatprep.subr.mxu0 0.0
    %182 = vmatpush1.msra.mxu0 0.0
    %183 = vmatprep.subr.mxu0 0.0
    %184 = vmatpush1.msra.mxu0 0.0
    %185 = vmatprep.subr.mxu0 0.0
    %186 = vmatpush1.msra.mxu0 0.0
    %187 = vmatprep.subr.mxu0 0.0
    %188 = vmatpush1.msra.mxu0 0.0
    %189 = vmatprep.subr.mxu0 0.0
    %190 = vmatpush1.msra.mxu0 0.0
    %191 = vmatprep.subr.mxu0 0.0
    %192 = vmatpush1.msra.mxu0 0.0
    %193 = vmatprep.subr.mxu0 0.0
    %194 = vmatpush1.msra.mxu0 0.0
    %195 = vmatprep.subr.mxu0 0.0
    %196 = vmatpush1.msra.mxu0 0.0
    %197 = vmatprep.subr.mxu0 0.0
    %198 = vmatpush1.msra.mxu0 0.0
    %199 = vmatprep.subr.mxu0 0.0
    %200 = vmatpush1.msra.mxu0 0.0
    %201 = vmatprep.mubr.f32.mxu0 0.0
    %202 = vmatmul.mubr.f32.gmra.mrb[0].mxu0 %v135
    %v203 = vpop.f32.mrb[0].mxu0
    %v204 = vadd.f32 0.0, %v203
    %v205 = vpop.f32.mrb[0].mxu0
    %206 = vdwg.mxu0
    %v207 = vadd.f32 %v128, %v204
    %v208 = vxor.u32 %v207, 2147483648
    %v209 = vmul.f32 %v208, 1.442695
    %v210 = vpow.pop %v209
    %v211 = vadd.f32 %v210, 1.0
    %v212 = vrcp.pop %v211
    %v213 = vmul.f32 1.0, %v212
    %214 = vmatprep.subr.mxu0 0.0
    %215 = vmatpush1.msra.mxu0 %v99
    %216 = vmatprep.subr.mxu0 0.0
    %217 = vmatpush1.msra.mxu0 %v100
    %218 = vmatprep.subr.mxu0 0.0
    %219 = vmatpush1.msra.mxu0 %v101
    %220 = vmatprep.subr.mxu0 0.0
    %221 = vmatpush1.msra.mxu0 %v102
    %222 = vmatprep.subr.mxu0 0.0
    %223 = vmatpush1.msra.mxu0 0.0
    %224 = vmatprep.subr.mxu0 0.0
    %225 = vmatpush1.msra.mxu0 0.0
    %226 = vmatprep.subr.mxu0 0.0
    %227 = vmatpush1.msra.mxu0 0.0
    %228 = vmatprep.subr.mxu0 0.0
    %229 = vmatpush1.msra.mxu0 0.0
    %230 = vmatprep.subr.mxu0 0.0
    %231 = vmatpush1.msra.mxu0 0.0
    %232 = vmatprep.subr.mxu0 0.0
    %233 = vmatpush1.msra.mxu0 0.0
    %234 = vmatprep.subr.mxu0 0.0
    %235 = vmatpush1.msra.mxu0 0.0
    %236 = vmatprep.subr.mxu0 0.0
    %237 = vmatpush1.msra.mxu0 0.0
    %238 = vmatprep.subr.mxu0 0.0
    %239 = vmatpush1.msra.mxu0 0.0
    %240 = vmatprep.subr.mxu0 0.0
    %241 = vmatpush1.msra.mxu0 0.0
    %242 = vmatprep.subr.mxu0 0.0
    %243 = vmatpush1.msra.mxu0 0.0
    %244 = vmatprep.subr.mxu0 0.0
    %245 = vmatpush1.msra.mxu0 0.0
    %246 = vmatprep.subr.mxu0 0.0
    %247 = vmatpush1.msra.mxu0 0.0
    %248 = vmatprep.subr.mxu0 0.0
    %249 = vmatpush1.msra.mxu0 0.0
    %250 = vmatprep.subr.mxu0 0.0
    %251 = vmatpush1.msra.mxu0 0.0
    %252 = vmatprep.subr.mxu0 0.0
    %253 = vmatpush1.msra.mxu0 0.0
    %254 = vmatprep.subr.mxu0 0.0
    %255 = vmatpush1.msra.mxu0 0.0
    %256 = vmatprep.subr.mxu0 0.0
    %257 = vmatpush1.msra.mxu0 0.0
    %258 = vmatprep.subr.mxu0 0.0
    %259 = vmatpush1.msra.mxu0 0.0
    %260 = vmatprep.subr.mxu0 0.0
    %261 = vmatpush1.msra.mxu0 0.0
    %262 = vmatprep.subr.mxu0 0.0
    %263 = vmatpush1.msra.mxu0 0.0
    %264 = vmatprep.subr.mxu0 0.0
    %265 = vmatpush1.msra.mxu0 0.0
    %266 = vmatprep.subr.mxu0 0.0
    %267 = vmatpush1.msra.mxu0 0.0
    %268 = vmatprep.subr.mxu0 0.0
    %269 = vmatpush1.msra.mxu0 0.0
    %270 = vmatprep.subr.mxu0 0.0
    %271 = vmatpush1.msra.mxu0 0.0
    %272 = vmatprep.subr.mxu0 0.0
    %273 = vmatpush1.msra.mxu0 0.0
    %274 = vmatprep.subr.mxu0 0.0
    %275 = vmatpush1.msra.mxu0 0.0
    %276 = vmatprep.subr.mxu0 0.0
    %277 = vmatpush1.msra.mxu0 0.0
    %278 = vmatprep.mubr.f32.mxu0 0.0
    %279 = vmatmul.mubr.f32.gmra.mrb[0].mxu0 %v135
    %v280 = vpop.f32.mrb[0].mxu0
    %v281 = vadd.f32 0.0, %v280
    %v282 = vpop.f32.mrb[0].mxu0
    %283 = vdwg.mxu0
    %v284 = vadd.f32 %v130, %v281
    %v285 = vxor.u32 %v284, 2147483648
    %v286 = vmul.f32 %v285, 1.442695
    %v287 = vpow.pop %v286
    %v288 = vadd.f32 %v287, 1.0
    %v289 = vrcp.pop %v288
    %v290 = vmul.f32 1.0, %v289
    %v292 = vlaneseq
    %v293 = vshrl.u32 %v292, 7
    %v294 = vsub.s32 0, %v293
    %v295 = vrot.slane %v122, %v294
    %297 = vmatprep.subr.mxu0 0.0
    %298 = vmatpush1.msra.mxu0 %v104
    %299 = vmatprep.subr.mxu0 0.0
    %300 = vmatpush1.msra.mxu0 %v105
    %301 = vmatprep.subr.mxu0 0.0
    %302 = vmatpush1.msra.mxu0 %v106
    %303 = vmatprep.subr.mxu0 0.0
    %304 = vmatpush1.msra.mxu0 %v107
    %305 = vmatprep.subr.mxu0 0.0
    %306 = vmatpush1.msra.mxu0 0.0
    %307 = vmatprep.subr.mxu0 0.0
    %308 = vmatpush1.msra.mxu0 0.0
    %309 = vmatprep.subr.mxu0 0.0
    %310 = vmatpush1.msra.mxu0 0.0
    %311 = vmatprep.subr.mxu0 0.0
    %312 = vmatpush1.msra.mxu0 0.0
    %313 = vmatprep.subr.mxu0 0.0
    %314 = vmatpush1.msra.mxu0 0.0
    %315 = vmatprep.subr.mxu0 0.0
    %316 = vmatpush1.msra.mxu0 0.0
    %317 = vmatprep.subr.mxu0 0.0
    %318 = vmatpush1.msra.mxu0 0.0
    %319 = vmatprep.subr.mxu0 0.0
    %320 = vmatpush1.msra.mxu0 0.0
    %321 = vmatprep.subr.mxu0 0.0
    %322 = vmatpush1.msra.mxu0 0.0
    %323 = vmatprep.subr.mxu0 0.0
    %324 = vmatpush1.msra.mxu0 0.0
    %325 = vmatprep.subr.mxu0 0.0
    %326 = vmatpush1.msra.mxu0 0.0
    %327 = vmatprep.subr.mxu0 0.0
    %328 = vmatpush1.msra.mxu0 0.0
    %329 = vmatprep.subr.mxu0 0.0
    %330 = vmatpush1.msra.mxu0 0.0
    %331 = vmatprep.subr.mxu0 0.0
    %332 = vmatpush1.msra.mxu0 0.0
    %333 = vmatprep.subr.mxu0 0.0
    %334 = vmatpush1.msra.mxu0 0.0
    %335 = vmatprep.subr.mxu0 0.0
    %336 = vmatpush1.msra.mxu0 0.0
    %337 = vmatprep.subr.mxu0 0.0
    %338 = vmatpush1.msra.mxu0 0.0
    %339 = vmatprep.subr.mxu0 0.0
    %340 = vmatpush1.msra.mxu0 0.0
    %341 = vmatprep.subr.mxu0 0.0
    %342 = vmatpush1.msra.mxu0 0.0
    %343 = vmatprep.subr.mxu0 0.0
    %344 = vmatpush1.msra.mxu0 0.0
    %345 = vmatprep.subr.mxu0 0.0
    %346 = vmatpush1.msra.mxu0 0.0
    %347 = vmatprep.subr.mxu0 0.0
    %348 = vmatpush1.msra.mxu0 0.0
    %349 = vmatprep.subr.mxu0 0.0
    %350 = vmatpush1.msra.mxu0 0.0
    %351 = vmatprep.subr.mxu0 0.0
    %352 = vmatpush1.msra.mxu0 0.0
    %353 = vmatprep.subr.mxu0 0.0
    %354 = vmatpush1.msra.mxu0 0.0
    %355 = vmatprep.subr.mxu0 0.0
    %356 = vmatpush1.msra.mxu0 0.0
    %357 = vmatprep.subr.mxu0 0.0
    %358 = vmatpush1.msra.mxu0 0.0
    %359 = vmatprep.subr.mxu0 0.0
    %360 = vmatpush1.msra.mxu0 0.0
    %361 = vmatprep.mubr.f32.mxu0 0.0
    %362 = vmatmul.mubr.f32.gmra.mrb[0].mxu0 %v135
    %v363 = vpop.f32.mrb[0].mxu0
    %v364 = vadd.f32 %v295, %v363
    %v365 = vpop.f32.mrb[0].mxu0
    %366 = vdwg.mxu0
    %v367 = vmul.f32 %v213, %v364
    %v368 = vadd.f32 %v132, %v367
    %v369 = vtanh.pop %v368
    %v370 = vsub.f32 1.0, %v290
    %v371 = vmul.f32 %v370, %v369
    %v372 = vmul.f32 %v290, %v126
    %v373 = vadd.f32 %v371, %v372
    %v374 = vld [vmem:[#allocation7] sm:$0xff]
    %s375 = scalar_lea.vmem [#allocation7], 8
    %v376 = vld [vmem:[%s375] sm:$0xff]
    %s377 = scalar_lea.vmem [#allocation7], 16
    %v378 = vld [vmem:[%s377] sm:$0xff]
    %v380 = vsel %vm133, %v127, 0
    %382 = vmatprep.subr.mxu0 0.0
    %383 = vmatpush1.msra.mxu0 %v108
    %384 = vmatprep.subr.mxu0 0.0
    %385 = vmatpush1.msra.mxu0 %v109
    %386 = vmatprep.subr.mxu0 0.0
    %387 = vmatpush1.msra.mxu0 %v110
    %388 = vmatprep.subr.mxu0 0.0
    %389 = vmatpush1.msra.mxu0 %v111
    %390 = vmatprep.subr.mxu0 0.0
    %391 = vmatpush1.msra.mxu0 0.0
    %392 = vmatprep.subr.mxu0 0.0
    %393 = vmatpush1.msra.mxu0 0.0
    %394 = vmatprep.subr.mxu0 0.0
    %395 = vmatpush1.msra.mxu0 0.0
    %396 = vmatprep.subr.mxu0 0.0
    %397 = vmatpush1.msra.mxu0 0.0
    %398 = vmatprep.subr.mxu0 0.0
    %399 = vmatpush1.msra.mxu0 0.0
    %400 = vmatprep.subr.mxu0 0.0
    %401 = vmatpush1.msra.mxu0 0.0
    %402 = vmatprep.subr.mxu0 0.0
    %403 = vmatpush1.msra.mxu0 0.0
    %404 = vmatprep.subr.mxu0 0.0
    %405 = vmatpush1.msra.mxu0 0.0
    %406 = vmatprep.subr.mxu0 0.0
    %407 = vmatpush1.msra.mxu0 0.0
    %408 = vmatprep.subr.mxu0 0.0
    %409 = vmatpush1.msra.mxu0 0.0
    %410 = vmatprep.subr.mxu0 0.0
    %411 = vmatpush1.msra.mxu0 0.0
    %412 = vmatprep.subr.mxu0 0.0
    %413 = vmatpush1.msra.mxu0 0.0
    %414 = vmatprep.subr.mxu0 0.0
    %415 = vmatpush1.msra.mxu0 0.0
    %416 = vmatprep.subr.mxu0 0.0
    %417 = vmatpush1.msra.mxu0 0.0
    %418 = vmatprep.subr.mxu0 0.0
    %419 = vmatpush1.msra.mxu0 0.0
    %420 = vmatprep.subr.mxu0 0.0
    %421 = vmatpush1.msra.mxu0 0.0
    %422 = vmatprep.subr.mxu0 0.0
    %423 = vmatpush1.msra.mxu0 0.0
    %424 = vmatprep.subr.mxu0 0.0
    %425 = vmatpush1.msra.mxu0 0.0
    %426 = vmatprep.subr.mxu0 0.0
    %427 = vmatpush1.msra.mxu0 0.0
    %428 = vmatprep.subr.mxu0 0.0
    %429 = vmatpush1.msra.mxu0 0.0
    %430 = vmatprep.subr.mxu0 0.0
    %431 = vmatpush1.msra.mxu0 0.0
    %432 = vmatprep.subr.mxu0 0.0
    %433 = vmatpush1.msra.mxu0 0.0
    %434 = vmatprep.subr.mxu0 0.0
    %435 = vmatpush1.msra.mxu0 0.0
    %436 = vmatprep.subr.mxu0 0.0
    %437 = vmatpush1.msra.mxu0 0.0
    %438 = vmatprep.subr.mxu0 0.0
    %439 = vmatpush1.msra.mxu0 0.0
    %440 = vmatprep.subr.mxu0 0.0
    %441 = vmatpush1.msra.mxu0 0.0
    %442 = vmatprep.subr.mxu0 0.0
    %443 = vmatpush1.msra.mxu0 0.0
    %444 = vmatprep.subr.mxu0 0.0
    %445 = vmatpush1.msra.mxu0 0.0
    %446 = vmatprep.mubr.f32.mxu0 0.0
    %447 = vmatmul.mubr.f32.gmra.mrb[0].mxu0 %v380
    %v448 = vpop.f32.mrb[0].mxu0
    %v449 = vadd.f32 0.0, %v448
    %v450 = vpop.f32.mrb[0].mxu0
    %451 = vdwg.mxu0
    %v452 = vadd.f32 %v374, %v449
    %v453 = vxor.u32 %v452, 2147483648
    %v454 = vmul.f32 %v453, 1.442695
    %v455 = vpow.pop %v454
    %v456 = vadd.f32 %v455, 1.0
    %v457 = vrcp.pop %v456
    %v458 = vmul.f32 1.0, %v457
    %459 = vmatprep.subr.mxu0 0.0
    %460 = vmatpush1.msra.mxu0 %v113
    %461 = vmatprep.subr.mxu0 0.0
    %462 = vmatpush1.msra.mxu0 %v114
    %463 = vmatprep.subr.mxu0 0.0
    %464 = vmatpush1.msra.mxu0 %v115
    %465 = vmatprep.subr.mxu0 0.0
    %466 = vmatpush1.msra.mxu0 %v116
    %467 = vmatprep.subr.mxu0 0.0
    %468 = vmatpush1.msra.mxu0 0.0
    %469 = vmatprep.subr.mxu0 0.0
    %470 = vmatpush1.msra.mxu0 0.0
    %471 = vmatprep.subr.mxu0 0.0
    %472 = vmatpush1.msra.mxu0 0.0
    %473 = vmatprep.subr.mxu0 0.0
    %474 = vmatpush1.msra.mxu0 0.0
    %475 = vmatprep.subr.mxu0 0.0
    %476 = vmatpush1.msra.mxu0 0.0
    %477 = vmatprep.subr.mxu0 0.0
    %478 = vmatpush1.msra.mxu0 0.0
    %479 = vmatprep.subr.mxu0 0.0
    %480 = vmatpush1.msra.mxu0 0.0
    %481 = vmatprep.subr.mxu0 0.0
    %482 = vmatpush1.msra.mxu0 0.0
    %483 = vmatprep.subr.mxu0 0.0
    %484 = vmatpush1.msra.mxu0 0.0
    %485 = vmatprep.subr.mxu0 0.0
    %486 = vmatpush1.msra.mxu0 0.0
    %487 = vmatprep.subr.mxu0 0.0
    %488 = vmatpush1.msra.mxu0 0.0
    %489 = vmatprep.subr.mxu0 0.0
    %490 = vmatpush1.msra.mxu0 0.0
    %491 = vmatprep.subr.mxu0 0.0
    %492 = vmatpush1.msra.mxu0 0.0
    %493 = vmatprep.subr.mxu0 0.0
    %494 = vmatpush1.msra.mxu0 0.0
    %495 = vmatprep.subr.mxu0 0.0
    %496 = vmatpush1.msra.mxu0 0.0
    %497 = vmatprep.subr.mxu0 0.0
    %498 = vmatpush1.msra.mxu0 0.0
    %499 = vmatprep.subr.mxu0 0.0
    %500 = vmatpush1.msra.mxu0 0.0
    %501 = vmatprep.subr.mxu0 0.0
    %502 = vmatpush1.msra.mxu0 0.0
    %503 = vmatprep.subr.mxu0 0.0
    %504 = vmatpush1.msra.mxu0 0.0
    %505 = vmatprep.subr.mxu0 0.0
    %506 = vmatpush1.msra.mxu0 0.0
    %507 = vmatprep.subr.mxu0 0.0
    %508 = vmatpush1.msra.mxu0 0.0
    %509 = vmatprep.subr.mxu0 0.0
    %510 = vmatpush1.msra.mxu0 0.0
    %511 = vmatprep.subr.mxu0 0.0
    %512 = vmatpush1.msra.mxu0 0.0
    %513 = vmatprep.subr.mxu0 0.0
    %514 = vmatpush1.msra.mxu0 0.0
    %515 = vmatprep.subr.mxu0 0.0
    %516 = vmatpush1.msra.mxu0 0.0
    %517 = vmatprep.subr.mxu0 0.0
    %518 = vmatpush1.msra.mxu0 0.0
    %519 = vmatprep.subr.mxu0 0.0
    %520 = vmatpush1.msra.mxu0 0.0
    %521 = vmatprep.subr.mxu0 0.0
    %522 = vmatpush1.msra.mxu0 0.0
    %523 = vmatprep.mubr.f32.mxu0 0.0
    %524 = vmatmul.mubr.f32.gmra.mrb[0].mxu0 %v380
    %v525 = vpop.f32.mrb[0].mxu0
    %v526 = vadd.f32 0.0, %v525
    %v527 = vpop.f32.mrb[0].mxu0
    %528 = vdwg.mxu0
    %v529 = vadd.f32 %v376, %v526
    %v530 = vxor.u32 %v529, 2147483648
    %v531 = vmul.f32 %v530, 1.442695
    %v532 = vpow.pop %v531
    %v533 = vadd.f32 %v532, 1.0
    %v534 = vrcp.pop %v533
    %v535 = vmul.f32 1.0, %v534
    %v537 = vlaneseq
    %v538 = vshrl.u32 %v537, 7
    %v539 = vsub.s32 0, %v538
    %v540 = vrot.slane %v124, %v539
    %542 = vmatprep.subr.mxu0 0.0
    %543 = vmatpush1.msra.mxu0 %v118
    %544 = vmatprep.subr.mxu0 0.0
    %545 = vmatpush1.msra.mxu0 %v119
    %546 = vmatprep.subr.mxu0 0.0
    %547 = vmatpush1.msra.mxu0 %v120
    %548 = vmatprep.subr.mxu0 0.0
    %549 = vmatpush1.msra.mxu0 %v121
    %550 = vmatprep.subr.mxu0 0.0
    %551 = vmatpush1.msra.mxu0 0.0
    %552 = vmatprep.subr.mxu0 0.0
    %553 = vmatpush1.msra.mxu0 0.0
    %554 = vmatprep.subr.mxu0 0.0
    %555 = vmatpush1.msra.mxu0 0.0
    %556 = vmatprep.subr.mxu0 0.0
    %557 = vmatpush1.msra.mxu0 0.0
    %558 = vmatprep.subr.mxu0 0.0
    %559 = vmatpush1.msra.mxu0 0.0
    %560 = vmatprep.subr.mxu0 0.0
    %561 = vmatpush1.msra.mxu0 0.0
    %562 = vmatprep.subr.mxu0 0.0
    %563 = vmatpush1.msra.mxu0 0.0
    %564 = vmatprep.subr.mxu0 0.0
    %565 = vmatpush1.msra.mxu0 0.0
    %566 = vmatprep.subr.mxu0 0.0
    %567 = vmatpush1.msra.mxu0 0.0
    %568 = vmatprep.subr.mxu0 0.0
    %569 = vmatpush1.msra.mxu0 0.0
    %570 = vmatprep.subr.mxu0 0.0
    %571 = vmatpush1.msra.mxu0 0.0
    %572 = vmatprep.subr.mxu0 0.0
    %573 = vmatpush1.msra.mxu0 0.0
    %574 = vmatprep.subr.mxu0 0.0
    %575 = vmatpush1.msra.mxu0 0.0
    %576 = vmatprep.subr.mxu0 0.0
    %577 = vmatpush1.msra.mxu0 0.0
    %578 = vmatprep.subr.mxu0 0.0
    %579 = vmatpush1.msra.mxu0 0.0
    %580 = vmatprep.subr.mxu0 0.0
    %581 = vmatpush1.msra.mxu0 0.0
    %582 = vmatprep.subr.mxu0 0.0
    %583 = vmatpush1.msra.mxu0 0.0
    %584 = vmatprep.subr.mxu0 0.0
    %585 = vmatpush1.msra.mxu0 0.0
    %586 = vmatprep.subr.mxu0 0.0
    %587 = vmatpush1.msra.mxu0 0.0
    %588 = vmatprep.subr.mxu0 0.0
    %589 = vmatpush1.msra.mxu0 0.0
    %590 = vmatprep.subr.mxu0 0.0
    %591 = vmatpush1.msra.mxu0 0.0
    %592 = vmatprep.subr.mxu0 0.0
    %593 = vmatpush1.msra.mxu0 0.0
    %594 = vmatprep.subr.mxu0 0.0
    %595 = vmatpush1.msra.mxu0 0.0
    %596 = vmatprep.subr.mxu0 0.0
    %597 = vmatpush1.msra.mxu0 0.0
    %598 = vmatprep.subr.mxu0 0.0
    %599 = vmatpush1.msra.mxu0 0.0
    %600 = vmatprep.subr.mxu0 0.0
    %601 = vmatpush1.msra.mxu0 0.0
    %602 = vmatprep.subr.mxu0 0.0
    %603 = vmatpush1.msra.mxu0 0.0
    %604 = vmatprep.subr.mxu0 0.0
    %605 = vmatpush1.msra.mxu0 0.0
    %606 = vmatprep.mubr.f32.mxu0 0.0
    %607 = vmatmul.mubr.f32.gmra.mrb[0].mxu0 %v380
    %v608 = vpop.f32.mrb[0].mxu0
    %v609 = vadd.f32 %v540, %v608
    %v610 = vpop.f32.mrb[0].mxu0
    %611 = vdwg.mxu0
    %v612 = vmul.f32 %v458, %v609
    %v613 = vadd.f32 %v378, %v612
    %v614 = vtanh.pop %v613
    %v615 = vsub.f32 1.0, %v535
    %v616 = vmul.f32 %v615, %v614
    %v617 = vmul.f32 %v535, %v127
    %v618 = vadd.f32 %v616, %v617
    %v619 = vstv %s82
    %vm620 = vcmp.lt.s32.totalorder %v619, %v93
    %v621 = vsel %vm620, 1, 0
    %622 = vset.pattern.permute.xlu0 0
    %623 = vperm.xlu0 %622, %v621
    %v624 = vpop.permute.xlu0 %623
    %vm625 = vcmp.eq.s32.totalorder %v624, 1
    %v626 = vsel %vm625, %v373, %v126
    %627 = vst.msk [vmem:[#allocation2] sm:$0xff] %vm133, %v626
    %v628 = vstv %s125
    %vm629 = vcmp.lt.s32.totalorder %v628, %v93
    %v630 = vsel %vm629, 1, 0
    %631 = vset.pattern.permute.xlu0 0
    %632 = vperm.xlu0 %631, %v630
    %v633 = vpop.permute.xlu0 %632
    %vm634 = vcmp.eq.s32.totalorder %v633, 1
    %v635 = vsel %vm634, %v618, %v127
    %636 = vst.msk [vmem:[#allocation3] sm:$0xff] %vm133, %v635
    %s637 = sadd.s32 %s82, 1
    %s638 = ssub.s32 6, %s82
    %v639 = vld [vmem:[#allocation2] sm:$0xff]
    %v640 = vld [vmem:[#allocation3] sm:$0xff]
    %s641 = scalar_lea.vmem [#allocation4], 24
    %v642 = vld [vmem:[%s641] sm:$0xff]
    %s643 = scalar_lea.vmem [#allocation4], 32
    %v644 = vld [vmem:[%s643] sm:$0xff]
    %s645 = scalar_lea.vmem [#allocation4], 40
    %v646 = vld [vmem:[%s645] sm:$0xff]
    %v648 = vsel %vm133, %v639, 0
    %650 = vmatprep.subr.mxu0 0.0
    %651 = vmatpush1.msra.mxu0 %v94
    %652 = vmatprep.subr.mxu0 0.0
    %653 = vmatpush1.msra.mxu0 %v95
    %654 = vmatprep.subr.mxu0 0.0
    %655 = vmatpush1.msra.mxu0 %v96
    %656 = vmatprep.subr.mxu0 0.0
    %657 = vmatpush1.msra.mxu0 %v97
    %658 = vmatprep.subr.mxu0 0.0
    %659 = vmatpush1.msra.mxu0 0.0
    %660 = vmatprep.subr.mxu0 0.0
    %661 = vmatpush1.msra.mxu0 0.0
    %662 = vmatprep.subr.mxu0 0.0
    %663 = vmatpush1.msra.mxu0 0.0
    %664 = vmatprep.subr.mxu0 0.0
    %665 = vmatpush1.msra.mxu0 0.0
    %666 = vmatprep.subr.mxu0 0.0
    %667 = vmatpush1.msra.mxu0 0.0
    %668 = vmatprep.subr.mxu0 0.0
    %669 = vmatpush1.msra.mxu0 0.0
    %670 = vmatprep.subr.mxu0 0.0
    %671 = vmatpush1.msra.mxu0 0.0
    %672 = vmatprep.subr.mxu0 0.0
    %673 = vmatpush1.msra.mxu0 0.0
    %674 = vmatprep.subr.mxu0 0.0
    %675 = vmatpush1.msra.mxu0 0.0
    %676 = vmatprep.subr.mxu0 0.0
    %677 = vmatpush1.msra.mxu0 0.0
    %678 = vmatprep.subr.mxu0 0.0
    %679 = vmatpush1.msra.mxu0 0.0
    %680 = vmatprep.subr.mxu0 0.0
    %681 = vmatpush1.msra.mxu0 0.0
    %682 = vmatprep.subr.mxu0 0.0
    %683 = vmatpush1.msra.mxu0 0.0
    %684 = vmatprep.subr.mxu0 0.0
    %685 = vmatpush1.msra.mxu0 0.0
    %686 = vmatprep.subr.mxu0 0.0
    %687 = vmatpush1.msra.mxu0 0.0
    %688 = vmatprep.subr.mxu0 0.0
    %689 = vmatpush1.msra.mxu0 0.0
    %690 = vmatprep.subr.mxu0 0.0
    %691 = vmatpush1.msra.mxu0 0.0
    %692 = vmatprep.subr.mxu0 0.0
    %693 = vmatpush1.msra.mxu0 0.0
    %694 = vmatprep.subr.mxu0 0.0
    %695 = vmatpush1.msra.mxu0 0.0
    %696 = vmatprep.subr.mxu0 0.0
    %697 = vmatpush1.msra.mxu0 0.0
    %698 = vmatprep.subr.mxu0 0.0
    %699 = vmatpush1.msra.mxu0 0.0
    %700 = vmatprep.subr.mxu0 0.0
    %701 = vmatpush1.msra.mxu0 0.0
    %702 = vmatprep.subr.mxu0 0.0
    %703 = vmatpush1.msra.mxu0 0.0
    %704 = vmatprep.subr.mxu0 0.0
    %705 = vmatpush1.msra.mxu0 0.0
    %706 = vmatprep.subr.mxu0 0.0
    %707 = vmatpush1.msra.mxu0 0.0
    %708 = vmatprep.subr.mxu0 0.0
    %709 = vmatpush1.msra.mxu0 0.0
    %710 = vmatprep.subr.mxu0 0.0
    %711 = vmatpush1.msra.mxu0 0.0
    %712 = vmatprep.subr.mxu0 0.0
    %713 = vmatpush1.msra.mxu0 0.0
    %714 = vmatprep.mubr.f32.mxu0 0.0
    %715 = vmatmul.mubr.f32.gmra.mrb[0].mxu0 %v648
    %v716 = vpop.f32.mrb[0].mxu0
    %v717 = vadd.f32 0.0, %v716
    %v718 = vpop.f32.mrb[0].mxu0
    %719 = vdwg.mxu0
    %v720 = vadd.f32 %v642, %v717
    %v721 = vxor.u32 %v720, 2147483648
    %v722 = vmul.f32 %v721, 1.442695
    %v723 = vpow.pop %v722
    %v724 = vadd.f32 %v723, 1.0
    %v725 = vrcp.pop %v724
    %v726 = vmul.f32 1.0, %v725
    %727 = vmatprep.subr.mxu0 0.0
    %728 = vmatpush1.msra.mxu0 %v99
    %729 = vmatprep.subr.mxu0 0.0
    %730 = vmatpush1.msra.mxu0 %v100
    %731 = vmatprep.subr.mxu0 0.0
    %732 = vmatpush1.msra.mxu0 %v101
    %733 = vmatprep.subr.mxu0 0.0
    %734 = vmatpush1.msra.mxu0 %v102
    %735 = vmatprep.subr.mxu0 0.0
    %736 = vmatpush1.msra.mxu0 0.0
    %737 = vmatprep.subr.mxu0 0.0
    %738 = vmatpush1.msra.mxu0 0.0
    %739 = vmatprep.subr.mxu0 0.0
    %740 = vmatpush1.msra.mxu0 0.0
    %741 = vmatprep.subr.mxu0 0.0
    %742 = vmatpush1.msra.mxu0 0.0
    %743 = vmatprep.subr.mxu0 0.0
    %744 = vmatpush1.msra.mxu0 0.0
    %745 = vmatprep.subr.mxu0 0.0
    %746 = vmatpush1.msra.mxu0 0.0
    %747 = vmatprep.subr.mxu0 0.0
    %748 = vmatpush1.msra.mxu0 0.0
    %749 = vmatprep.subr.mxu0 0.0
    %750 = vmatpush1.msra.mxu0 0.0
    %751 = vmatprep.subr.mxu0 0.0
    %752 = vmatpush1.msra.mxu0 0.0
    %753 = vmatprep.subr.mxu0 0.0
    %754 = vmatpush1.msra.mxu0 0.0
    %755 = vmatprep.subr.mxu0 0.0
    %756 = vmatpush1.msra.mxu0 0.0
    %757 = vmatprep.subr.mxu0 0.0
    %758 = vmatpush1.msra.mxu0 0.0
    %759 = vmatprep.subr.mxu0 0.0
    %760 = vmatpush1.msra.mxu0 0.0
    %761 = vmatprep.subr.mxu0 0.0
    %762 = vmatpush1.msra.mxu0 0.0
    %763 = vmatprep.subr.mxu0 0.0
    %764 = vmatpush1.msra.mxu0 0.0
    %765 = vmatprep.subr.mxu0 0.0
    %766 = vmatpush1.msra.mxu0 0.0
    %767 = vmatprep.subr.mxu0 0.0
    %768 = vmatpush1.msra.mxu0 0.0
    %769 = vmatprep.subr.mxu0 0.0
    %770 = vmatpush1.msra.mxu0 0.0
    %771 = vmatprep.subr.mxu0 0.0
    %772 = vmatpush1.msra.mxu0 0.0
    %773 = vmatprep.subr.mxu0 0.0
    %774 = vmatpush1.msra.mxu0 0.0
    %775 = vmatprep.subr.mxu0 0.0
    %776 = vmatpush1.msra.mxu0 0.0
    %777 = vmatprep.subr.mxu0 0.0
    %778 = vmatpush1.msra.mxu0 0.0
    %779 = vmatprep.subr.mxu0 0.0
    %780 = vmatpush1.msra.mxu0 0.0
    %781 = vmatprep.subr.mxu0 0.0
    %782 = vmatpush1.msra.mxu0 0.0
    %783 = vmatprep.subr.mxu0 0.0
    %784 = vmatpush1.msra.mxu0 0.0
    %785 = vmatprep.subr.mxu0 0.0
    %786 = vmatpush1.msra.mxu0 0.0
    %787 = vmatprep.subr.mxu0 0.0
    %788 = vmatpush1.msra.mxu0 0.0
    %789 = vmatprep.subr.mxu0 0.0
    %790 = vmatpush1.msra.mxu0 0.0
    %791 = vmatprep.mubr.f32.mxu0 0.0
    %792 = vmatmul.mubr.f32.gmra.mrb[0].mxu0 %v648
    %v793 = vpop.f32.mrb[0].mxu0
    %v794 = vadd.f32 0.0, %v793
    %v795 = vpop.f32.mrb[0].mxu0
    %796 = vdwg.mxu0
    %v797 = vadd.f32 %v644, %v794
    %v798 = vxor.u32 %v797, 2147483648
    %v799 = vmul.f32 %v798, 1.442695
    %v800 = vpow.pop %v799
    %v801 = vadd.f32 %v800, 1.0
    %v802 = vrcp.pop %v801
    %v803 = vmul.f32 1.0, %v802
    %804 = vmatprep.subr.mxu0 0.0
    %805 = vmatpush1.msra.mxu0 %v104
    %806 = vmatprep.subr.mxu0 0.0
    %807 = vmatpush1.msra.mxu0 %v105
    %808 = vmatprep.subr.mxu0 0.0
    %809 = vmatpush1.msra.mxu0 %v106
    %810 = vmatprep.subr.mxu0 0.0
    %811 = vmatpush1.msra.mxu0 %v107
    %812 = vmatprep.subr.mxu0 0.0
    %813 = vmatpush1.msra.mxu0 0.0
    %814 = vmatprep.subr.mxu0 0.0
    %815 = vmatpush1.msra.mxu0 0.0
    %816 = vmatprep.subr.mxu0 0.0
    %817 = vmatpush1.msra.mxu0 0.0
    %818 = vmatprep.subr.mxu0 0.0
    %819 = vmatpush1.msra.mxu0 0.0
    %820 = vmatprep.subr.mxu0 0.0
    %821 = vmatpush1.msra.mxu0 0.0
    %822 = vmatprep.subr.mxu0 0.0
    %823 = vmatpush1.msra.mxu0 0.0
    %824 = vmatprep.subr.mxu0 0.0
    %825 = vmatpush1.msra.mxu0 0.0
    %826 = vmatprep.subr.mxu0 0.0
    %827 = vmatpush1.msra.mxu0 0.0
    %828 = vmatprep.subr.mxu0 0.0
    %829 = vmatpush1.msra.mxu0 0.0
    %830 = vmatprep.subr.mxu0 0.0
    %831 = vmatpush1.msra.mxu0 0.0
    %832 = vmatprep.subr.mxu0 0.0
    %833 = vmatpush1.msra.mxu0 0.0
    %834 = vmatprep.subr.mxu0 0.0
    %835 = vmatpush1.msra.mxu0 0.0
    %836 = vmatprep.subr.mxu0 0.0
    %837 = vmatpush1.msra.mxu0 0.0
    %838 = vmatprep.subr.mxu0 0.0
    %839 = vmatpush1.msra.mxu0 0.0
    %840 = vmatprep.subr.mxu0 0.0
    %841 = vmatpush1.msra.mxu0 0.0
    %842 = vmatprep.subr.mxu0 0.0
    %843 = vmatpush1.msra.mxu0 0.0
    %844 = vmatprep.subr.mxu0 0.0
    %845 = vmatpush1.msra.mxu0 0.0
    %846 = vmatprep.subr.mxu0 0.0
    %847 = vmatpush1.msra.mxu0 0.0
    %848 = vmatprep.subr.mxu0 0.0
    %849 = vmatpush1.msra.mxu0 0.0
    %850 = vmatprep.subr.mxu0 0.0
    %851 = vmatpush1.msra.mxu0 0.0
    %852 = vmatprep.subr.mxu0 0.0
    %853 = vmatpush1.msra.mxu0 0.0
    %854 = vmatprep.subr.mxu0 0.0
    %855 = vmatpush1.msra.mxu0 0.0
    %856 = vmatprep.subr.mxu0 0.0
    %857 = vmatpush1.msra.mxu0 0.0
    %858 = vmatprep.subr.mxu0 0.0
    %859 = vmatpush1.msra.mxu0 0.0
    %860 = vmatprep.subr.mxu0 0.0
    %861 = vmatpush1.msra.mxu0 0.0
    %862 = vmatprep.subr.mxu0 0.0
    %863 = vmatpush1.msra.mxu0 0.0
    %864 = vmatprep.subr.mxu0 0.0
    %865 = vmatpush1.msra.mxu0 0.0
    %866 = vmatprep.subr.mxu0 0.0
    %867 = vmatpush1.msra.mxu0 0.0
    %868 = vmatprep.mubr.f32.mxu0 0.0
    %869 = vmatmul.mubr.f32.gmra.mrb[0].mxu0 %v648
    %v870 = vpop.f32.mrb[0].mxu0
    %v871 = vadd.f32 %v295, %v870
    %v872 = vpop.f32.mrb[0].mxu0
    %873 = vdwg.mxu0
    %v874 = vmul.f32 %v726, %v871
    %v875 = vadd.f32 %v646, %v874
    %v876 = vtanh.pop %v875
    %v877 = vsub.f32 1.0, %v803
    %v878 = vmul.f32 %v877, %v876
    %v879 = vmul.f32 %v803, %v639
    %v880 = vadd.f32 %v878, %v879
    %s881 = scalar_lea.vmem [#allocation7], 24
    %v882 = vld [vmem:[%s881] sm:$0xff]
    %s883 = scalar_lea.vmem [#allocation7], 32
    %v884 = vld [vmem:[%s883] sm:$0xff]
    %s885 = scalar_lea.vmem [#allocation7], 40
    %v886 = vld [vmem:[%s885] sm:$0xff]
    %v888 = vsel %vm133, %v640, 0
    %890 = vmatprep.subr.mxu0 0.0
    %891 = vmatpush1.msra.mxu0 %v108
    %892 = vmatprep.subr.mxu0 0.0
    %893 = vmatpush1.msra.mxu0 %v109
    %894 = vmatprep.subr.mxu0 0.0
    %895 = vmatpush1.msra.mxu0 %v110
    %896 = vmatprep.subr.mxu0 0.0
    %897 = vmatpush1.msra.mxu0 %v111
    %898 = vmatprep.subr.mxu0 0.0
    %899 = vmatpush1.msra.mxu0 0.0
    %900 = vmatprep.subr.mxu0 0.0
    %901 = vmatpush1.msra.mxu0 0.0
    %902 = vmatprep.subr.mxu0 0.0
    %903 = vmatpush1.msra.mxu0 0.0
    %904 = vmatprep.subr.mxu0 0.0
    %905 = vmatpush1.msra.mxu0 0.0
    %906 = vmatprep.subr.mxu0 0.0
    %907 = vmatpush1.msra.mxu0 0.0
    %908 = vmatprep.subr.mxu0 0.0
    %909 = vmatpush1.msra.mxu0 0.0
    %910 = vmatprep.subr.mxu0 0.0
    %911 = vmatpush1.msra.mxu0 0.0
    %912 = vmatprep.subr.mxu0 0.0
    %913 = vmatpush1.msra.mxu0 0.0
    %914 = vmatprep.subr.mxu0 0.0
    %915 = vmatpush1.msra.mxu0 0.0
    %916 = vmatprep.subr.mxu0 0.0
    %917 = vmatpush1.msra.mxu0 0.0
    %918 = vmatprep.subr.mxu0 0.0
    %919 = vmatpush1.msra.mxu0 0.0
    %920 = vmatprep.subr.mxu0 0.0
    %921 = vmatpush1.msra.mxu0 0.0
    %922 = vmatprep.subr.mxu0 0.0
    %923 = vmatpush1.msra.mxu0 0.0
    %924 = vmatprep.subr.mxu0 0.0
    %925 = vmatpush1.msra.mxu0 0.0
    %926 = vmatprep.subr.mxu0 0.0
    %927 = vmatpush1.msra.mxu0 0.0
    %928 = vmatprep.subr.mxu0 0.0
    %929 = vmatpush1.msra.mxu0 0.0
    %930 = vmatprep.subr.mxu0 0.0
    %931 = vmatpush1.msra.mxu0 0.0
    %932 = vmatprep.subr.mxu0 0.0
    %933 = vmatpush1.msra.mxu0 0.0
    %934 = vmatprep.subr.mxu0 0.0
    %935 = vmatpush1.msra.mxu0 0.0
    %936 = vmatprep.subr.mxu0 0.0
    %937 = vmatpush1.msra.mxu0 0.0
    %938 = vmatprep.subr.mxu0 0.0
    %939 = vmatpush1.msra.mxu0 0.0
    %940 = vmatprep.subr.mxu0 0.0
    %941 = vmatpush1.msra.mxu0 0.0
    %942 = vmatprep.subr.mxu0 0.0
    %943 = vmatpush1.msra.mxu0 0.0
    %944 = vmatprep.subr.mxu0 0.0
    %945 = vmatpush1.msra.mxu0 0.0
    %946 = vmatprep.subr.mxu0 0.0
    %947 = vmatpush1.msra.mxu0 0.0
    %948 = vmatprep.subr.mxu0 0.0
    %949 = vmatpush1.msra.mxu0 0.0
    %950 = vmatprep.subr.mxu0 0.0
    %951 = vmatpush1.msra.mxu0 0.0
    %952 = vmatprep.subr.mxu0 0.0
    %953 = vmatpush1.msra.mxu0 0.0
    %954 = vmatprep.mubr.f32.mxu0 0.0
    %955 = vmatmul.mubr.f32.gmra.mrb[0].mxu0 %v888
    %v956 = vpop.f32.mrb[0].mxu0
    %v957 = vadd.f32 0.0, %v956
    %v958 = vpop.f32.mrb[0].mxu0
    %959 = vdwg.mxu0
    %v960 = vadd.f32 %v882, %v957
    %v961 = vxor.u32 %v960, 2147483648
    %v962 = vmul.f32 %v961, 1.442695
    %v963 = vpow.pop %v962
    %v964 = vadd.f32 %v963, 1.0
    %v965 = vrcp.pop %v964
    %v966 = vmul.f32 1.0, %v965
    %967 = vmatprep.subr.mxu0 0.0
    %968 = vmatpush1.msra.mxu0 %v113
    %969 = vmatprep.subr.mxu0 0.0
    %970 = vmatpush1.msra.mxu0 %v114
    %971 = vmatprep.subr.mxu0 0.0
    %972 = vmatpush1.msra.mxu0 %v115
    %973 = vmatprep.subr.mxu0 0.0
    %974 = vmatpush1.msra.mxu0 %v116
    %975 = vmatprep.subr.mxu0 0.0
    %976 = vmatpush1.msra.mxu0 0.0
    %977 = vmatprep.subr.mxu0 0.0
    %978 = vmatpush1.msra.mxu0 0.0
    %979 = vmatprep.subr.mxu0 0.0
    %980 = vmatpush1.msra.mxu0 0.0
    %981 = vmatprep.subr.mxu0 0.0
    %982 = vmatpush1.msra.mxu0 0.0
    %983 = vmatprep.subr.mxu0 0.0
    %984 = vmatpush1.msra.mxu0 0.0
    %985 = vmatprep.subr.mxu0 0.0
    %986 = vmatpush1.msra.mxu0 0.0
    %987 = vmatprep.subr.mxu0 0.0
    %988 = vmatpush1.msra.mxu0 0.0
    %989 = vmatprep.subr.mxu0 0.0
    %990 = vmatpush1.msra.mxu0 0.0
    %991 = vmatprep.subr.mxu0 0.0
    %992 = vmatpush1.msra.mxu0 0.0
    %993 = vmatprep.subr.mxu0 0.0
    %994 = vmatpush1.msra.mxu0 0.0
    %995 = vmatprep.subr.mxu0 0.0
    %996 = vmatpush1.msra.mxu0 0.0
    %997 = vmatprep.subr.mxu0 0.0
    %998 = vmatpush1.msra.mxu0 0.0
    %999 = vmatprep.subr.mxu0 0.0
    %1000 = vmatpush1.msra.mxu0 0.0
    %1001 = vmatprep.subr.mxu0 0.0
    %1002 = vmatpush1.msra.mxu0 0.0
    %1003 = vmatprep.subr.mxu0 0.0
    %1004 = vmatpush1.msra.mxu0 0.0
    %1005 = vmatprep.subr.mxu0 0.0
    %1006 = vmatpush1.msra.mxu0 0.0
    %1007 = vmatprep.subr.mxu0 0.0
    %1008 = vmatpush1.msra.mxu0 0.0
    %1009 = vmatprep.subr.mxu0 0.0
    %1010 = vmatpush1.msra.mxu0 0.0
    %1011 = vmatprep.subr.mxu0 0.0
    %1012 = vmatpush1.msra.mxu0 0.0
    %1013 = vmatprep.subr.mxu0 0.0
    %1014 = vmatpush1.msra.mxu0 0.0
    %1015 = vmatprep.subr.mxu0 0.0
    %1016 = vmatpush1.msra.mxu0 0.0
    %1017 = vmatprep.subr.mxu0 0.0
    %1018 = vmatpush1.msra.mxu0 0.0
    %1019 = vmatprep.subr.mxu0 0.0
    %1020 = vmatpush1.msra.mxu0 0.0
    %1021 = vmatprep.subr.mxu0 0.0
    %1022 = vmatpush1.msra.mxu0 0.0
    %1023 = vmatprep.subr.mxu0 0.0
    %1024 = vmatpush1.msra.mxu0 0.0
    %1025 = vmatprep.subr.mxu0 0.0
    %1026 = vmatpush1.msra.mxu0 0.0
    %1027 = vmatprep.subr.mxu0 0.0
    %1028 = vmatpush1.msra.mxu0 0.0
    %1029 = vmatprep.subr.mxu0 0.0
    %1030 = vmatpush1.msra.mxu0 0.0
    %1031 = vmatprep.mubr.f32.mxu0 0.0
    %1032 = vmatmul.mubr.f32.gmra.mrb[0].mxu0 %v888
    %v1033 = vpop.f32.mrb[0].mxu0
    %v1034 = vadd.f32 0.0, %v1033
    %v1035 = vpop.f32.mrb[0].mxu0
    %1036 = vdwg.mxu0
    %v1037 = vadd.f32 %v884, %v1034
    %v1038 = vxor.u32 %v1037, 2147483648
    %v1039 = vmul.f32 %v1038, 1.442695
    %v1040 = vpow.pop %v1039
    %v1041 = vadd.f32 %v1040, 1.0
    %v1042 = vrcp.pop %v1041
    %v1043 = vmul.f32 1.0, %v1042
    %1044 = vmatprep.subr.mxu0 0.0
    %1045 = vmatpush1.msra.mxu0 %v118
    %1046 = vmatprep.subr.mxu0 0.0
    %1047 = vmatpush1.msra.mxu0 %v119
    %1048 = vmatprep.subr.mxu0 0.0
    %1049 = vmatpush1.msra.mxu0 %v120
    %1050 = vmatprep.subr.mxu0 0.0
    %1051 = vmatpush1.msra.mxu0 %v121
    %1052 = vmatprep.subr.mxu0 0.0
    %1053 = vmatpush1.msra.mxu0 0.0
    %1054 = vmatprep.subr.mxu0 0.0
    %1055 = vmatpush1.msra.mxu0 0.0
    %1056 = vmatprep.subr.mxu0 0.0
    %1057 = vmatpush1.msra.mxu0 0.0
    %1058 = vmatprep.subr.mxu0 0.0
    %1059 = vmatpush1.msra.mxu0 0.0
    %1060 = vmatprep.subr.mxu0 0.0
    %1061 = vmatpush1.msra.mxu0 0.0
    %1062 = vmatprep.subr.mxu0 0.0
    %1063 = vmatpush1.msra.mxu0 0.0
    %1064 = vmatprep.subr.mxu0 0.0
    %1065 = vmatpush1.msra.mxu0 0.0
    %1066 = vmatprep.subr.mxu0 0.0
    %1067 = vmatpush1.msra.mxu0 0.0
    %1068 = vmatprep.subr.mxu0 0.0
    %1069 = vmatpush1.msra.mxu0 0.0
    %1070 = vmatprep.subr.mxu0 0.0
    %1071 = vmatpush1.msra.mxu0 0.0
    %1072 = vmatprep.subr.mxu0 0.0
    %1073 = vmatpush1.msra.mxu0 0.0
    %1074 = vmatprep.subr.mxu0 0.0
    %1075 = vmatpush1.msra.mxu0 0.0
    %1076 = vmatprep.subr.mxu0 0.0
    %1077 = vmatpush1.msra.mxu0 0.0
    %1078 = vmatprep.subr.mxu0 0.0
    %1079 = vmatpush1.msra.mxu0 0.0
    %1080 = vmatprep.subr.mxu0 0.0
    %1081 = vmatpush1.msra.mxu0 0.0
    %1082 = vmatprep.subr.mxu0 0.0
    %1083 = vmatpush1.msra.mxu0 0.0
    %1084 = vmatprep.subr.mxu0 0.0
    %1085 = vmatpush1.msra.mxu0 0.0
    %1086 = vmatprep.subr.mxu0 0.0
    %1087 = vmatpush1.msra.mxu0 0.0
    %1088 = vmatprep.subr.mxu0 0.0
    %1089 = vmatpush1.msra.mxu0 0.0
    %1090 = vmatprep.subr.mxu0 0.0
    %1091 = vmatpush1.msra.mxu0 0.0
    %1092 = vmatprep.subr.mxu0 0.0
    %1093 = vmatpush1.msra.mxu0 0.0
    %1094 = vmatprep.subr.mxu0 0.0
    %1095 = vmatpush1.msra.mxu0 0.0
    %1096 = vmatprep.subr.mxu0 0.0
    %1097 = vmatpush1.msra.mxu0 0.0
    %1098 = vmatprep.subr.mxu0 0.0
    %1099 = vmatpush1.msra.mxu0 0.0
    %1100 = vmatprep.subr.mxu0 0.0
    %1101 = vmatpush1.msra.mxu0 0.0
    %1102 = vmatprep.subr.mxu0 0.0
    %1103 = vmatpush1.msra.mxu0 0.0
    %1104 = vmatprep.subr.mxu0 0.0
    %1105 = vmatpush1.msra.mxu0 0.0
    %1106 = vmatprep.subr.mxu0 0.0
    %1107 = vmatpush1.msra.mxu0 0.0
    %1108 = vmatprep.mubr.f32.mxu0 0.0
    %1109 = vmatmul.mubr.f32.gmra.mrb[0].mxu0 %v888
    %v1110 = vpop.f32.mrb[0].mxu0
    %v1111 = vadd.f32 %v540, %v1110
    %v1112 = vpop.f32.mrb[0].mxu0
    %1113 = vdwg.mxu0
    %v1114 = vmul.f32 %v966, %v1111
    %v1115 = vadd.f32 %v886, %v1114
    %v1116 = vtanh.pop %v1115
    %v1117 = vsub.f32 1.0, %v1043
    %v1118 = vmul.f32 %v1117, %v1116
    %v1119 = vmul.f32 %v1043, %v640
    %v1120 = vadd.f32 %v1118, %v1119
    %v1121 = vstv %s637
    %vm1122 = vcmp.lt.s32.totalorder %v1121, %v93
    %v1123 = vsel %vm1122, 1, 0
    %1124 = vset.pattern.permute.xlu0 0
    %1125 = vperm.xlu0 %1124, %v1123
    %v1126 = vpop.permute.xlu0 %1125
    %vm1127 = vcmp.eq.s32.totalorder %v1126, 1
    %v1128 = vsel %vm1127, %v880, %v639
    %1129 = vst.msk [vmem:[#allocation2] sm:$0xff] %vm133, %v1128
    %v1130 = vstv %s638
    %vm1131 = vcmp.lt.s32.totalorder %v1130, %v93
    %v1132 = vsel %vm1131, 1, 0
    %1133 = vset.pattern.permute.xlu0 0
    %1134 = vperm.xlu0 %1133, %v1132
    %v1135 = vpop.permute.xlu0 %1134
    %vm1136 = vcmp.eq.s32.totalorder %v1135, 1
    %v1137 = vsel %vm1136, %v1120, %v640
    %1138 = vst.msk [vmem:[#allocation3] sm:$0xff] %vm133, %v1137
    %s1139 = sadd.s32 %s82, 2
    %s1140 = ssub.s32 5, %s82
    %v1141 = vld [vmem:[#allocation2] sm:$0xff]
    %v1142 = vld [vmem:[#allocation3] sm:$0xff]
    %s1143 = scalar_lea.vmem [#allocation4], 48
    %v1144 = vld [vmem:[%s1143] sm:$0xff]
    %s1145 = scalar_lea.vmem [#allocation4], 56
    %v1146 = vld [vmem:[%s1145] sm:$0xff]
    %s1147 = scalar_lea.vmem [#allocation4], 64
    %v1148 = vld [vmem:[%s1147] sm:$0xff]
    %v1150 = vsel %vm133, %v1141, 0
    %1152 = vmatprep.subr.mxu0 0.0
    %1153 = vmatpush1.msra.mxu0 %v94
    %1154 = vmatprep.subr.mxu0 0.0
    %1155 = vmatpush1.msra.mxu0 %v95
    %1156 = vmatprep.subr.mxu0 0.0
    %1157 = vmatpush1.msra.mxu0 %v96
    %1158 = vmatprep.subr.mxu0 0.0
    %1159 = vmatpush1.msra.mxu0 %v97
    %1160 = vmatprep.subr.mxu0 0.0
    %1161 = vmatpush1.msra.mxu0 0.0
    %1162 = vmatprep.subr.mxu0 0.0
    %1163 = vmatpush1.msra.mxu0 0.0
    %1164 = vmatprep.subr.mxu0 0.0
    %1165 = vmatpush1.msra.mxu0 0.0
    %1166 = vmatprep.subr.mxu0 0.0
    %1167 = vmatpush1.msra.mxu0 0.0
    %1168 = vmatprep.subr.mxu0 0.0
    %1169 = vmatpush1.msra.mxu0 0.0
    %1170 = vmatprep.subr.mxu0 0.0
    %1171 = vmatpush1.msra.mxu0 0.0
    %1172 = vmatprep.subr.mxu0 0.0
    %1173 = vmatpush1.msra.mxu0 0.0
    %1174 = vmatprep.subr.mxu0 0.0
    %1175 = vmatpush1.msra.mxu0 0.0
    %1176 = vmatprep.subr.mxu0 0.0
    %1177 = vmatpush1.msra.mxu0 0.0
    %1178 = vmatprep.subr.mxu0 0.0
    %1179 = vmatpush1.msra.mxu0 0.0
    %1180 = vmatprep.subr.mxu0 0.0
    %1181 = vmatpush1.msra.mxu0 0.0
    %1182 = vmatprep.subr.mxu0 0.0
    %1183 = vmatpush1.msra.mxu0 0.0
    %1184 = vmatprep.subr.mxu0 0.0
    %1185 = vmatpush1.msra.mxu0 0.0
    %1186 = vmatprep.subr.mxu0 0.0
    %1187 = vmatpush1.msra.mxu0 0.0
    %1188 = vmatprep.subr.mxu0 0.0
    %1189 = vmatpush1.msra.mxu0 0.0
    %1190 = vmatprep.subr.mxu0 0.0
    %1191 = vmatpush1.msra.mxu0 0.0
    %1192 = vmatprep.subr.mxu0 0.0
    %1193 = vmatpush1.msra.mxu0 0.0
    %1194 = vmatprep.subr.mxu0 0.0
    %1195 = vmatpush1.msra.mxu0 0.0
    %1196 = vmatprep.subr.mxu0 0.0
    %1197 = vmatpush1.msra.mxu0 0.0
    %1198 = vmatprep.subr.mxu0 0.0
    %1199 = vmatpush1.msra.mxu0 0.0
    %1200 = vmatprep.subr.mxu0 0.0
    %1201 = vmatpush1.msra.mxu0 0.0
    %1202 = vmatprep.subr.mxu0 0.0
    %1203 = vmatpush1.msra.mxu0 0.0
    %1204 = vmatprep.subr.mxu0 0.0
    %1205 = vmatpush1.msra.mxu0 0.0
    %1206 = vmatprep.subr.mxu0 0.0
    %1207 = vmatpush1.msra.mxu0 0.0
    %1208 = vmatprep.subr.mxu0 0.0
    %1209 = vmatpush1.msra.mxu0 0.0
    %1210 = vmatprep.subr.mxu0 0.0
    %1211 = vmatpush1.msra.mxu0 0.0
    %1212 = vmatprep.subr.mxu0 0.0
    %1213 = vmatpush1.msra.mxu0 0.0
    %1214 = vmatprep.subr.mxu0 0.0
    %1215 = vmatpush1.msra.mxu0 0.0
    %1216 = vmatprep.mubr.f32.mxu0 0.0
    %1217 = vmatmul.mubr.f32.gmra.mrb[0].mxu0 %v1150
    %v1218 = vpop.f32.mrb[0].mxu0
    %v1219 = vadd.f32 0.0, %v1218
    %v1220 = vpop.f32.mrb[0].mxu0
    %1221 = vdwg.mxu0
    %v1222 = vadd.f32 %v1144, %v1219
    %v1223 = vxor.u32 %v1222, 2147483648
    %v1224 = vmul.f32 %v1223, 1.442695
    %v1225 = vpow.pop %v1224
    %v1226 = vadd.f32 %v1225, 1.0
    %v1227 = vrcp.pop %v1226
    %v1228 = vmul.f32 1.0, %v1227
    %1229 = vmatprep.subr.mxu0 0.0
    %1230 = vmatpush1.msra.mxu0 %v99
    %1231 = vmatprep.subr.mxu0 0.0
    %1232 = vmatpush1.msra.mxu0 %v100
    %1233 = vmatprep.subr.mxu0 0.0
    %1234 = vmatpush1.msra.mxu0 %v101
    %1235 = vmatprep.subr.mxu0 0.0
    %1236 = vmatpush1.msra.mxu0 %v102
    %1237 = vmatprep.subr.mxu0 0.0
    %1238 = vmatpush1.msra.mxu0 0.0
    %1239 = vmatprep.subr.mxu0 0.0
    %1240 = vmatpush1.msra.mxu0 0.0
    %1241 = vmatprep.subr.mxu0 0.0
    %1242 = vmatpush1.msra.mxu0 0.0
    %1243 = vmatprep.subr.mxu0 0.0
    %1244 = vmatpush1.msra.mxu0 0.0
    %1245 = vmatprep.subr.mxu0 0.0
    %1246 = vmatpush1.msra.mxu0 0.0
    %1247 = vmatprep.subr.mxu0 0.0
    %1248 = vmatpush1.msra.mxu0 0.0
    %1249 = vmatprep.subr.mxu0 0.0
    %1250 = vmatpush1.msra.mxu0 0.0
    %1251 = vmatprep.subr.mxu0 0.0
    %1252 = vmatpush1.msra.mxu0 0.0
    %1253 = vmatprep.subr.mxu0 0.0
    %1254 = vmatpush1.msra.mxu0 0.0
    %1255 = vmatprep.subr.mxu0 0.0
    %1256 = vmatpush1.msra.mxu0 0.0
    %1257 = vmatprep.subr.mxu0 0.0
    %1258 = vmatpush1.msra.mxu0 0.0
    %1259 = vmatprep.subr.mxu0 0.0
    %1260 = vmatpush1.msra.mxu0 0.0
    %1261 = vmatprep.subr.mxu0 0.0
    %1262 = vmatpush1.msra.mxu0 0.0
    %1263 = vmatprep.subr.mxu0 0.0
    %1264 = vmatpush1.msra.mxu0 0.0
    %1265 = vmatprep.subr.mxu0 0.0
    %1266 = vmatpush1.msra.mxu0 0.0
    %1267 = vmatprep.subr.mxu0 0.0
    %1268 = vmatpush1.msra.mxu0 0.0
    %1269 = vmatprep.subr.mxu0 0.0
    %1270 = vmatpush1.msra.mxu0 0.0
    %1271 = vmatprep.subr.mxu0 0.0
    %1272 = vmatpush1.msra.mxu0 0.0
    %1273 = vmatprep.subr.mxu0 0.0
    %1274 = vmatpush1.msra.mxu0 0.0
    %1275 = vmatprep.subr.mxu0 0.0
    %1276 = vmatpush1.msra.mxu0 0.0
    %1277 = vmatprep.subr.mxu0 0.0
    %1278 = vmatpush1.msra.mxu0 0.0
    %1279 = vmatprep.subr.mxu0 0.0
    %1280 = vmatpush1.msra.mxu0 0.0
    %1281 = vmatprep.subr.mxu0 0.0
    %1282 = vmatpush1.msra.mxu0 0.0
    %1283 = vmatprep.subr.mxu0 0.0
    %1284 = vmatpush1.msra.mxu0 0.0
    %1285 = vmatprep.subr.mxu0 0.0
    %1286 = vmatpush1.msra.mxu0 0.0
    %1287 = vmatprep.subr.mxu0 0.0
    %1288 = vmatpush1.msra.mxu0 0.0
    %1289 = vmatprep.subr.mxu0 0.0
    %1290 = vmatpush1.msra.mxu0 0.0
    %1291 = vmatprep.subr.mxu0 0.0
    %1292 = vmatpush1.msra.mxu0 0.0
    %1293 = vmatprep.mubr.f32.mxu0 0.0
    %1294 = vmatmul.mubr.f32.gmra.mrb[0].mxu0 %v1150
    %v1295 = vpop.f32.mrb[0].mxu0
    %v1296 = vadd.f32 0.0, %v1295
    %v1297 = vpop.f32.mrb[0].mxu0
    %1298 = vdwg.mxu0
    %v1299 = vadd.f32 %v1146, %v1296
    %v1300 = vxor.u32 %v1299, 2147483648
    %v1301 = vmul.f32 %v1300, 1.442695
    %v1302 = vpow.pop %v1301
    %v1303 = vadd.f32 %v1302, 1.0
    %v1304 = vrcp.pop %v1303
    %v1305 = vmul.f32 1.0, %v1304
    %1306 = vmatprep.subr.mxu0 0.0
    %1307 = vmatpush1.msra.mxu0 %v104
    %1308 = vmatprep.subr.mxu0 0.0
    %1309 = vmatpush1.msra.mxu0 %v105
    %1310 = vmatprep.subr.mxu0 0.0
    %1311 = vmatpush1.msra.mxu0 %v106
    %1312 = vmatprep.subr.mxu0 0.0
    %1313 = vmatpush1.msra.mxu0 %v107
    %1314 = vmatprep.subr.mxu0 0.0
    %1315 = vmatpush1.msra.mxu0 0.0
    %1316 = vmatprep.subr.mxu0 0.0
    %1317 = vmatpush1.msra.mxu0 0.0
    %1318 = vmatprep.subr.mxu0 0.0
    %1319 = vmatpush1.msra.mxu0 0.0
    %1320 = vmatprep.subr.mxu0 0.0
    %1321 = vmatpush1.msra.mxu0 0.0
    %1322 = vmatprep.subr.mxu0 0.0
    %1323 = vmatpush1.msra.mxu0 0.0
    %1324 = vmatprep.subr.mxu0 0.0
    %1325 = vmatpush1.msra.mxu0 0.0
    %1326 = vmatprep.subr.mxu0 0.0
    %1327 = vmatpush1.msra.mxu0 0.0
    %1328 = vmatprep.subr.mxu0 0.0
    %1329 = vmatpush1.msra.mxu0 0.0
    %1330 = vmatprep.subr.mxu0 0.0
    %1331 = vmatpush1.msra.mxu0 0.0
    %1332 = vmatprep.subr.mxu0 0.0
    %1333 = vmatpush1.msra.mxu0 0.0
    %1334 = vmatprep.subr.mxu0 0.0
    %1335 = vmatpush1.msra.mxu0 0.0
    %1336 = vmatprep.subr.mxu0 0.0
    %1337 = vmatpush1.msra.mxu0 0.0
    %1338 = vmatprep.subr.mxu0 0.0
    %1339 = vmatpush1.msra.mxu0 0.0
    %1340 = vmatprep.subr.mxu0 0.0
    %1341 = vmatpush1.msra.mxu0 0.0
    %1342 = vmatprep.subr.mxu0 0.0
    %1343 = vmatpush1.msra.mxu0 0.0
    %1344 = vmatprep.subr.mxu0 0.0
    %1345 = vmatpush1.msra.mxu0 0.0
    %1346 = vmatprep.subr.mxu0 0.0
    %1347 = vmatpush1.msra.mxu0 0.0
    %1348 = vmatprep.subr.mxu0 0.0
    %1349 = vmatpush1.msra.mxu0 0.0
    %1350 = vmatprep.subr.mxu0 0.0
    %1351 = vmatpush1.msra.mxu0 0.0
    %1352 = vmatprep.subr.mxu0 0.0
    %1353 = vmatpush1.msra.mxu0 0.0
    %1354 = vmatprep.subr.mxu0 0.0
    %1355 = vmatpush1.msra.mxu0 0.0
    %1356 = vmatprep.subr.mxu0 0.0
    %1357 = vmatpush1.msra.mxu0 0.0
    %1358 = vmatprep.subr.mxu0 0.0
    %1359 = vmatpush1.msra.mxu0 0.0
    %1360 = vmatprep.subr.mxu0 0.0
    %1361 = vmatpush1.msra.mxu0 0.0
    %1362 = vmatprep.subr.mxu0 0.0
    %1363 = vmatpush1.msra.mxu0 0.0
    %1364 = vmatprep.subr.mxu0 0.0
    %1365 = vmatpush1.msra.mxu0 0.0
    %1366 = vmatprep.subr.mxu0 0.0
    %1367 = vmatpush1.msra.mxu0 0.0
    %1368 = vmatprep.subr.mxu0 0.0
    %1369 = vmatpush1.msra.mxu0 0.0
    %1370 = vmatprep.mubr.f32.mxu0 0.0
    %1371 = vmatmul.mubr.f32.gmra.mrb[0].mxu0 %v1150
    %v1372 = vpop.f32.mrb[0].mxu0
    %v1373 = vadd.f32 %v295, %v1372
    %v1374 = vpop.f32.mrb[0].mxu0
    %1375 = vdwg.mxu0
    %v1376 = vmul.f32 %v1228, %v1373
    %v1377 = vadd.f32 %v1148, %v1376
    %v1378 = vtanh.pop %v1377
    %v1379 = vsub.f32 1.0, %v1305
    %v1380 = vmul.f32 %v1379, %v1378
    %v1381 = vmul.f32 %v1305, %v1141
    %v1382 = vadd.f32 %v1380, %v1381
    %s1383 = scalar_lea.vmem [#allocation7], 48
    %v1384 = vld [vmem:[%s1383] sm:$0xff]
    %s1385 = scalar_lea.vmem [#allocation7], 56
    %v1386 = vld [vmem:[%s1385] sm:$0xff]
    %s1387 = scalar_lea.vmem [#allocation7], 64
    %v1388 = vld [vmem:[%s1387] sm:$0xff]
    %v1390 = vsel %vm133, %v1142, 0
    %1392 = vmatprep.subr.mxu0 0.0
    %1393 = vmatpush1.msra.mxu0 %v108
    %1394 = vmatprep.subr.mxu0 0.0
    %1395 = vmatpush1.msra.mxu0 %v109
    %1396 = vmatprep.subr.mxu0 0.0
    %1397 = vmatpush1.msra.mxu0 %v110
    %1398 = vmatprep.subr.mxu0 0.0
    %1399 = vmatpush1.msra.mxu0 %v111
    %1400 = vmatprep.subr.mxu0 0.0
    %1401 = vmatpush1.msra.mxu0 0.0
    %1402 = vmatprep.subr.mxu0 0.0
    %1403 = vmatpush1.msra.mxu0 0.0
    %1404 = vmatprep.subr.mxu0 0.0
    %1405 = vmatpush1.msra.mxu0 0.0
    %1406 = vmatprep.subr.mxu0 0.0
    %1407 = vmatpush1.msra.mxu0 0.0
    %1408 = vmatprep.subr.mxu0 0.0
    %1409 = vmatpush1.msra.mxu0 0.0
    %1410 = vmatprep.subr.mxu0 0.0
    %1411 = vmatpush1.msra.mxu0 0.0
    %1412 = vmatprep.subr.mxu0 0.0
    %1413 = vmatpush1.msra.mxu0 0.0
    %1414 = vmatprep.subr.mxu0 0.0
    %1415 = vmatpush1.msra.mxu0 0.0
    %1416 = vmatprep.subr.mxu0 0.0
    %1417 = vmatpush1.msra.mxu0 0.0
    %1418 = vmatprep.subr.mxu0 0.0
    %1419 = vmatpush1.msra.mxu0 0.0
    %1420 = vmatprep.subr.mxu0 0.0
    %1421 = vmatpush1.msra.mxu0 0.0
    %1422 = vmatprep.subr.mxu0 0.0
    %1423 = vmatpush1.msra.mxu0 0.0
    %1424 = vmatprep.subr.mxu0 0.0
    %1425 = vmatpush1.msra.mxu0 0.0
    %1426 = vmatprep.subr.mxu0 0.0
    %1427 = vmatpush1.msra.mxu0 0.0
    %1428 = vmatprep.subr.mxu0 0.0
    %1429 = vmatpush1.msra.mxu0 0.0
    %1430 = vmatprep.subr.mxu0 0.0
    %1431 = vmatpush1.msra.mxu0 0.0
    %1432 = vmatprep.subr.mxu0 0.0
    %1433 = vmatpush1.msra.mxu0 0.0
    %1434 = vmatprep.subr.mxu0 0.0
    %1435 = vmatpush1.msra.mxu0 0.0
    %1436 = vmatprep.subr.mxu0 0.0
    %1437 = vmatpush1.msra.mxu0 0.0
    %1438 = vmatprep.subr.mxu0 0.0
    %1439 = vmatpush1.msra.mxu0 0.0
    %1440 = vmatprep.subr.mxu0 0.0
    %1441 = vmatpush1.msra.mxu0 0.0
    %1442 = vmatprep.subr.mxu0 0.0
    %1443 = vmatpush1.msra.mxu0 0.0
    %1444 = vmatprep.subr.mxu0 0.0
    %1445 = vmatpush1.msra.mxu0 0.0
    %1446 = vmatprep.subr.mxu0 0.0
    %1447 = vmatpush1.msra.mxu0 0.0
    %1448 = vmatprep.subr.mxu0 0.0
    %1449 = vmatpush1.msra.mxu0 0.0
    %1450 = vmatprep.subr.mxu0 0.0
    %1451 = vmatpush1.msra.mxu0 0.0
    %1452 = vmatprep.subr.mxu0 0.0
    %1453 = vmatpush1.msra.mxu0 0.0
    %1454 = vmatprep.subr.mxu0 0.0
    %1455 = vmatpush1.msra.mxu0 0.0
    %1456 = vmatprep.mubr.f32.mxu0 0.0
    %1457 = vmatmul.mubr.f32.gmra.mrb[0].mxu0 %v1390
    %v1458 = vpop.f32.mrb[0].mxu0
    %v1459 = vadd.f32 0.0, %v1458
    %v1460 = vpop.f32.mrb[0].mxu0
    %1461 = vdwg.mxu0
    %v1462 = vadd.f32 %v1384, %v1459
    %v1463 = vxor.u32 %v1462, 2147483648
    %v1464 = vmul.f32 %v1463, 1.442695
    %v1465 = vpow.pop %v1464
    %v1466 = vadd.f32 %v1465, 1.0
    %v1467 = vrcp.pop %v1466
    %v1468 = vmul.f32 1.0, %v1467
    %1469 = vmatprep.subr.mxu0 0.0
    %1470 = vmatpush1.msra.mxu0 %v113
    %1471 = vmatprep.subr.mxu0 0.0
    %1472 = vmatpush1.msra.mxu0 %v114
    %1473 = vmatprep.subr.mxu0 0.0
    %1474 = vmatpush1.msra.mxu0 %v115
    %1475 = vmatprep.subr.mxu0 0.0
    %1476 = vmatpush1.msra.mxu0 %v116
    %1477 = vmatprep.subr.mxu0 0.0
    %1478 = vmatpush1.msra.mxu0 0.0
    %1479 = vmatprep.subr.mxu0 0.0
    %1480 = vmatpush1.msra.mxu0 0.0
    %1481 = vmatprep.subr.mxu0 0.0
    %1482 = vmatpush1.msra.mxu0 0.0
    %1483 = vmatprep.subr.mxu0 0.0
    %1484 = vmatpush1.msra.mxu0 0.0
    %1485 = vmatprep.subr.mxu0 0.0
    %1486 = vmatpush1.msra.mxu0 0.0
    %1487 = vmatprep.subr.mxu0 0.0
    %1488 = vmatpush1.msra.mxu0 0.0
    %1489 = vmatprep.subr.mxu0 0.0
    %1490 = vmatpush1.msra.mxu0 0.0
    %1491 = vmatprep.subr.mxu0 0.0
    %1492 = vmatpush1.msra.mxu0 0.0
    %1493 = vmatprep.subr.mxu0 0.0
    %1494 = vmatpush1.msra.mxu0 0.0
    %1495 = vmatprep.subr.mxu0 0.0
    %1496 = vmatpush1.msra.mxu0 0.0
    %1497 = vmatprep.subr.mxu0 0.0
    %1498 = vmatpush1.msra.mxu0 0.0
    %1499 = vmatprep.subr.mxu0 0.0
    %1500 = vmatpush1.msra.mxu0 0.0
    %1501 = vmatprep.subr.mxu0 0.0
    %1502 = vmatpush1.msra.mxu0 0.0
    %1503 = vmatprep.subr.mxu0 0.0
    %1504 = vmatpush1.msra.mxu0 0.0
    %1505 = vmatprep.subr.mxu0 0.0
    %1506 = vmatpush1.msra.mxu0 0.0
    %1507 = vmatprep.subr.mxu0 0.0
    %1508 = vmatpush1.msra.mxu0 0.0
    %1509 = vmatprep.subr.mxu0 0.0
    %1510 = vmatpush1.msra.mxu0 0.0
    %1511 = vmatprep.subr.mxu0 0.0
    %1512 = vmatpush1.msra.mxu0 0.0
    %1513 = vmatprep.subr.mxu0 0.0
    %1514 = vmatpush1.msra.mxu0 0.0
    %1515 = vmatprep.subr.mxu0 0.0
    %1516 = vmatpush1.msra.mxu0 0.0
    %1517 = vmatprep.subr.mxu0 0.0
    %1518 = vmatpush1.msra.mxu0 0.0
    %1519 = vmatprep.subr.mxu0 0.0
    %1520 = vmatpush1.msra.mxu0 0.0
    %1521 = vmatprep.subr.mxu0 0.0
    %1522 = vmatpush1.msra.mxu0 0.0
    %1523 = vmatprep.subr.mxu0 0.0
    %1524 = vmatpush1.msra.mxu0 0.0
    %1525 = vmatprep.subr.mxu0 0.0
    %1526 = vmatpush1.msra.mxu0 0.0
    %1527 = vmatprep.subr.mxu0 0.0
    %1528 = vmatpush1.msra.mxu0 0.0
    %1529 = vmatprep.subr.mxu0 0.0
    %1530 = vmatpush1.msra.mxu0 0.0
    %1531 = vmatprep.subr.mxu0 0.0
    %1532 = vmatpush1.msra.mxu0 0.0
    %1533 = vmatprep.mubr.f32.mxu0 0.0
    %1534 = vmatmul.mubr.f32.gmra.mrb[0].mxu0 %v1390
    %v1535 = vpop.f32.mrb[0].mxu0
    %v1536 = vadd.f32 0.0, %v1535
    %v1537 = vpop.f32.mrb[0].mxu0
    %1538 = vdwg.mxu0
    %v1539 = vadd.f32 %v1386, %v1536
    %v1540 = vxor.u32 %v1539, 2147483648
    %v1541 = vmul.f32 %v1540, 1.442695
    %v1542 = vpow.pop %v1541
    %v1543 = vadd.f32 %v1542, 1.0
    %v1544 = vrcp.pop %v1543
    %v1545 = vmul.f32 1.0, %v1544
    %1546 = vmatprep.subr.mxu0 0.0
    %1547 = vmatpush1.msra.mxu0 %v118
    %1548 = vmatprep.subr.mxu0 0.0
    %1549 = vmatpush1.msra.mxu0 %v119
    %1550 = vmatprep.subr.mxu0 0.0
    %1551 = vmatpush1.msra.mxu0 %v120
    %1552 = vmatprep.subr.mxu0 0.0
    %1553 = vmatpush1.msra.mxu0 %v121
    %1554 = vmatprep.subr.mxu0 0.0
    %1555 = vmatpush1.msra.mxu0 0.0
    %1556 = vmatprep.subr.mxu0 0.0
    %1557 = vmatpush1.msra.mxu0 0.0
    %1558 = vmatprep.subr.mxu0 0.0
    %1559 = vmatpush1.msra.mxu0 0.0
    %1560 = vmatprep.subr.mxu0 0.0
    %1561 = vmatpush1.msra.mxu0 0.0
    %1562 = vmatprep.subr.mxu0 0.0
    %1563 = vmatpush1.msra.mxu0 0.0
    %1564 = vmatprep.subr.mxu0 0.0
    %1565 = vmatpush1.msra.mxu0 0.0
    %1566 = vmatprep.subr.mxu0 0.0
    %1567 = vmatpush1.msra.mxu0 0.0
    %1568 = vmatprep.subr.mxu0 0.0
    %1569 = vmatpush1.msra.mxu0 0.0
    %1570 = vmatprep.subr.mxu0 0.0
    %1571 = vmatpush1.msra.mxu0 0.0
    %1572 = vmatprep.subr.mxu0 0.0
    %1573 = vmatpush1.msra.mxu0 0.0
    %1574 = vmatprep.subr.mxu0 0.0
    %1575 = vmatpush1.msra.mxu0 0.0
    %1576 = vmatprep.subr.mxu0 0.0
    %1577 = vmatpush1.msra.mxu0 0.0
    %1578 = vmatprep.subr.mxu0 0.0
    %1579 = vmatpush1.msra.mxu0 0.0
    %1580 = vmatprep.subr.mxu0 0.0
    %1581 = vmatpush1.msra.mxu0 0.0
    %1582 = vmatprep.subr.mxu0 0.0
    %1583 = vmatpush1.msra.mxu0 0.0
    %1584 = vmatprep.subr.mxu0 0.0
    %1585 = vmatpush1.msra.mxu0 0.0
    %1586 = vmatprep.subr.mxu0 0.0
    %1587 = vmatpush1.msra.mxu0 0.0
    %1588 = vmatprep.subr.mxu0 0.0
    %1589 = vmatpush1.msra.mxu0 0.0
    %1590 = vmatprep.subr.mxu0 0.0
    %1591 = vmatpush1.msra.mxu0 0.0
    %1592 = vmatprep.subr.mxu0 0.0
    %1593 = vmatpush1.msra.mxu0 0.0
    %1594 = vmatprep.subr.mxu0 0.0
    %1595 = vmatpush1.msra.mxu0 0.0
    %1596 = vmatprep.subr.mxu0 0.0
    %1597 = vmatpush1.msra.mxu0 0.0
    %1598 = vmatprep.subr.mxu0 0.0
    %1599 = vmatpush1.msra.mxu0 0.0
    %1600 = vmatprep.subr.mxu0 0.0
    %1601 = vmatpush1.msra.mxu0 0.0
    %1602 = vmatprep.subr.mxu0 0.0
    %1603 = vmatpush1.msra.mxu0 0.0
    %1604 = vmatprep.subr.mxu0 0.0
    %1605 = vmatpush1.msra.mxu0 0.0
    %1606 = vmatprep.subr.mxu0 0.0
    %1607 = vmatpush1.msra.mxu0 0.0
    %1608 = vmatprep.subr.mxu0 0.0
    %1609 = vmatpush1.msra.mxu0 0.0
    %1610 = vmatprep.mubr.f32.mxu0 0.0
    %1611 = vmatmul.mubr.f32.gmra.mrb[0].mxu0 %v1390
    %v1612 = vpop.f32.mrb[0].mxu0
    %v1613 = vadd.f32 %v540, %v1612
    %v1614 = vpop.f32.mrb[0].mxu0
    %1615 = vdwg.mxu0
    %v1616 = vmul.f32 %v1468, %v1613
    %v1617 = vadd.f32 %v1388, %v1616
    %v1618 = vtanh.pop %v1617
    %v1619 = vsub.f32 1.0, %v1545
    %v1620 = vmul.f32 %v1619, %v1618
    %v1621 = vmul.f32 %v1545, %v1142
    %v1622 = vadd.f32 %v1620, %v1621
    %v1623 = vstv %s1139
    %vm1624 = vcmp.lt.s32.totalorder %v1623, %v93
    %v1625 = vsel %vm1624, 1, 0
    %1626 = vset.pattern.permute.xlu0 0
    %1627 = vperm.xlu0 %1626, %v1625
    %v1628 = vpop.permute.xlu0 %1627
    %vm1629 = vcmp.eq.s32.totalorder %v1628, 1
    %v1630 = vsel %vm1629, %v1382, %v1141
    %1631 = vst.msk [vmem:[#allocation2] sm:$0xff] %vm133, %v1630
    %v1632 = vstv %s1140
    %vm1633 = vcmp.lt.s32.totalorder %v1632, %v93
    %v1634 = vsel %vm1633, 1, 0
    %1635 = vset.pattern.permute.xlu0 0
    %1636 = vperm.xlu0 %1635, %v1634
    %v1637 = vpop.permute.xlu0 %1636
    %vm1638 = vcmp.eq.s32.totalorder %v1637, 1
    %v1639 = vsel %vm1638, %v1622, %v1142
    %1640 = vst.msk [vmem:[#allocation3] sm:$0xff] %vm133, %v1639
    %s1641 = sadd.s32 %s82, 3
    %s1642 = ssub.s32 4, %s82
    %v1643 = vld [vmem:[#allocation2] sm:$0xff]
    %v1644 = vld [vmem:[#allocation3] sm:$0xff]
    %s1645 = scalar_lea.vmem [#allocation4], 72
    %v1646 = vld [vmem:[%s1645] sm:$0xff]
    %s1647 = scalar_lea.vmem [#allocation4], 80
    %v1648 = vld [vmem:[%s1647] sm:$0xff]
    %s1649 = scalar_lea.vmem [#allocation4], 88
    %v1650 = vld [vmem:[%s1649] sm:$0xff]
    %v1652 = vsel %vm133, %v1643, 0
    %1654 = vmatprep.subr.mxu0 0.0
    %1655 = vmatpush1.msra.mxu0 %v94
    %1656 = vmatprep.subr.mxu0 0.0
    %1657 = vmatpush1.msra.mxu0 %v95
    %1658 = vmatprep.subr.mxu0 0.0
    %1659 = vmatpush1.msra.mxu0 %v96
    %1660 = vmatprep.subr.mxu0 0.0
    %1661 = vmatpush1.msra.mxu0 %v97
    %1662 = vmatprep.subr.mxu0 0.0
    %1663 = vmatpush1.msra.mxu0 0.0
    %1664 = vmatprep.subr.mxu0 0.0
    %1665 = vmatpush1.msra.mxu0 0.0
    %1666 = vmatprep.subr.mxu0 0.0
    %1667 = vmatpush1.msra.mxu0 0.0
    %1668 = vmatprep.subr.mxu0 0.0
    %1669 = vmatpush1.msra.mxu0 0.0
    %1670 = vmatprep.subr.mxu0 0.0
    %1671 = vmatpush1.msra.mxu0 0.0
    %1672 = vmatprep.subr.mxu0 0.0
    %1673 = vmatpush1.msra.mxu0 0.0
    %1674 = vmatprep.subr.mxu0 0.0
    %1675 = vmatpush1.msra.mxu0 0.0
    %1676 = vmatprep.subr.mxu0 0.0
    %1677 = vmatpush1.msra.mxu0 0.0
    %1678 = vmatprep.subr.mxu0 0.0
    %1679 = vmatpush1.msra.mxu0 0.0
    %1680 = vmatprep.subr.mxu0 0.0
    %1681 = vmatpush1.msra.mxu0 0.0
    %1682 = vmatprep.subr.mxu0 0.0
    %1683 = vmatpush1.msra.mxu0 0.0
    %1684 = vmatprep.subr.mxu0 0.0
    %1685 = vmatpush1.msra.mxu0 0.0
    %1686 = vmatprep.subr.mxu0 0.0
    %1687 = vmatpush1.msra.mxu0 0.0
    %1688 = vmatprep.subr.mxu0 0.0
    %1689 = vmatpush1.msra.mxu0 0.0
    %1690 = vmatprep.subr.mxu0 0.0
    %1691 = vmatpush1.msra.mxu0 0.0
    %1692 = vmatprep.subr.mxu0 0.0
    %1693 = vmatpush1.msra.mxu0 0.0
    %1694 = vmatprep.subr.mxu0 0.0
    %1695 = vmatpush1.msra.mxu0 0.0
    %1696 = vmatprep.subr.mxu0 0.0
    %1697 = vmatpush1.msra.mxu0 0.0
    %1698 = vmatprep.subr.mxu0 0.0
    %1699 = vmatpush1.msra.mxu0 0.0
    %1700 = vmatprep.subr.mxu0 0.0
    %1701 = vmatpush1.msra.mxu0 0.0
    %1702 = vmatprep.subr.mxu0 0.0
    %1703 = vmatpush1.msra.mxu0 0.0
    %1704 = vmatprep.subr.mxu0 0.0
    %1705 = vmatpush1.msra.mxu0 0.0
    %1706 = vmatprep.subr.mxu0 0.0
    %1707 = vmatpush1.msra.mxu0 0.0
    %1708 = vmatprep.subr.mxu0 0.0
    %1709 = vmatpush1.msra.mxu0 0.0
    %1710 = vmatprep.subr.mxu0 0.0
    %1711 = vmatpush1.msra.mxu0 0.0
    %1712 = vmatprep.subr.mxu0 0.0
    %1713 = vmatpush1.msra.mxu0 0.0
    %1714 = vmatprep.subr.mxu0 0.0
    %1715 = vmatpush1.msra.mxu0 0.0
    %1716 = vmatprep.subr.mxu0 0.0
    %1717 = vmatpush1.msra.mxu0 0.0
    %1718 = vmatprep.mubr.f32.mxu0 0.0
    %1719 = vmatmul.mubr.f32.gmra.mrb[0].mxu0 %v1652
    %v1720 = vpop.f32.mrb[0].mxu0
    %v1721 = vadd.f32 0.0, %v1720
    %v1722 = vpop.f32.mrb[0].mxu0
    %1723 = vdwg.mxu0
    %v1724 = vadd.f32 %v1646, %v1721
    %v1725 = vxor.u32 %v1724, 2147483648
    %v1726 = vmul.f32 %v1725, 1.442695
    %v1727 = vpow.pop %v1726
    %v1728 = vadd.f32 %v1727, 1.0
    %v1729 = vrcp.pop %v1728
    %v1730 = vmul.f32 1.0, %v1729
    %1731 = vmatprep.subr.mxu0 0.0
    %1732 = vmatpush1.msra.mxu0 %v99
    %1733 = vmatprep.subr.mxu0 0.0
    %1734 = vmatpush1.msra.mxu0 %v100
    %1735 = vmatprep.subr.mxu0 0.0
    %1736 = vmatpush1.msra.mxu0 %v101
    %1737 = vmatprep.subr.mxu0 0.0
    %1738 = vmatpush1.msra.mxu0 %v102
    %1739 = vmatprep.subr.mxu0 0.0
    %1740 = vmatpush1.msra.mxu0 0.0
    %1741 = vmatprep.subr.mxu0 0.0
    %1742 = vmatpush1.msra.mxu0 0.0
    %1743 = vmatprep.subr.mxu0 0.0
    %1744 = vmatpush1.msra.mxu0 0.0
    %1745 = vmatprep.subr.mxu0 0.0
    %1746 = vmatpush1.msra.mxu0 0.0
    %1747 = vmatprep.subr.mxu0 0.0
    %1748 = vmatpush1.msra.mxu0 0.0
    %1749 = vmatprep.subr.mxu0 0.0
    %1750 = vmatpush1.msra.mxu0 0.0
    %1751 = vmatprep.subr.mxu0 0.0
    %1752 = vmatpush1.msra.mxu0 0.0
    %1753 = vmatprep.subr.mxu0 0.0
    %1754 = vmatpush1.msra.mxu0 0.0
    %1755 = vmatprep.subr.mxu0 0.0
    %1756 = vmatpush1.msra.mxu0 0.0
    %1757 = vmatprep.subr.mxu0 0.0
    %1758 = vmatpush1.msra.mxu0 0.0
    %1759 = vmatprep.subr.mxu0 0.0
    %1760 = vmatpush1.msra.mxu0 0.0
    %1761 = vmatprep.subr.mxu0 0.0
    %1762 = vmatpush1.msra.mxu0 0.0
    %1763 = vmatprep.subr.mxu0 0.0
    %1764 = vmatpush1.msra.mxu0 0.0
    %1765 = vmatprep.subr.mxu0 0.0
    %1766 = vmatpush1.msra.mxu0 0.0
    %1767 = vmatprep.subr.mxu0 0.0
    %1768 = vmatpush1.msra.mxu0 0.0
    %1769 = vmatprep.subr.mxu0 0.0
    %1770 = vmatpush1.msra.mxu0 0.0
    %1771 = vmatprep.subr.mxu0 0.0
    %1772 = vmatpush1.msra.mxu0 0.0
    %1773 = vmatprep.subr.mxu0 0.0
    %1774 = vmatpush1.msra.mxu0 0.0
    %1775 = vmatprep.subr.mxu0 0.0
    %1776 = vmatpush1.msra.mxu0 0.0
    %1777 = vmatprep.subr.mxu0 0.0
    %1778 = vmatpush1.msra.mxu0 0.0
    %1779 = vmatprep.subr.mxu0 0.0
    %1780 = vmatpush1.msra.mxu0 0.0
    %1781 = vmatprep.subr.mxu0 0.0
    %1782 = vmatpush1.msra.mxu0 0.0
    %1783 = vmatprep.subr.mxu0 0.0
    %1784 = vmatpush1.msra.mxu0 0.0
    %1785 = vmatprep.subr.mxu0 0.0
    %1786 = vmatpush1.msra.mxu0 0.0
    %1787 = vmatprep.subr.mxu0 0.0
    %1788 = vmatpush1.msra.mxu0 0.0
    %1789 = vmatprep.subr.mxu0 0.0
    %1790 = vmatpush1.msra.mxu0 0.0
    %1791 = vmatprep.subr.mxu0 0.0
    %1792 = vmatpush1.msra.mxu0 0.0
    %1793 = vmatprep.subr.mxu0 0.0
    %1794 = vmatpush1.msra.mxu0 0.0
    %1795 = vmatprep.mubr.f32.mxu0 0.0
    %1796 = vmatmul.mubr.f32.gmra.mrb[0].mxu0 %v1652
    %v1797 = vpop.f32.mrb[0].mxu0
    %v1798 = vadd.f32 0.0, %v1797
    %v1799 = vpop.f32.mrb[0].mxu0
    %1800 = vdwg.mxu0
    %v1801 = vadd.f32 %v1648, %v1798
    %v1802 = vxor.u32 %v1801, 2147483648
    %v1803 = vmul.f32 %v1802, 1.442695
    %v1804 = vpow.pop %v1803
    %v1805 = vadd.f32 %v1804, 1.0
    %v1806 = vrcp.pop %v1805
    %v1807 = vmul.f32 1.0, %v1806
    %1808 = vmatprep.subr.mxu0 0.0
    %1809 = vmatpush1.msra.mxu0 %v104
    %1810 = vmatprep.subr.mxu0 0.0
    %1811 = vmatpush1.msra.mxu0 %v105
    %1812 = vmatprep.subr.mxu0 0.0
    %1813 = vmatpush1.msra.mxu0 %v106
    %1814 = vmatprep.subr.mxu0 0.0
    %1815 = vmatpush1.msra.mxu0 %v107
    %1816 = vmatprep.subr.mxu0 0.0
    %1817 = vmatpush1.msra.mxu0 0.0
    %1818 = vmatprep.subr.mxu0 0.0
    %1819 = vmatpush1.msra.mxu0 0.0
    %1820 = vmatprep.subr.mxu0 0.0
    %1821 = vmatpush1.msra.mxu0 0.0
    %1822 = vmatprep.subr.mxu0 0.0
    %1823 = vmatpush1.msra.mxu0 0.0
    %1824 = vmatprep.subr.mxu0 0.0
    %1825 = vmatpush1.msra.mxu0 0.0
    %1826 = vmatprep.subr.mxu0 0.0
    %1827 = vmatpush1.msra.mxu0 0.0
    %1828 = vmatprep.subr.mxu0 0.0
    %1829 = vmatpush1.msra.mxu0 0.0
    %1830 = vmatprep.subr.mxu0 0.0
    %1831 = vmatpush1.msra.mxu0 0.0
    %1832 = vmatprep.subr.mxu0 0.0
    %1833 = vmatpush1.msra.mxu0 0.0
    %1834 = vmatprep.subr.mxu0 0.0
    %1835 = vmatpush1.msra.mxu0 0.0
    %1836 = vmatprep.subr.mxu0 0.0
    %1837 = vmatpush1.msra.mxu0 0.0
    %1838 = vmatprep.subr.mxu0 0.0
    %1839 = vmatpush1.msra.mxu0 0.0
    %1840 = vmatprep.subr.mxu0 0.0
    %1841 = vmatpush1.msra.mxu0 0.0
    %1842 = vmatprep.subr.mxu0 0.0
    %1843 = vmatpush1.msra.mxu0 0.0
    %1844 = vmatprep.subr.mxu0 0.0
    %1845 = vmatpush1.msra.mxu0 0.0
    %1846 = vmatprep.subr.mxu0 0.0
    %1847 = vmatpush1.msra.mxu0 0.0
    %1848 = vmatprep.subr.mxu0 0.0
    %1849 = vmatpush1.msra.mxu0 0.0
    %1850 = vmatprep.subr.mxu0 0.0
    %1851 = vmatpush1.msra.mxu0 0.0
    %1852 = vmatprep.subr.mxu0 0.0
    %1853 = vmatpush1.msra.mxu0 0.0
    %1854 = vmatprep.subr.mxu0 0.0
    %1855 = vmatpush1.msra.mxu0 0.0
    %1856 = vmatprep.subr.mxu0 0.0
    %1857 = vmatpush1.msra.mxu0 0.0
    %1858 = vmatprep.subr.mxu0 0.0
    %1859 = vmatpush1.msra.mxu0 0.0
    %1860 = vmatprep.subr.mxu0 0.0
    %1861 = vmatpush1.msra.mxu0 0.0
    %1862 = vmatprep.subr.mxu0 0.0
    %1863 = vmatpush1.msra.mxu0 0.0
    %1864 = vmatprep.subr.mxu0 0.0
    %1865 = vmatpush1.msra.mxu0 0.0
    %1866 = vmatprep.subr.mxu0 0.0
    %1867 = vmatpush1.msra.mxu0 0.0
    %1868 = vmatprep.subr.mxu0 0.0
    %1869 = vmatpush1.msra.mxu0 0.0
    %1870 = vmatprep.subr.mxu0 0.0
    %1871 = vmatpush1.msra.mxu0 0.0
    %1872 = vmatprep.mubr.f32.mxu0 0.0
    %1873 = vmatmul.mubr.f32.gmra.mrb[0].mxu0 %v1652
    %v1874 = vpop.f32.mrb[0].mxu0
    %v1875 = vadd.f32 %v295, %v1874
    %v1876 = vpop.f32.mrb[0].mxu0
    %1877 = vdwg.mxu0
    %v1878 = vmul.f32 %v1730, %v1875
    %v1879 = vadd.f32 %v1650, %v1878
    %v1880 = vtanh.pop %v1879
    %v1881 = vsub.f32 1.0, %v1807
    %v1882 = vmul.f32 %v1881, %v1880
    %v1883 = vmul.f32 %v1807, %v1643
    %v1884 = vadd.f32 %v1882, %v1883
    %s1885 = scalar_lea.vmem [#allocation7], 72
    %v1886 = vld [vmem:[%s1885] sm:$0xff]
    %s1887 = scalar_lea.vmem [#allocation7], 80
    %v1888 = vld [vmem:[%s1887] sm:$0xff]
    %s1889 = scalar_lea.vmem [#allocation7], 88
    %v1890 = vld [vmem:[%s1889] sm:$0xff]
    %v1892 = vsel %vm133, %v1644, 0
    %1894 = vmatprep.subr.mxu0 0.0
    %1895 = vmatpush1.msra.mxu0 %v108
    %1896 = vmatprep.subr.mxu0 0.0
    %1897 = vmatpush1.msra.mxu0 %v109
    %1898 = vmatprep.subr.mxu0 0.0
    %1899 = vmatpush1.msra.mxu0 %v110
    %1900 = vmatprep.subr.mxu0 0.0
    %1901 = vmatpush1.msra.mxu0 %v111
    %1902 = vmatprep.subr.mxu0 0.0
    %1903 = vmatpush1.msra.mxu0 0.0
    %1904 = vmatprep.subr.mxu0 0.0
    %1905 = vmatpush1.msra.mxu0 0.0
    %1906 = vmatprep.subr.mxu0 0.0
    %1907 = vmatpush1.msra.mxu0 0.0
    %1908 = vmatprep.subr.mxu0 0.0
    %1909 = vmatpush1.msra.mxu0 0.0
    %1910 = vmatprep.subr.mxu0 0.0
    %1911 = vmatpush1.msra.mxu0 0.0
    %1912 = vmatprep.subr.mxu0 0.0
    %1913 = vmatpush1.msra.mxu0 0.0
    %1914 = vmatprep.subr.mxu0 0.0
    %1915 = vmatpush1.msra.mxu0 0.0
    %1916 = vmatprep.subr.mxu0 0.0
    %1917 = vmatpush1.msra.mxu0 0.0
    %1918 = vmatprep.subr.mxu0 0.0
    %1919 = vmatpush1.msra.mxu0 0.0
    %1920 = vmatprep.subr.mxu0 0.0
    %1921 = vmatpush1.msra.mxu0 0.0
    %1922 = vmatprep.subr.mxu0 0.0
    %1923 = vmatpush1.msra.mxu0 0.0
    %1924 = vmatprep.subr.mxu0 0.0
    %1925 = vmatpush1.msra.mxu0 0.0
    %1926 = vmatprep.subr.mxu0 0.0
    %1927 = vmatpush1.msra.mxu0 0.0
    %1928 = vmatprep.subr.mxu0 0.0
    %1929 = vmatpush1.msra.mxu0 0.0
    %1930 = vmatprep.subr.mxu0 0.0
    %1931 = vmatpush1.msra.mxu0 0.0
    %1932 = vmatprep.subr.mxu0 0.0
    %1933 = vmatpush1.msra.mxu0 0.0
    %1934 = vmatprep.subr.mxu0 0.0
    %1935 = vmatpush1.msra.mxu0 0.0
    %1936 = vmatprep.subr.mxu0 0.0
    %1937 = vmatpush1.msra.mxu0 0.0
    %1938 = vmatprep.subr.mxu0 0.0
    %1939 = vmatpush1.msra.mxu0 0.0
    %1940 = vmatprep.subr.mxu0 0.0
    %1941 = vmatpush1.msra.mxu0 0.0
    %1942 = vmatprep.subr.mxu0 0.0
    %1943 = vmatpush1.msra.mxu0 0.0
    %1944 = vmatprep.subr.mxu0 0.0
    %1945 = vmatpush1.msra.mxu0 0.0
    %1946 = vmatprep.subr.mxu0 0.0
    %1947 = vmatpush1.msra.mxu0 0.0
    %1948 = vmatprep.subr.mxu0 0.0
    %1949 = vmatpush1.msra.mxu0 0.0
    %1950 = vmatprep.subr.mxu0 0.0
    %1951 = vmatpush1.msra.mxu0 0.0
    %1952 = vmatprep.subr.mxu0 0.0
    %1953 = vmatpush1.msra.mxu0 0.0
    %1954 = vmatprep.subr.mxu0 0.0
    %1955 = vmatpush1.msra.mxu0 0.0
    %1956 = vmatprep.subr.mxu0 0.0
    %1957 = vmatpush1.msra.mxu0 0.0
    %1958 = vmatprep.mubr.f32.mxu0 0.0
    %1959 = vmatmul.mubr.f32.gmra.mrb[0].mxu0 %v1892
    %v1960 = vpop.f32.mrb[0].mxu0
    %v1961 = vadd.f32 0.0, %v1960
    %v1962 = vpop.f32.mrb[0].mxu0
    %1963 = vdwg.mxu0
    %v1964 = vadd.f32 %v1886, %v1961
    %v1965 = vxor.u32 %v1964, 2147483648
    %v1966 = vmul.f32 %v1965, 1.442695
    %v1967 = vpow.pop %v1966
    %v1968 = vadd.f32 %v1967, 1.0
    %v1969 = vrcp.pop %v1968
    %v1970 = vmul.f32 1.0, %v1969
    %1971 = vmatprep.subr.mxu0 0.0
    %1972 = vmatpush1.msra.mxu0 %v113
    %1973 = vmatprep.subr.mxu0 0.0
    %1974 = vmatpush1.msra.mxu0 %v114
    %1975 = vmatprep.subr.mxu0 0.0
    %1976 = vmatpush1.msra.mxu0 %v115
    %1977 = vmatprep.subr.mxu0 0.0
    %1978 = vmatpush1.msra.mxu0 %v116
    %1979 = vmatprep.subr.mxu0 0.0
    %1980 = vmatpush1.msra.mxu0 0.0
    %1981 = vmatprep.subr.mxu0 0.0
    %1982 = vmatpush1.msra.mxu0 0.0
    %1983 = vmatprep.subr.mxu0 0.0
    %1984 = vmatpush1.msra.mxu0 0.0
    %1985 = vmatprep.subr.mxu0 0.0
    %1986 = vmatpush1.msra.mxu0 0.0
    %1987 = vmatprep.subr.mxu0 0.0
    %1988 = vmatpush1.msra.mxu0 0.0
    %1989 = vmatprep.subr.mxu0 0.0
    %1990 = vmatpush1.msra.mxu0 0.0
    %1991 = vmatprep.subr.mxu0 0.0
    %1992 = vmatpush1.msra.mxu0 0.0
    %1993 = vmatprep.subr.mxu0 0.0
    %1994 = vmatpush1.msra.mxu0 0.0
    %1995 = vmatprep.subr.mxu0 0.0
    %1996 = vmatpush1.msra.mxu0 0.0
    %1997 = vmatprep.subr.mxu0 0.0
    %1998 = vmatpush1.msra.mxu0 0.0
    %1999 = vmatprep.subr.mxu0 0.0
    %2000 = vmatpush1.msra.mxu0 0.0
    %2001 = vmatprep.subr.mxu0 0.0
    %2002 = vmatpush1.msra.mxu0 0.0
    %2003 = vmatprep.subr.mxu0 0.0
    %2004 = vmatpush1.msra.mxu0 0.0
    %2005 = vmatprep.subr.mxu0 0.0
    %2006 = vmatpush1.msra.mxu0 0.0
    %2007 = vmatprep.subr.mxu0 0.0
    %2008 = vmatpush1.msra.mxu0 0.0
    %2009 = vmatprep.subr.mxu0 0.0
    %2010 = vmatpush1.msra.mxu0 0.0
    %2011 = vmatprep.subr.mxu0 0.0
    %2012 = vmatpush1.msra.mxu0 0.0
    %2013 = vmatprep.subr.mxu0 0.0
    %2014 = vmatpush1.msra.mxu0 0.0
    %2015 = vmatprep.subr.mxu0 0.0
    %2016 = vmatpush1.msra.mxu0 0.0
    %2017 = vmatprep.subr.mxu0 0.0
    %2018 = vmatpush1.msra.mxu0 0.0
    %2019 = vmatprep.subr.mxu0 0.0
    %2020 = vmatpush1.msra.mxu0 0.0
    %2021 = vmatprep.subr.mxu0 0.0
    %2022 = vmatpush1.msra.mxu0 0.0
    %2023 = vmatprep.subr.mxu0 0.0
    %2024 = vmatpush1.msra.mxu0 0.0
    %2025 = vmatprep.subr.mxu0 0.0
    %2026 = vmatpush1.msra.mxu0 0.0
    %2027 = vmatprep.subr.mxu0 0.0
    %2028 = vmatpush1.msra.mxu0 0.0
    %2029 = vmatprep.subr.mxu0 0.0
    %2030 = vmatpush1.msra.mxu0 0.0
    %2031 = vmatprep.subr.mxu0 0.0
    %2032 = vmatpush1.msra.mxu0 0.0
    %2033 = vmatprep.subr.mxu0 0.0
    %2034 = vmatpush1.msra.mxu0 0.0
    %2035 = vmatprep.mubr.f32.mxu0 0.0
    %2036 = vmatmul.mubr.f32.gmra.mrb[0].mxu0 %v1892
    %v2037 = vpop.f32.mrb[0].mxu0
    %v2038 = vadd.f32 0.0, %v2037
    %v2039 = vpop.f32.mrb[0].mxu0
    %2040 = vdwg.mxu0
    %v2041 = vadd.f32 %v1888, %v2038
    %v2042 = vxor.u32 %v2041, 2147483648
    %v2043 = vmul.f32 %v2042, 1.442695
    %v2044 = vpow.pop %v2043
    %v2045 = vadd.f32 %v2044, 1.0
    %v2046 = vrcp.pop %v2045
    %v2047 = vmul.f32 1.0, %v2046
    %2048 = vmatprep.subr.mxu0 0.0
    %2049 = vmatpush1.msra.mxu0 %v118
    %2050 = vmatprep.subr.mxu0 0.0
    %2051 = vmatpush1.msra.mxu0 %v119
    %2052 = vmatprep.subr.mxu0 0.0
    %2053 = vmatpush1.msra.mxu0 %v120
    %2054 = vmatprep.subr.mxu0 0.0
    %2055 = vmatpush1.msra.mxu0 %v121
    %2056 = vmatprep.subr.mxu0 0.0
    %2057 = vmatpush1.msra.mxu0 0.0
    %2058 = vmatprep.subr.mxu0 0.0
    %2059 = vmatpush1.msra.mxu0 0.0
    %2060 = vmatprep.subr.mxu0 0.0
    %2061 = vmatpush1.msra.mxu0 0.0
    %2062 = vmatprep.subr.mxu0 0.0
    %2063 = vmatpush1.msra.mxu0 0.0
    %2064 = vmatprep.subr.mxu0 0.0
    %2065 = vmatpush1.msra.mxu0 0.0
    %2066 = vmatprep.subr.mxu0 0.0
    %2067 = vmatpush1.msra.mxu0 0.0
    %2068 = vmatprep.subr.mxu0 0.0
    %2069 = vmatpush1.msra.mxu0 0.0
    %2070 = vmatprep.subr.mxu0 0.0
    %2071 = vmatpush1.msra.mxu0 0.0
    %2072 = vmatprep.subr.mxu0 0.0
    %2073 = vmatpush1.msra.mxu0 0.0
    %2074 = vmatprep.subr.mxu0 0.0
    %2075 = vmatpush1.msra.mxu0 0.0
    %2076 = vmatprep.subr.mxu0 0.0
    %2077 = vmatpush1.msra.mxu0 0.0
    %2078 = vmatprep.subr.mxu0 0.0
    %2079 = vmatpush1.msra.mxu0 0.0
    %2080 = vmatprep.subr.mxu0 0.0
    %2081 = vmatpush1.msra.mxu0 0.0
    %2082 = vmatprep.subr.mxu0 0.0
    %2083 = vmatpush1.msra.mxu0 0.0
    %2084 = vmatprep.subr.mxu0 0.0
    %2085 = vmatpush1.msra.mxu0 0.0
    %2086 = vmatprep.subr.mxu0 0.0
    %2087 = vmatpush1.msra.mxu0 0.0
    %2088 = vmatprep.subr.mxu0 0.0
    %2089 = vmatpush1.msra.mxu0 0.0
    %2090 = vmatprep.subr.mxu0 0.0
    %2091 = vmatpush1.msra.mxu0 0.0
    %2092 = vmatprep.subr.mxu0 0.0
    %2093 = vmatpush1.msra.mxu0 0.0
    %2094 = vmatprep.subr.mxu0 0.0
    %2095 = vmatpush1.msra.mxu0 0.0
    %2096 = vmatprep.subr.mxu0 0.0
    %2097 = vmatpush1.msra.mxu0 0.0
    %2098 = vmatprep.subr.mxu0 0.0
    %2099 = vmatpush1.msra.mxu0 0.0
    %2100 = vmatprep.subr.mxu0 0.0
    %2101 = vmatpush1.msra.mxu0 0.0
    %2102 = vmatprep.subr.mxu0 0.0
    %2103 = vmatpush1.msra.mxu0 0.0
    %2104 = vmatprep.subr.mxu0 0.0
    %2105 = vmatpush1.msra.mxu0 0.0
    %2106 = vmatprep.subr.mxu0 0.0
    %2107 = vmatpush1.msra.mxu0 0.0
    %2108 = vmatprep.subr.mxu0 0.0
    %2109 = vmatpush1.msra.mxu0 0.0
    %2110 = vmatprep.subr.mxu0 0.0
    %2111 = vmatpush1.msra.mxu0 0.0
    %2112 = vmatprep.mubr.f32.mxu0 0.0
    %2113 = vmatmul.mubr.f32.gmra.mrb[0].mxu0 %v1892
    %v2114 = vpop.f32.mrb[0].mxu0
    %v2115 = vadd.f32 %v540, %v2114
    %v2116 = vpop.f32.mrb[0].mxu0
    %2117 = vdwg.mxu0
    %v2118 = vmul.f32 %v1970, %v2115
    %v2119 = vadd.f32 %v1890, %v2118
    %v2120 = vtanh.pop %v2119
    %v2121 = vsub.f32 1.0, %v2047
    %v2122 = vmul.f32 %v2121, %v2120
    %v2123 = vmul.f32 %v2047, %v1644
    %v2124 = vadd.f32 %v2122, %v2123
    %v2125 = vstv %s1641
    %vm2126 = vcmp.lt.s32.totalorder %v2125, %v93
    %v2127 = vsel %vm2126, 1, 0
    %2128 = vset.pattern.permute.xlu0 0
    %2129 = vperm.xlu0 %2128, %v2127
    %v2130 = vpop.permute.xlu0 %2129
    %vm2131 = vcmp.eq.s32.totalorder %v2130, 1
    %v2132 = vsel %vm2131, %v1884, %v1643
    %2133 = vst.msk [vmem:[#allocation2] sm:$0xff] %vm133, %v2132
    %v2134 = vstv %s1642
    %vm2135 = vcmp.lt.s32.totalorder %v2134, %v93
    %v2136 = vsel %vm2135, 1, 0
    %2137 = vset.pattern.permute.xlu0 0
    %2138 = vperm.xlu0 %2137, %v2136
    %v2139 = vpop.permute.xlu0 %2138
    %vm2140 = vcmp.eq.s32.totalorder %v2139, 1
    %v2141 = vsel %vm2140, %v2124, %v1644
    %2142 = vst.msk [vmem:[#allocation3] sm:$0xff] %vm133, %v2141
    %s2143 = sadd.s32 %s82, 4
    %s2144 = ssub.s32 3, %s82
    %v2145 = vld [vmem:[#allocation2] sm:$0xff]
    %v2146 = vld [vmem:[#allocation3] sm:$0xff]
    %s2147 = scalar_lea.vmem [#allocation4], 96
    %v2148 = vld [vmem:[%s2147] sm:$0xff]
    %s2149 = scalar_lea.vmem [#allocation4], 104
    %v2150 = vld [vmem:[%s2149] sm:$0xff]
    %s2151 = scalar_lea.vmem [#allocation4], 112
    %v2152 = vld [vmem:[%s2151] sm:$0xff]
    %v2154 = vsel %vm133, %v2145, 0
    %2156 = vmatprep.subr.mxu0 0.0
    %2157 = vmatpush1.msra.mxu0 %v94
    %2158 = vmatprep.subr.mxu0 0.0
    %2159 = vmatpush1.msra.mxu0 %v95
    %2160 = vmatprep.subr.mxu0 0.0
    %2161 = vmatpush1.msra.mxu0 %v96
    %2162 = vmatprep.subr.mxu0 0.0
    %2163 = vmatpush1.msra.mxu0 %v97
    %2164 = vmatprep.subr.mxu0 0.0
    %2165 = vmatpush1.msra.mxu0 0.0
    %2166 = vmatprep.subr.mxu0 0.0
    %2167 = vmatpush1.msra.mxu0 0.0
    %2168 = vmatprep.subr.mxu0 0.0
    %2169 = vmatpush1.msra.mxu0 0.0
    %2170 = vmatprep.subr.mxu0 0.0
    %2171 = vmatpush1.msra.mxu0 0.0
    %2172 = vmatprep.subr.mxu0 0.0
    %2173 = vmatpush1.msra.mxu0 0.0
    %2174 = vmatprep.subr.mxu0 0.0
    %2175 = vmatpush1.msra.mxu0 0.0
    %2176 = vmatprep.subr.mxu0 0.0
    %2177 = vmatpush1.msra.mxu0 0.0
    %2178 = vmatprep.subr.mxu0 0.0
    %2179 = vmatpush1.msra.mxu0 0.0
    %2180 = vmatprep.subr.mxu0 0.0
    %2181 = vmatpush1.msra.mxu0 0.0
    %2182 = vmatprep.subr.mxu0 0.0
    %2183 = vmatpush1.msra.mxu0 0.0
    %2184 = vmatprep.subr.mxu0 0.0
    %2185 = vmatpush1.msra.mxu0 0.0
    %2186 = vmatprep.subr.mxu0 0.0
    %2187 = vmatpush1.msra.mxu0 0.0
    %2188 = vmatprep.subr.mxu0 0.0
    %2189 = vmatpush1.msra.mxu0 0.0
    %2190 = vmatprep.subr.mxu0 0.0
    %2191 = vmatpush1.msra.mxu0 0.0
    %2192 = vmatprep.subr.mxu0 0.0
    %2193 = vmatpush1.msra.mxu0 0.0
    %2194 = vmatprep.subr.mxu0 0.0
    %2195 = vmatpush1.msra.mxu0 0.0
    %2196 = vmatprep.subr.mxu0 0.0
    %2197 = vmatpush1.msra.mxu0 0.0
    %2198 = vmatprep.subr.mxu0 0.0
    %2199 = vmatpush1.msra.mxu0 0.0
    %2200 = vmatprep.subr.mxu0 0.0
    %2201 = vmatpush1.msra.mxu0 0.0
    %2202 = vmatprep.subr.mxu0 0.0
    %2203 = vmatpush1.msra.mxu0 0.0
    %2204 = vmatprep.subr.mxu0 0.0
    %2205 = vmatpush1.msra.mxu0 0.0
    %2206 = vmatprep.subr.mxu0 0.0
    %2207 = vmatpush1.msra.mxu0 0.0
    %2208 = vmatprep.subr.mxu0 0.0
    %2209 = vmatpush1.msra.mxu0 0.0
    %2210 = vmatprep.subr.mxu0 0.0
    %2211 = vmatpush1.msra.mxu0 0.0
    %2212 = vmatprep.subr.mxu0 0.0
    %2213 = vmatpush1.msra.mxu0 0.0
    %2214 = vmatprep.subr.mxu0 0.0
    %2215 = vmatpush1.msra.mxu0 0.0
    %2216 = vmatprep.subr.mxu0 0.0
    %2217 = vmatpush1.msra.mxu0 0.0
    %2218 = vmatprep.subr.mxu0 0.0
    %2219 = vmatpush1.msra.mxu0 0.0
    %2220 = vmatprep.mubr.f32.mxu0 0.0
    %2221 = vmatmul.mubr.f32.gmra.mrb[0].mxu0 %v2154
    %v2222 = vpop.f32.mrb[0].mxu0
    %v2223 = vadd.f32 0.0, %v2222
    %v2224 = vpop.f32.mrb[0].mxu0
    %2225 = vdwg.mxu0
    %v2226 = vadd.f32 %v2148, %v2223
    %v2227 = vxor.u32 %v2226, 2147483648
    %v2228 = vmul.f32 %v2227, 1.442695
    %v2229 = vpow.pop %v2228
    %v2230 = vadd.f32 %v2229, 1.0
    %v2231 = vrcp.pop %v2230
    %v2232 = vmul.f32 1.0, %v2231
    %2233 = vmatprep.subr.mxu0 0.0
    %2234 = vmatpush1.msra.mxu0 %v99
    %2235 = vmatprep.subr.mxu0 0.0
    %2236 = vmatpush1.msra.mxu0 %v100
    %2237 = vmatprep.subr.mxu0 0.0
    %2238 = vmatpush1.msra.mxu0 %v101
    %2239 = vmatprep.subr.mxu0 0.0
    %2240 = vmatpush1.msra.mxu0 %v102
    %2241 = vmatprep.subr.mxu0 0.0
    %2242 = vmatpush1.msra.mxu0 0.0
    %2243 = vmatprep.subr.mxu0 0.0
    %2244 = vmatpush1.msra.mxu0 0.0
    %2245 = vmatprep.subr.mxu0 0.0
    %2246 = vmatpush1.msra.mxu0 0.0
    %2247 = vmatprep.subr.mxu0 0.0
    %2248 = vmatpush1.msra.mxu0 0.0
    %2249 = vmatprep.subr.mxu0 0.0
    %2250 = vmatpush1.msra.mxu0 0.0
    %2251 = vmatprep.subr.mxu0 0.0
    %2252 = vmatpush1.msra.mxu0 0.0
    %2253 = vmatprep.subr.mxu0 0.0
    %2254 = vmatpush1.msra.mxu0 0.0
    %2255 = vmatprep.subr.mxu0 0.0
    %2256 = vmatpush1.msra.mxu0 0.0
    %2257 = vmatprep.subr.mxu0 0.0
    %2258 = vmatpush1.msra.mxu0 0.0
    %2259 = vmatprep.subr.mxu0 0.0
    %2260 = vmatpush1.msra.mxu0 0.0
    %2261 = vmatprep.subr.mxu0 0.0
    %2262 = vmatpush1.msra.mxu0 0.0
    %2263 = vmatprep.subr.mxu0 0.0
    %2264 = vmatpush1.msra.mxu0 0.0
    %2265 = vmatprep.subr.mxu0 0.0
    %2266 = vmatpush1.msra.mxu0 0.0
    %2267 = vmatprep.subr.mxu0 0.0
    %2268 = vmatpush1.msra.mxu0 0.0
    %2269 = vmatprep.subr.mxu0 0.0
    %2270 = vmatpush1.msra.mxu0 0.0
    %2271 = vmatprep.subr.mxu0 0.0
    %2272 = vmatpush1.msra.mxu0 0.0
    %2273 = vmatprep.subr.mxu0 0.0
    %2274 = vmatpush1.msra.mxu0 0.0
    %2275 = vmatprep.subr.mxu0 0.0
    %2276 = vmatpush1.msra.mxu0 0.0
    %2277 = vmatprep.subr.mxu0 0.0
    %2278 = vmatpush1.msra.mxu0 0.0
    %2279 = vmatprep.subr.mxu0 0.0
    %2280 = vmatpush1.msra.mxu0 0.0
    %2281 = vmatprep.subr.mxu0 0.0
    %2282 = vmatpush1.msra.mxu0 0.0
    %2283 = vmatprep.subr.mxu0 0.0
    %2284 = vmatpush1.msra.mxu0 0.0
    %2285 = vmatprep.subr.mxu0 0.0
    %2286 = vmatpush1.msra.mxu0 0.0
    %2287 = vmatprep.subr.mxu0 0.0
    %2288 = vmatpush1.msra.mxu0 0.0
    %2289 = vmatprep.subr.mxu0 0.0
    %2290 = vmatpush1.msra.mxu0 0.0
    %2291 = vmatprep.subr.mxu0 0.0
    %2292 = vmatpush1.msra.mxu0 0.0
    %2293 = vmatprep.subr.mxu0 0.0
    %2294 = vmatpush1.msra.mxu0 0.0
    %2295 = vmatprep.subr.mxu0 0.0
    %2296 = vmatpush1.msra.mxu0 0.0
    %2297 = vmatprep.mubr.f32.mxu0 0.0
    %2298 = vmatmul.mubr.f32.gmra.mrb[0].mxu0 %v2154
    %v2299 = vpop.f32.mrb[0].mxu0
    %v2300 = vadd.f32 0.0, %v2299
    %v2301 = vpop.f32.mrb[0].mxu0
    %2302 = vdwg.mxu0
    %v2303 = vadd.f32 %v2150, %v2300
    %v2304 = vxor.u32 %v2303, 2147483648
    %v2305 = vmul.f32 %v2304, 1.442695
    %v2306 = vpow.pop %v2305
    %v2307 = vadd.f32 %v2306, 1.0
    %v2308 = vrcp.pop %v2307
    %v2309 = vmul.f32 1.0, %v2308
    %2310 = vmatprep.subr.mxu0 0.0
    %2311 = vmatpush1.msra.mxu0 %v104
    %2312 = vmatprep.subr.mxu0 0.0
    %2313 = vmatpush1.msra.mxu0 %v105
    %2314 = vmatprep.subr.mxu0 0.0
    %2315 = vmatpush1.msra.mxu0 %v106
    %2316 = vmatprep.subr.mxu0 0.0
    %2317 = vmatpush1.msra.mxu0 %v107
    %2318 = vmatprep.subr.mxu0 0.0
    %2319 = vmatpush1.msra.mxu0 0.0
    %2320 = vmatprep.subr.mxu0 0.0
    %2321 = vmatpush1.msra.mxu0 0.0
    %2322 = vmatprep.subr.mxu0 0.0
    %2323 = vmatpush1.msra.mxu0 0.0
    %2324 = vmatprep.subr.mxu0 0.0
    %2325 = vmatpush1.msra.mxu0 0.0
    %2326 = vmatprep.subr.mxu0 0.0
    %2327 = vmatpush1.msra.mxu0 0.0
    %2328 = vmatprep.subr.mxu0 0.0
    %2329 = vmatpush1.msra.mxu0 0.0
    %2330 = vmatprep.subr.mxu0 0.0
    %2331 = vmatpush1.msra.mxu0 0.0
    %2332 = vmatprep.subr.mxu0 0.0
    %2333 = vmatpush1.msra.mxu0 0.0
    %2334 = vmatprep.subr.mxu0 0.0
    %2335 = vmatpush1.msra.mxu0 0.0
    %2336 = vmatprep.subr.mxu0 0.0
    %2337 = vmatpush1.msra.mxu0 0.0
    %2338 = vmatprep.subr.mxu0 0.0
    %2339 = vmatpush1.msra.mxu0 0.0
    %2340 = vmatprep.subr.mxu0 0.0
    %2341 = vmatpush1.msra.mxu0 0.0
    %2342 = vmatprep.subr.mxu0 0.0
    %2343 = vmatpush1.msra.mxu0 0.0
    %2344 = vmatprep.subr.mxu0 0.0
    %2345 = vmatpush1.msra.mxu0 0.0
    %2346 = vmatprep.subr.mxu0 0.0
    %2347 = vmatpush1.msra.mxu0 0.0
    %2348 = vmatprep.subr.mxu0 0.0
    %2349 = vmatpush1.msra.mxu0 0.0
    %2350 = vmatprep.subr.mxu0 0.0
    %2351 = vmatpush1.msra.mxu0 0.0
    %2352 = vmatprep.subr.mxu0 0.0
    %2353 = vmatpush1.msra.mxu0 0.0
    %2354 = vmatprep.subr.mxu0 0.0
    %2355 = vmatpush1.msra.mxu0 0.0
    %2356 = vmatprep.subr.mxu0 0.0
    %2357 = vmatpush1.msra.mxu0 0.0
    %2358 = vmatprep.subr.mxu0 0.0
    %2359 = vmatpush1.msra.mxu0 0.0
    %2360 = vmatprep.subr.mxu0 0.0
    %2361 = vmatpush1.msra.mxu0 0.0
    %2362 = vmatprep.subr.mxu0 0.0
    %2363 = vmatpush1.msra.mxu0 0.0
    %2364 = vmatprep.subr.mxu0 0.0
    %2365 = vmatpush1.msra.mxu0 0.0
    %2366 = vmatprep.subr.mxu0 0.0
    %2367 = vmatpush1.msra.mxu0 0.0
    %2368 = vmatprep.subr.mxu0 0.0
    %2369 = vmatpush1.msra.mxu0 0.0
    %2370 = vmatprep.subr.mxu0 0.0
    %2371 = vmatpush1.msra.mxu0 0.0
    %2372 = vmatprep.subr.mxu0 0.0
    %2373 = vmatpush1.msra.mxu0 0.0
    %2374 = vmatprep.mubr.f32.mxu0 0.0
    %2375 = vmatmul.mubr.f32.gmra.mrb[0].mxu0 %v2154
    %v2376 = vpop.f32.mrb[0].mxu0
    %v2377 = vadd.f32 %v295, %v2376
    %v2378 = vpop.f32.mrb[0].mxu0
    %2379 = vdwg.mxu0
    %v2380 = vmul.f32 %v2232, %v2377
    %v2381 = vadd.f32 %v2152, %v2380
    %v2382 = vtanh.pop %v2381
    %v2383 = vsub.f32 1.0, %v2309
    %v2384 = vmul.f32 %v2383, %v2382
    %v2385 = vmul.f32 %v2309, %v2145
    %v2386 = vadd.f32 %v2384, %v2385
    %s2387 = scalar_lea.vmem [#allocation7], 96
    %v2388 = vld [vmem:[%s2387] sm:$0xff]
    %s2389 = scalar_lea.vmem [#allocation7], 104
    %v2390 = vld [vmem:[%s2389] sm:$0xff]
    %s2391 = scalar_lea.vmem [#allocation7], 112
    %v2392 = vld [vmem:[%s2391] sm:$0xff]
    %v2394 = vsel %vm133, %v2146, 0
    %2396 = vmatprep.subr.mxu0 0.0
    %2397 = vmatpush1.msra.mxu0 %v108
    %2398 = vmatprep.subr.mxu0 0.0
    %2399 = vmatpush1.msra.mxu0 %v109
    %2400 = vmatprep.subr.mxu0 0.0
    %2401 = vmatpush1.msra.mxu0 %v110
    %2402 = vmatprep.subr.mxu0 0.0
    %2403 = vmatpush1.msra.mxu0 %v111
    %2404 = vmatprep.subr.mxu0 0.0
    %2405 = vmatpush1.msra.mxu0 0.0
    %2406 = vmatprep.subr.mxu0 0.0
    %2407 = vmatpush1.msra.mxu0 0.0
    %2408 = vmatprep.subr.mxu0 0.0
    %2409 = vmatpush1.msra.mxu0 0.0
    %2410 = vmatprep.subr.mxu0 0.0
    %2411 = vmatpush1.msra.mxu0 0.0
    %2412 = vmatprep.subr.mxu0 0.0
    %2413 = vmatpush1.msra.mxu0 0.0
    %2414 = vmatprep.subr.mxu0 0.0
    %2415 = vmatpush1.msra.mxu0 0.0
    %2416 = vmatprep.subr.mxu0 0.0
    %2417 = vmatpush1.msra.mxu0 0.0
    %2418 = vmatprep.subr.mxu0 0.0
    %2419 = vmatpush1.msra.mxu0 0.0
    %2420 = vmatprep.subr.mxu0 0.0
    %2421 = vmatpush1.msra.mxu0 0.0
    %2422 = vmatprep.subr.mxu0 0.0
    %2423 = vmatpush1.msra.mxu0 0.0
    %2424 = vmatprep.subr.mxu0 0.0
    %2425 = vmatpush1.msra.mxu0 0.0
    %2426 = vmatprep.subr.mxu0 0.0
    %2427 = vmatpush1.msra.mxu0 0.0
    %2428 = vmatprep.subr.mxu0 0.0
    %2429 = vmatpush1.msra.mxu0 0.0
    %2430 = vmatprep.subr.mxu0 0.0
    %2431 = vmatpush1.msra.mxu0 0.0
    %2432 = vmatprep.subr.mxu0 0.0
    %2433 = vmatpush1.msra.mxu0 0.0
    %2434 = vmatprep.subr.mxu0 0.0
    %2435 = vmatpush1.msra.mxu0 0.0
    %2436 = vmatprep.subr.mxu0 0.0
    %2437 = vmatpush1.msra.mxu0 0.0
    %2438 = vmatprep.subr.mxu0 0.0
    %2439 = vmatpush1.msra.mxu0 0.0
    %2440 = vmatprep.subr.mxu0 0.0
    %2441 = vmatpush1.msra.mxu0 0.0
    %2442 = vmatprep.subr.mxu0 0.0
    %2443 = vmatpush1.msra.mxu0 0.0
    %2444 = vmatprep.subr.mxu0 0.0
    %2445 = vmatpush1.msra.mxu0 0.0
    %2446 = vmatprep.subr.mxu0 0.0
    %2447 = vmatpush1.msra.mxu0 0.0
    %2448 = vmatprep.subr.mxu0 0.0
    %2449 = vmatpush1.msra.mxu0 0.0
    %2450 = vmatprep.subr.mxu0 0.0
    %2451 = vmatpush1.msra.mxu0 0.0
    %2452 = vmatprep.subr.mxu0 0.0
    %2453 = vmatpush1.msra.mxu0 0.0
    %2454 = vmatprep.subr.mxu0 0.0
    %2455 = vmatpush1.msra.mxu0 0.0
    %2456 = vmatprep.subr.mxu0 0.0
    %2457 = vmatpush1.msra.mxu0 0.0
    %2458 = vmatprep.subr.mxu0 0.0
    %2459 = vmatpush1.msra.mxu0 0.0
    %2460 = vmatprep.mubr.f32.mxu0 0.0
    %2461 = vmatmul.mubr.f32.gmra.mrb[0].mxu0 %v2394
    %v2462 = vpop.f32.mrb[0].mxu0
    %v2463 = vadd.f32 0.0, %v2462
    %v2464 = vpop.f32.mrb[0].mxu0
    %2465 = vdwg.mxu0
    %v2466 = vadd.f32 %v2388, %v2463
    %v2467 = vxor.u32 %v2466, 2147483648
    %v2468 = vmul.f32 %v2467, 1.442695
    %v2469 = vpow.pop %v2468
    %v2470 = vadd.f32 %v2469, 1.0
    %v2471 = vrcp.pop %v2470
    %v2472 = vmul.f32 1.0, %v2471
    %2473 = vmatprep.subr.mxu0 0.0
    %2474 = vmatpush1.msra.mxu0 %v113
    %2475 = vmatprep.subr.mxu0 0.0
    %2476 = vmatpush1.msra.mxu0 %v114
    %2477 = vmatprep.subr.mxu0 0.0
    %2478 = vmatpush1.msra.mxu0 %v115
    %2479 = vmatprep.subr.mxu0 0.0
    %2480 = vmatpush1.msra.mxu0 %v116
    %2481 = vmatprep.subr.mxu0 0.0
    %2482 = vmatpush1.msra.mxu0 0.0
    %2483 = vmatprep.subr.mxu0 0.0
    %2484 = vmatpush1.msra.mxu0 0.0
    %2485 = vmatprep.subr.mxu0 0.0
    %2486 = vmatpush1.msra.mxu0 0.0
    %2487 = vmatprep.subr.mxu0 0.0
    %2488 = vmatpush1.msra.mxu0 0.0
    %2489 = vmatprep.subr.mxu0 0.0
    %2490 = vmatpush1.msra.mxu0 0.0
    %2491 = vmatprep.subr.mxu0 0.0
    %2492 = vmatpush1.msra.mxu0 0.0
    %2493 = vmatprep.subr.mxu0 0.0
    %2494 = vmatpush1.msra.mxu0 0.0
    %2495 = vmatprep.subr.mxu0 0.0
    %2496 = vmatpush1.msra.mxu0 0.0
    %2497 = vmatprep.subr.mxu0 0.0
    %2498 = vmatpush1.msra.mxu0 0.0
    %2499 = vmatprep.subr.mxu0 0.0
    %2500 = vmatpush1.msra.mxu0 0.0
    %2501 = vmatprep.subr.mxu0 0.0
    %2502 = vmatpush1.msra.mxu0 0.0
    %2503 = vmatprep.subr.mxu0 0.0
    %2504 = vmatpush1.msra.mxu0 0.0
    %2505 = vmatprep.subr.mxu0 0.0
    %2506 = vmatpush1.msra.mxu0 0.0
    %2507 = vmatprep.subr.mxu0 0.0
    %2508 = vmatpush1.msra.mxu0 0.0
    %2509 = vmatprep.subr.mxu0 0.0
    %2510 = vmatpush1.msra.mxu0 0.0
    %2511 = vmatprep.subr.mxu0 0.0
    %2512 = vmatpush1.msra.mxu0 0.0
    %2513 = vmatprep.subr.mxu0 0.0
    %2514 = vmatpush1.msra.mxu0 0.0
    %2515 = vmatprep.subr.mxu0 0.0
    %2516 = vmatpush1.msra.mxu0 0.0
    %2517 = vmatprep.subr.mxu0 0.0
    %2518 = vmatpush1.msra.mxu0 0.0
    %2519 = vmatprep.subr.mxu0 0.0
    %2520 = vmatpush1.msra.mxu0 0.0
    %2521 = vmatprep.subr.mxu0 0.0
    %2522 = vmatpush1.msra.mxu0 0.0
    %2523 = vmatprep.subr.mxu0 0.0
    %2524 = vmatpush1.msra.mxu0 0.0
    %2525 = vmatprep.subr.mxu0 0.0
    %2526 = vmatpush1.msra.mxu0 0.0
    %2527 = vmatprep.subr.mxu0 0.0
    %2528 = vmatpush1.msra.mxu0 0.0
    %2529 = vmatprep.subr.mxu0 0.0
    %2530 = vmatpush1.msra.mxu0 0.0
    %2531 = vmatprep.subr.mxu0 0.0
    %2532 = vmatpush1.msra.mxu0 0.0
    %2533 = vmatprep.subr.mxu0 0.0
    %2534 = vmatpush1.msra.mxu0 0.0
    %2535 = vmatprep.subr.mxu0 0.0
    %2536 = vmatpush1.msra.mxu0 0.0
    %2537 = vmatprep.mubr.f32.mxu0 0.0
    %2538 = vmatmul.mubr.f32.gmra.mrb[0].mxu0 %v2394
    %v2539 = vpop.f32.mrb[0].mxu0
    %v2540 = vadd.f32 0.0, %v2539
    %v2541 = vpop.f32.mrb[0].mxu0
    %2542 = vdwg.mxu0
    %v2543 = vadd.f32 %v2390, %v2540
    %v2544 = vxor.u32 %v2543, 2147483648
    %v2545 = vmul.f32 %v2544, 1.442695
    %v2546 = vpow.pop %v2545
    %v2547 = vadd.f32 %v2546, 1.0
    %v2548 = vrcp.pop %v2547
    %v2549 = vmul.f32 1.0, %v2548
    %2550 = vmatprep.subr.mxu0 0.0
    %2551 = vmatpush1.msra.mxu0 %v118
    %2552 = vmatprep.subr.mxu0 0.0
    %2553 = vmatpush1.msra.mxu0 %v119
    %2554 = vmatprep.subr.mxu0 0.0
    %2555 = vmatpush1.msra.mxu0 %v120
    %2556 = vmatprep.subr.mxu0 0.0
    %2557 = vmatpush1.msra.mxu0 %v121
    %2558 = vmatprep.subr.mxu0 0.0
    %2559 = vmatpush1.msra.mxu0 0.0
    %2560 = vmatprep.subr.mxu0 0.0
    %2561 = vmatpush1.msra.mxu0 0.0
    %2562 = vmatprep.subr.mxu0 0.0
    %2563 = vmatpush1.msra.mxu0 0.0
    %2564 = vmatprep.subr.mxu0 0.0
    %2565 = vmatpush1.msra.mxu0 0.0
    %2566 = vmatprep.subr.mxu0 0.0
    %2567 = vmatpush1.msra.mxu0 0.0
    %2568 = vmatprep.subr.mxu0 0.0
    %2569 = vmatpush1.msra.mxu0 0.0
    %2570 = vmatprep.subr.mxu0 0.0
    %2571 = vmatpush1.msra.mxu0 0.0
    %2572 = vmatprep.subr.mxu0 0.0
    %2573 = vmatpush1.msra.mxu0 0.0
    %2574 = vmatprep.subr.mxu0 0.0
    %2575 = vmatpush1.msra.mxu0 0.0
    %2576 = vmatprep.subr.mxu0 0.0
    %2577 = vmatpush1.msra.mxu0 0.0
    %2578 = vmatprep.subr.mxu0 0.0
    %2579 = vmatpush1.msra.mxu0 0.0
    %2580 = vmatprep.subr.mxu0 0.0
    %2581 = vmatpush1.msra.mxu0 0.0
    %2582 = vmatprep.subr.mxu0 0.0
    %2583 = vmatpush1.msra.mxu0 0.0
    %2584 = vmatprep.subr.mxu0 0.0
    %2585 = vmatpush1.msra.mxu0 0.0
    %2586 = vmatprep.subr.mxu0 0.0
    %2587 = vmatpush1.msra.mxu0 0.0
    %2588 = vmatprep.subr.mxu0 0.0
    %2589 = vmatpush1.msra.mxu0 0.0
    %2590 = vmatprep.subr.mxu0 0.0
    %2591 = vmatpush1.msra.mxu0 0.0
    %2592 = vmatprep.subr.mxu0 0.0
    %2593 = vmatpush1.msra.mxu0 0.0
    %2594 = vmatprep.subr.mxu0 0.0
    %2595 = vmatpush1.msra.mxu0 0.0
    %2596 = vmatprep.subr.mxu0 0.0
    %2597 = vmatpush1.msra.mxu0 0.0
    %2598 = vmatprep.subr.mxu0 0.0
    %2599 = vmatpush1.msra.mxu0 0.0
    %2600 = vmatprep.subr.mxu0 0.0
    %2601 = vmatpush1.msra.mxu0 0.0
    %2602 = vmatprep.subr.mxu0 0.0
    %2603 = vmatpush1.msra.mxu0 0.0
    %2604 = vmatprep.subr.mxu0 0.0
    %2605 = vmatpush1.msra.mxu0 0.0
    %2606 = vmatprep.subr.mxu0 0.0
    %2607 = vmatpush1.msra.mxu0 0.0
    %2608 = vmatprep.subr.mxu0 0.0
    %2609 = vmatpush1.msra.mxu0 0.0
    %2610 = vmatprep.subr.mxu0 0.0
    %2611 = vmatpush1.msra.mxu0 0.0
    %2612 = vmatprep.subr.mxu0 0.0
    %2613 = vmatpush1.msra.mxu0 0.0
    %2614 = vmatprep.mubr.f32.mxu0 0.0
    %2615 = vmatmul.mubr.f32.gmra.mrb[0].mxu0 %v2394
    %v2616 = vpop.f32.mrb[0].mxu0
    %v2617 = vadd.f32 %v540, %v2616
    %v2618 = vpop.f32.mrb[0].mxu0
    %2619 = vdwg.mxu0
    %v2620 = vmul.f32 %v2472, %v2617
    %v2621 = vadd.f32 %v2392, %v2620
    %v2622 = vtanh.pop %v2621
    %v2623 = vsub.f32 1.0, %v2549
    %v2624 = vmul.f32 %v2623, %v2622
    %v2625 = vmul.f32 %v2549, %v2146
    %v2626 = vadd.f32 %v2624, %v2625
    %v2627 = vstv %s2143
    %vm2628 = vcmp.lt.s32.totalorder %v2627, %v93
    %v2629 = vsel %vm2628, 1, 0
    %2630 = vset.pattern.permute.xlu0 0
    %2631 = vperm.xlu0 %2630, %v2629
    %v2632 = vpop.permute.xlu0 %2631
    %vm2633 = vcmp.eq.s32.totalorder %v2632, 1
    %v2634 = vsel %vm2633, %v2386, %v2145
    %2635 = vst.msk [vmem:[#allocation2] sm:$0xff] %vm133, %v2634
    %v2636 = vstv %s2144
    %vm2637 = vcmp.lt.s32.totalorder %v2636, %v93
    %v2638 = vsel %vm2637, 1, 0
    %2639 = vset.pattern.permute.xlu0 0
    %2640 = vperm.xlu0 %2639, %v2638
    %v2641 = vpop.permute.xlu0 %2640
    %vm2642 = vcmp.eq.s32.totalorder %v2641, 1
    %v2643 = vsel %vm2642, %v2626, %v2146
    %2644 = vst.msk [vmem:[#allocation3] sm:$0xff] %vm133, %v2643
    %s2645 = sadd.s32 %s82, 5
    %s2646 = ssub.s32 2, %s82
    %v2647 = vld [vmem:[#allocation2] sm:$0xff]
    %v2648 = vld [vmem:[#allocation3] sm:$0xff]
    %s2649 = scalar_lea.vmem [#allocation4], 120
    %v2650 = vld [vmem:[%s2649] sm:$0xff]
    %s2651 = scalar_lea.vmem [#allocation4], 128
    %v2652 = vld [vmem:[%s2651] sm:$0xff]
    %s2653 = scalar_lea.vmem [#allocation4], 136
    %v2654 = vld [vmem:[%s2653] sm:$0xff]
    %v2656 = vsel %vm133, %v2647, 0
    %2658 = vmatprep.subr.mxu0 0.0
    %2659 = vmatpush1.msra.mxu0 %v94
    %2660 = vmatprep.subr.mxu0 0.0
    %2661 = vmatpush1.msra.mxu0 %v95
    %2662 = vmatprep.subr.mxu0 0.0
    %2663 = vmatpush1.msra.mxu0 %v96
    %2664 = vmatprep.subr.mxu0 0.0
    %2665 = vmatpush1.msra.mxu0 %v97
    %2666 = vmatprep.subr.mxu0 0.0
    %2667 = vmatpush1.msra.mxu0 0.0
    %2668 = vmatprep.subr.mxu0 0.0
    %2669 = vmatpush1.msra.mxu0 0.0
    %2670 = vmatprep.subr.mxu0 0.0
    %2671 = vmatpush1.msra.mxu0 0.0
    %2672 = vmatprep.subr.mxu0 0.0
    %2673 = vmatpush1.msra.mxu0 0.0
    %2674 = vmatprep.subr.mxu0 0.0
    %2675 = vmatpush1.msra.mxu0 0.0
    %2676 = vmatprep.subr.mxu0 0.0
    %2677 = vmatpush1.msra.mxu0 0.0
    %2678 = vmatprep.subr.mxu0 0.0
    %2679 = vmatpush1.msra.mxu0 0.0
    %2680 = vmatprep.subr.mxu0 0.0
    %2681 = vmatpush1.msra.mxu0 0.0
    %2682 = vmatprep.subr.mxu0 0.0
    %2683 = vmatpush1.msra.mxu0 0.0
    %2684 = vmatprep.subr.mxu0 0.0
    %2685 = vmatpush1.msra.mxu0 0.0
    %2686 = vmatprep.subr.mxu0 0.0
    %2687 = vmatpush1.msra.mxu0 0.0
    %2688 = vmatprep.subr.mxu0 0.0
    %2689 = vmatpush1.msra.mxu0 0.0
    %2690 = vmatprep.subr.mxu0 0.0
    %2691 = vmatpush1.msra.mxu0 0.0
    %2692 = vmatprep.subr.mxu0 0.0
    %2693 = vmatpush1.msra.mxu0 0.0
    %2694 = vmatprep.subr.mxu0 0.0
    %2695 = vmatpush1.msra.mxu0 0.0
    %2696 = vmatprep.subr.mxu0 0.0
    %2697 = vmatpush1.msra.mxu0 0.0
    %2698 = vmatprep.subr.mxu0 0.0
    %2699 = vmatpush1.msra.mxu0 0.0
    %2700 = vmatprep.subr.mxu0 0.0
    %2701 = vmatpush1.msra.mxu0 0.0
    %2702 = vmatprep.subr.mxu0 0.0
    %2703 = vmatpush1.msra.mxu0 0.0
    %2704 = vmatprep.subr.mxu0 0.0
    %2705 = vmatpush1.msra.mxu0 0.0
    %2706 = vmatprep.subr.mxu0 0.0
    %2707 = vmatpush1.msra.mxu0 0.0
    %2708 = vmatprep.subr.mxu0 0.0
    %2709 = vmatpush1.msra.mxu0 0.0
    %2710 = vmatprep.subr.mxu0 0.0
    %2711 = vmatpush1.msra.mxu0 0.0
    %2712 = vmatprep.subr.mxu0 0.0
    %2713 = vmatpush1.msra.mxu0 0.0
    %2714 = vmatprep.subr.mxu0 0.0
    %2715 = vmatpush1.msra.mxu0 0.0
    %2716 = vmatprep.subr.mxu0 0.0
    %2717 = vmatpush1.msra.mxu0 0.0
    %2718 = vmatprep.subr.mxu0 0.0
    %2719 = vmatpush1.msra.mxu0 0.0
    %2720 = vmatprep.subr.mxu0 0.0
    %2721 = vmatpush1.msra.mxu0 0.0
    %2722 = vmatprep.mubr.f32.mxu0 0.0
    %2723 = vmatmul.mubr.f32.gmra.mrb[0].mxu0 %v2656
    %v2724 = vpop.f32.mrb[0].mxu0
    %v2725 = vadd.f32 0.0, %v2724
    %v2726 = vpop.f32.mrb[0].mxu0
    %2727 = vdwg.mxu0
    %v2728 = vadd.f32 %v2650, %v2725
    %v2729 = vxor.u32 %v2728, 2147483648
    %v2730 = vmul.f32 %v2729, 1.442695
    %v2731 = vpow.pop %v2730
    %v2732 = vadd.f32 %v2731, 1.0
    %v2733 = vrcp.pop %v2732
    %v2734 = vmul.f32 1.0, %v2733
    %2735 = vmatprep.subr.mxu0 0.0
    %2736 = vmatpush1.msra.mxu0 %v99
    %2737 = vmatprep.subr.mxu0 0.0
    %2738 = vmatpush1.msra.mxu0 %v100
    %2739 = vmatprep.subr.mxu0 0.0
    %2740 = vmatpush1.msra.mxu0 %v101
    %2741 = vmatprep.subr.mxu0 0.0
    %2742 = vmatpush1.msra.mxu0 %v102
    %2743 = vmatprep.subr.mxu0 0.0
    %2744 = vmatpush1.msra.mxu0 0.0
    %2745 = vmatprep.subr.mxu0 0.0
    %2746 = vmatpush1.msra.mxu0 0.0
    %2747 = vmatprep.subr.mxu0 0.0
    %2748 = vmatpush1.msra.mxu0 0.0
    %2749 = vmatprep.subr.mxu0 0.0
    %2750 = vmatpush1.msra.mxu0 0.0
    %2751 = vmatprep.subr.mxu0 0.0
    %2752 = vmatpush1.msra.mxu0 0.0
    %2753 = vmatprep.subr.mxu0 0.0
    %2754 = vmatpush1.msra.mxu0 0.0
    %2755 = vmatprep.subr.mxu0 0.0
    %2756 = vmatpush1.msra.mxu0 0.0
    %2757 = vmatprep.subr.mxu0 0.0
    %2758 = vmatpush1.msra.mxu0 0.0
    %2759 = vmatprep.subr.mxu0 0.0
    %2760 = vmatpush1.msra.mxu0 0.0
    %2761 = vmatprep.subr.mxu0 0.0
    %2762 = vmatpush1.msra.mxu0 0.0
    %2763 = vmatprep.subr.mxu0 0.0
    %2764 = vmatpush1.msra.mxu0 0.0
    %2765 = vmatprep.subr.mxu0 0.0
    %2766 = vmatpush1.msra.mxu0 0.0
    %2767 = vmatprep.subr.mxu0 0.0
    %2768 = vmatpush1.msra.mxu0 0.0
    %2769 = vmatprep.subr.mxu0 0.0
    %2770 = vmatpush1.msra.mxu0 0.0
    %2771 = vmatprep.subr.mxu0 0.0
    %2772 = vmatpush1.msra.mxu0 0.0
    %2773 = vmatprep.subr.mxu0 0.0
    %2774 = vmatpush1.msra.mxu0 0.0
    %2775 = vmatprep.subr.mxu0 0.0
    %2776 = vmatpush1.msra.mxu0 0.0
    %2777 = vmatprep.subr.mxu0 0.0
    %2778 = vmatpush1.msra.mxu0 0.0
    %2779 = vmatprep.subr.mxu0 0.0
    %2780 = vmatpush1.msra.mxu0 0.0
    %2781 = vmatprep.subr.mxu0 0.0
    %2782 = vmatpush1.msra.mxu0 0.0
    %2783 = vmatprep.subr.mxu0 0.0
    %2784 = vmatpush1.msra.mxu0 0.0
    %2785 = vmatprep.subr.mxu0 0.0
    %2786 = vmatpush1.msra.mxu0 0.0
    %2787 = vmatprep.subr.mxu0 0.0
    %2788 = vmatpush1.msra.mxu0 0.0
    %2789 = vmatprep.subr.mxu0 0.0
    %2790 = vmatpush1.msra.mxu0 0.0
    %2791 = vmatprep.subr.mxu0 0.0
    %2792 = vmatpush1.msra.mxu0 0.0
    %2793 = vmatprep.subr.mxu0 0.0
    %2794 = vmatpush1.msra.mxu0 0.0
    %2795 = vmatprep.subr.mxu0 0.0
    %2796 = vmatpush1.msra.mxu0 0.0
    %2797 = vmatprep.subr.mxu0 0.0
    %2798 = vmatpush1.msra.mxu0 0.0
    %2799 = vmatprep.mubr.f32.mxu0 0.0
    %2800 = vmatmul.mubr.f32.gmra.mrb[0].mxu0 %v2656
    %v2801 = vpop.f32.mrb[0].mxu0
    %v2802 = vadd.f32 0.0, %v2801
    %v2803 = vpop.f32.mrb[0].mxu0
    %2804 = vdwg.mxu0
    %v2805 = vadd.f32 %v2652, %v2802
    %v2806 = vxor.u32 %v2805, 2147483648
    %v2807 = vmul.f32 %v2806, 1.442695
    %v2808 = vpow.pop %v2807
    %v2809 = vadd.f32 %v2808, 1.0
    %v2810 = vrcp.pop %v2809
    %v2811 = vmul.f32 1.0, %v2810
    %2812 = vmatprep.subr.mxu0 0.0
    %2813 = vmatpush1.msra.mxu0 %v104
    %2814 = vmatprep.subr.mxu0 0.0
    %2815 = vmatpush1.msra.mxu0 %v105
    %2816 = vmatprep.subr.mxu0 0.0
    %2817 = vmatpush1.msra.mxu0 %v106
    %2818 = vmatprep.subr.mxu0 0.0
    %2819 = vmatpush1.msra.mxu0 %v107
    %2820 = vmatprep.subr.mxu0 0.0
    %2821 = vmatpush1.msra.mxu0 0.0
    %2822 = vmatprep.subr.mxu0 0.0
    %2823 = vmatpush1.msra.mxu0 0.0
    %2824 = vmatprep.subr.mxu0 0.0
    %2825 = vmatpush1.msra.mxu0 0.0
    %2826 = vmatprep.subr.mxu0 0.0
    %2827 = vmatpush1.msra.mxu0 0.0
    %2828 = vmatprep.subr.mxu0 0.0
    %2829 = vmatpush1.msra.mxu0 0.0
    %2830 = vmatprep.subr.mxu0 0.0
    %2831 = vmatpush1.msra.mxu0 0.0
    %2832 = vmatprep.subr.mxu0 0.0
    %2833 = vmatpush1.msra.mxu0 0.0
    %2834 = vmatprep.subr.mxu0 0.0
    %2835 = vmatpush1.msra.mxu0 0.0
    %2836 = vmatprep.subr.mxu0 0.0
    %2837 = vmatpush1.msra.mxu0 0.0
    %2838 = vmatprep.subr.mxu0 0.0
    %2839 = vmatpush1.msra.mxu0 0.0
    %2840 = vmatprep.subr.mxu0 0.0
    %2841 = vmatpush1.msra.mxu0 0.0
    %2842 = vmatprep.subr.mxu0 0.0
    %2843 = vmatpush1.msra.mxu0 0.0
    %2844 = vmatprep.subr.mxu0 0.0
    %2845 = vmatpush1.msra.mxu0 0.0
    %2846 = vmatprep.subr.mxu0 0.0
    %2847 = vmatpush1.msra.mxu0 0.0
    %2848 = vmatprep.subr.mxu0 0.0
    %2849 = vmatpush1.msra.mxu0 0.0
    %2850 = vmatprep.subr.mxu0 0.0
    %2851 = vmatpush1.msra.mxu0 0.0
    %2852 = vmatprep.subr.mxu0 0.0
    %2853 = vmatpush1.msra.mxu0 0.0
    %2854 = vmatprep.subr.mxu0 0.0
    %2855 = vmatpush1.msra.mxu0 0.0
    %2856 = vmatprep.subr.mxu0 0.0
    %2857 = vmatpush1.msra.mxu0 0.0
    %2858 = vmatprep.subr.mxu0 0.0
    %2859 = vmatpush1.msra.mxu0 0.0
    %2860 = vmatprep.subr.mxu0 0.0
    %2861 = vmatpush1.msra.mxu0 0.0
    %2862 = vmatprep.subr.mxu0 0.0
    %2863 = vmatpush1.msra.mxu0 0.0
    %2864 = vmatprep.subr.mxu0 0.0
    %2865 = vmatpush1.msra.mxu0 0.0
    %2866 = vmatprep.subr.mxu0 0.0
    %2867 = vmatpush1.msra.mxu0 0.0
    %2868 = vmatprep.subr.mxu0 0.0
    %2869 = vmatpush1.msra.mxu0 0.0
    %2870 = vmatprep.subr.mxu0 0.0
    %2871 = vmatpush1.msra.mxu0 0.0
    %2872 = vmatprep.subr.mxu0 0.0
    %2873 = vmatpush1.msra.mxu0 0.0
    %2874 = vmatprep.subr.mxu0 0.0
    %2875 = vmatpush1.msra.mxu0 0.0
    %2876 = vmatprep.mubr.f32.mxu0 0.0
    %2877 = vmatmul.mubr.f32.gmra.mrb[0].mxu0 %v2656
    %v2878 = vpop.f32.mrb[0].mxu0
    %v2879 = vadd.f32 %v295, %v2878
    %v2880 = vpop.f32.mrb[0].mxu0
    %2881 = vdwg.mxu0
    %v2882 = vmul.f32 %v2734, %v2879
    %v2883 = vadd.f32 %v2654, %v2882
    %v2884 = vtanh.pop %v2883
    %v2885 = vsub.f32 1.0, %v2811
    %v2886 = vmul.f32 %v2885, %v2884
    %v2887 = vmul.f32 %v2811, %v2647
    %v2888 = vadd.f32 %v2886, %v2887
    %s2889 = scalar_lea.vmem [#allocation7], 120
    %v2890 = vld [vmem:[%s2889] sm:$0xff]
    %s2891 = scalar_lea.vmem [#allocation7], 128
    %v2892 = vld [vmem:[%s2891] sm:$0xff]
    %s2893 = scalar_lea.vmem [#allocation7], 136
    %v2894 = vld [vmem:[%s2893] sm:$0xff]
    %v2896 = vsel %vm133, %v2648, 0
    %2898 = vmatprep.subr.mxu0 0.0
    %2899 = vmatpush1.msra.mxu0 %v108
    %2900 = vmatprep.subr.mxu0 0.0
    %2901 = vmatpush1.msra.mxu0 %v109
    %2902 = vmatprep.subr.mxu0 0.0
    %2903 = vmatpush1.msra.mxu0 %v110
    %2904 = vmatprep.subr.mxu0 0.0
    %2905 = vmatpush1.msra.mxu0 %v111
    %2906 = vmatprep.subr.mxu0 0.0
    %2907 = vmatpush1.msra.mxu0 0.0
    %2908 = vmatprep.subr.mxu0 0.0
    %2909 = vmatpush1.msra.mxu0 0.0
    %2910 = vmatprep.subr.mxu0 0.0
    %2911 = vmatpush1.msra.mxu0 0.0
    %2912 = vmatprep.subr.mxu0 0.0
    %2913 = vmatpush1.msra.mxu0 0.0
    %2914 = vmatprep.subr.mxu0 0.0
    %2915 = vmatpush1.msra.mxu0 0.0
    %2916 = vmatprep.subr.mxu0 0.0
    %2917 = vmatpush1.msra.mxu0 0.0
    %2918 = vmatprep.subr.mxu0 0.0
    %2919 = vmatpush1.msra.mxu0 0.0
    %2920 = vmatprep.subr.mxu0 0.0
    %2921 = vmatpush1.msra.mxu0 0.0
    %2922 = vmatprep.subr.mxu0 0.0
    %2923 = vmatpush1.msra.mxu0 0.0
    %2924 = vmatprep.subr.mxu0 0.0
    %2925 = vmatpush1.msra.mxu0 0.0
    %2926 = vmatprep.subr.mxu0 0.0
    %2927 = vmatpush1.msra.mxu0 0.0
    %2928 = vmatprep.subr.mxu0 0.0
    %2929 = vmatpush1.msra.mxu0 0.0
    %2930 = vmatprep.subr.mxu0 0.0
    %2931 = vmatpush1.msra.mxu0 0.0
    %2932 = vmatprep.subr.mxu0 0.0
    %2933 = vmatpush1.msra.mxu0 0.0
    %2934 = vmatprep.subr.mxu0 0.0
    %2935 = vmatpush1.msra.mxu0 0.0
    %2936 = vmatprep.subr.mxu0 0.0
    %2937 = vmatpush1.msra.mxu0 0.0
    %2938 = vmatprep.subr.mxu0 0.0
    %2939 = vmatpush1.msra.mxu0 0.0
    %2940 = vmatprep.subr.mxu0 0.0
    %2941 = vmatpush1.msra.mxu0 0.0
    %2942 = vmatprep.subr.mxu0 0.0
    %2943 = vmatpush1.msra.mxu0 0.0
    %2944 = vmatprep.subr.mxu0 0.0
    %2945 = vmatpush1.msra.mxu0 0.0
    %2946 = vmatprep.subr.mxu0 0.0
    %2947 = vmatpush1.msra.mxu0 0.0
    %2948 = vmatprep.subr.mxu0 0.0
    %2949 = vmatpush1.msra.mxu0 0.0
    %2950 = vmatprep.subr.mxu0 0.0
    %2951 = vmatpush1.msra.mxu0 0.0
    %2952 = vmatprep.subr.mxu0 0.0
    %2953 = vmatpush1.msra.mxu0 0.0
    %2954 = vmatprep.subr.mxu0 0.0
    %2955 = vmatpush1.msra.mxu0 0.0
    %2956 = vmatprep.subr.mxu0 0.0
    %2957 = vmatpush1.msra.mxu0 0.0
    %2958 = vmatprep.subr.mxu0 0.0
    %2959 = vmatpush1.msra.mxu0 0.0
    %2960 = vmatprep.subr.mxu0 0.0
    %2961 = vmatpush1.msra.mxu0 0.0
    %2962 = vmatprep.mubr.f32.mxu0 0.0
    %2963 = vmatmul.mubr.f32.gmra.mrb[0].mxu0 %v2896
    %v2964 = vpop.f32.mrb[0].mxu0
    %v2965 = vadd.f32 0.0, %v2964
    %v2966 = vpop.f32.mrb[0].mxu0
    %2967 = vdwg.mxu0
    %v2968 = vadd.f32 %v2890, %v2965
    %v2969 = vxor.u32 %v2968, 2147483648
    %v2970 = vmul.f32 %v2969, 1.442695
    %v2971 = vpow.pop %v2970
    %v2972 = vadd.f32 %v2971, 1.0
    %v2973 = vrcp.pop %v2972
    %v2974 = vmul.f32 1.0, %v2973
    %2975 = vmatprep.subr.mxu0 0.0
    %2976 = vmatpush1.msra.mxu0 %v113
    %2977 = vmatprep.subr.mxu0 0.0
    %2978 = vmatpush1.msra.mxu0 %v114
    %2979 = vmatprep.subr.mxu0 0.0
    %2980 = vmatpush1.msra.mxu0 %v115
    %2981 = vmatprep.subr.mxu0 0.0
    %2982 = vmatpush1.msra.mxu0 %v116
    %2983 = vmatprep.subr.mxu0 0.0
    %2984 = vmatpush1.msra.mxu0 0.0
    %2985 = vmatprep.subr.mxu0 0.0
    %2986 = vmatpush1.msra.mxu0 0.0
    %2987 = vmatprep.subr.mxu0 0.0
    %2988 = vmatpush1.msra.mxu0 0.0
    %2989 = vmatprep.subr.mxu0 0.0
    %2990 = vmatpush1.msra.mxu0 0.0
    %2991 = vmatprep.subr.mxu0 0.0
    %2992 = vmatpush1.msra.mxu0 0.0
    %2993 = vmatprep.subr.mxu0 0.0
    %2994 = vmatpush1.msra.mxu0 0.0
    %2995 = vmatprep.subr.mxu0 0.0
    %2996 = vmatpush1.msra.mxu0 0.0
    %2997 = vmatprep.subr.mxu0 0.0
    %2998 = vmatpush1.msra.mxu0 0.0
    %2999 = vmatprep.subr.mxu0 0.0
    %3000 = vmatpush1.msra.mxu0 0.0
    %3001 = vmatprep.subr.mxu0 0.0
    %3002 = vmatpush1.msra.mxu0 0.0
    %3003 = vmatprep.subr.mxu0 0.0
    %3004 = vmatpush1.msra.mxu0 0.0
    %3005 = vmatprep.subr.mxu0 0.0
    %3006 = vmatpush1.msra.mxu0 0.0
    %3007 = vmatprep.subr.mxu0 0.0
    %3008 = vmatpush1.msra.mxu0 0.0
    %3009 = vmatprep.subr.mxu0 0.0
    %3010 = vmatpush1.msra.mxu0 0.0
    %3011 = vmatprep.subr.mxu0 0.0
    %3012 = vmatpush1.msra.mxu0 0.0
    %3013 = vmatprep.subr.mxu0 0.0
    %3014 = vmatpush1.msra.mxu0 0.0
    %3015 = vmatprep.subr.mxu0 0.0
    %3016 = vmatpush1.msra.mxu0 0.0
    %3017 = vmatprep.subr.mxu0 0.0
    %3018 = vmatpush1.msra.mxu0 0.0
    %3019 = vmatprep.subr.mxu0 0.0
    %3020 = vmatpush1.msra.mxu0 0.0
    %3021 = vmatprep.subr.mxu0 0.0
    %3022 = vmatpush1.msra.mxu0 0.0
    %3023 = vmatprep.subr.mxu0 0.0
    %3024 = vmatpush1.msra.mxu0 0.0
    %3025 = vmatprep.subr.mxu0 0.0
    %3026 = vmatpush1.msra.mxu0 0.0
    %3027 = vmatprep.subr.mxu0 0.0
    %3028 = vmatpush1.msra.mxu0 0.0
    %3029 = vmatprep.subr.mxu0 0.0
    %3030 = vmatpush1.msra.mxu0 0.0
    %3031 = vmatprep.subr.mxu0 0.0
    %3032 = vmatpush1.msra.mxu0 0.0
    %3033 = vmatprep.subr.mxu0 0.0
    %3034 = vmatpush1.msra.mxu0 0.0
    %3035 = vmatprep.subr.mxu0 0.0
    %3036 = vmatpush1.msra.mxu0 0.0
    %3037 = vmatprep.subr.mxu0 0.0
    %3038 = vmatpush1.msra.mxu0 0.0
    %3039 = vmatprep.mubr.f32.mxu0 0.0
    %3040 = vmatmul.mubr.f32.gmra.mrb[0].mxu0 %v2896
    %v3041 = vpop.f32.mrb[0].mxu0
    %v3042 = vadd.f32 0.0, %v3041
    %v3043 = vpop.f32.mrb[0].mxu0
    %3044 = vdwg.mxu0
    %v3045 = vadd.f32 %v2892, %v3042
    %v3046 = vxor.u32 %v3045, 2147483648
    %v3047 = vmul.f32 %v3046, 1.442695
    %v3048 = vpow.pop %v3047
    %v3049 = vadd.f32 %v3048, 1.0
    %v3050 = vrcp.pop %v3049
    %v3051 = vmul.f32 1.0, %v3050
    %3052 = vmatprep.subr.mxu0 0.0
    %3053 = vmatpush1.msra.mxu0 %v118
    %3054 = vmatprep.subr.mxu0 0.0
    %3055 = vmatpush1.msra.mxu0 %v119
    %3056 = vmatprep.subr.mxu0 0.0
    %3057 = vmatpush1.msra.mxu0 %v120
    %3058 = vmatprep.subr.mxu0 0.0
    %3059 = vmatpush1.msra.mxu0 %v121
    %3060 = vmatprep.subr.mxu0 0.0
    %3061 = vmatpush1.msra.mxu0 0.0
    %3062 = vmatprep.subr.mxu0 0.0
    %3063 = vmatpush1.msra.mxu0 0.0
    %3064 = vmatprep.subr.mxu0 0.0
    %3065 = vmatpush1.msra.mxu0 0.0
    %3066 = vmatprep.subr.mxu0 0.0
    %3067 = vmatpush1.msra.mxu0 0.0
    %3068 = vmatprep.subr.mxu0 0.0
    %3069 = vmatpush1.msra.mxu0 0.0
    %3070 = vmatprep.subr.mxu0 0.0
    %3071 = vmatpush1.msra.mxu0 0.0
    %3072 = vmatprep.subr.mxu0 0.0
    %3073 = vmatpush1.msra.mxu0 0.0
    %3074 = vmatprep.subr.mxu0 0.0
    %3075 = vmatpush1.msra.mxu0 0.0
    %3076 = vmatprep.subr.mxu0 0.0
    %3077 = vmatpush1.msra.mxu0 0.0
    %3078 = vmatprep.subr.mxu0 0.0
    %3079 = vmatpush1.msra.mxu0 0.0
    %3080 = vmatprep.subr.mxu0 0.0
    %3081 = vmatpush1.msra.mxu0 0.0
    %3082 = vmatprep.subr.mxu0 0.0
    %3083 = vmatpush1.msra.mxu0 0.0
    %3084 = vmatprep.subr.mxu0 0.0
    %3085 = vmatpush1.msra.mxu0 0.0
    %3086 = vmatprep.subr.mxu0 0.0
    %3087 = vmatpush1.msra.mxu0 0.0
    %3088 = vmatprep.subr.mxu0 0.0
    %3089 = vmatpush1.msra.mxu0 0.0
    %3090 = vmatprep.subr.mxu0 0.0
    %3091 = vmatpush1.msra.mxu0 0.0
    %3092 = vmatprep.subr.mxu0 0.0
    %3093 = vmatpush1.msra.mxu0 0.0
    %3094 = vmatprep.subr.mxu0 0.0
    %3095 = vmatpush1.msra.mxu0 0.0
    %3096 = vmatprep.subr.mxu0 0.0
    %3097 = vmatpush1.msra.mxu0 0.0
    %3098 = vmatprep.subr.mxu0 0.0
    %3099 = vmatpush1.msra.mxu0 0.0
    %3100 = vmatprep.subr.mxu0 0.0
    %3101 = vmatpush1.msra.mxu0 0.0
    %3102 = vmatprep.subr.mxu0 0.0
    %3103 = vmatpush1.msra.mxu0 0.0
    %3104 = vmatprep.subr.mxu0 0.0
    %3105 = vmatpush1.msra.mxu0 0.0
    %3106 = vmatprep.subr.mxu0 0.0
    %3107 = vmatpush1.msra.mxu0 0.0
    %3108 = vmatprep.subr.mxu0 0.0
    %3109 = vmatpush1.msra.mxu0 0.0
    %3110 = vmatprep.subr.mxu0 0.0
    %3111 = vmatpush1.msra.mxu0 0.0
    %3112 = vmatprep.subr.mxu0 0.0
    %3113 = vmatpush1.msra.mxu0 0.0
    %3114 = vmatprep.subr.mxu0 0.0
    %3115 = vmatpush1.msra.mxu0 0.0
    %3116 = vmatprep.mubr.f32.mxu0 0.0
    %3117 = vmatmul.mubr.f32.gmra.mrb[0].mxu0 %v2896
    %v3118 = vpop.f32.mrb[0].mxu0
    %v3119 = vadd.f32 %v540, %v3118
    %v3120 = vpop.f32.mrb[0].mxu0
    %3121 = vdwg.mxu0
    %v3122 = vmul.f32 %v2974, %v3119
    %v3123 = vadd.f32 %v2894, %v3122
    %v3124 = vtanh.pop %v3123
    %v3125 = vsub.f32 1.0, %v3051
    %v3126 = vmul.f32 %v3125, %v3124
    %v3127 = vmul.f32 %v3051, %v2648
    %v3128 = vadd.f32 %v3126, %v3127
    %v3129 = vstv %s2645
    %vm3130 = vcmp.lt.s32.totalorder %v3129, %v93
    %v3131 = vsel %vm3130, 1, 0
    %3132 = vset.pattern.permute.xlu0 0
    %3133 = vperm.xlu0 %3132, %v3131
    %v3134 = vpop.permute.xlu0 %3133
    %vm3135 = vcmp.eq.s32.totalorder %v3134, 1
    %v3136 = vsel %vm3135, %v2888, %v2647
    %3137 = vst.msk [vmem:[#allocation2] sm:$0xff] %vm133, %v3136
    %v3138 = vstv %s2646
    %vm3139 = vcmp.lt.s32.totalorder %v3138, %v93
    %v3140 = vsel %vm3139, 1, 0
    %3141 = vset.pattern.permute.xlu0 0
    %3142 = vperm.xlu0 %3141, %v3140
    %v3143 = vpop.permute.xlu0 %3142
    %vm3144 = vcmp.eq.s32.totalorder %v3143, 1
    %v3145 = vsel %vm3144, %v3128, %v2648
    %3146 = vst.msk [vmem:[#allocation3] sm:$0xff] %vm133, %v3145
    %s3147 = sadd.s32 %s82, 6
    %s3148 = ssub.s32 1, %s82
    %v3149 = vld [vmem:[#allocation2] sm:$0xff]
    %v3150 = vld [vmem:[#allocation3] sm:$0xff]
    %s3151 = scalar_lea.vmem [#allocation4], 144
    %v3152 = vld [vmem:[%s3151] sm:$0xff]
    %s3153 = scalar_lea.vmem [#allocation4], 152
    %v3154 = vld [vmem:[%s3153] sm:$0xff]
    %s3155 = scalar_lea.vmem [#allocation4], 160
    %v3156 = vld [vmem:[%s3155] sm:$0xff]
    %v3158 = vsel %vm133, %v3149, 0
    %3160 = vmatprep.subr.mxu0 0.0
    %3161 = vmatpush1.msra.mxu0 %v94
    %3162 = vmatprep.subr.mxu0 0.0
    %3163 = vmatpush1.msra.mxu0 %v95
    %3164 = vmatprep.subr.mxu0 0.0
    %3165 = vmatpush1.msra.mxu0 %v96
    %3166 = vmatprep.subr.mxu0 0.0
    %3167 = vmatpush1.msra.mxu0 %v97
    %3168 = vmatprep.subr.mxu0 0.0
    %3169 = vmatpush1.msra.mxu0 0.0
    %3170 = vmatprep.subr.mxu0 0.0
    %3171 = vmatpush1.msra.mxu0 0.0
    %3172 = vmatprep.subr.mxu0 0.0
    %3173 = vmatpush1.msra.mxu0 0.0
    %3174 = vmatprep.subr.mxu0 0.0
    %3175 = vmatpush1.msra.mxu0 0.0
    %3176 = vmatprep.subr.mxu0 0.0
    %3177 = vmatpush1.msra.mxu0 0.0
    %3178 = vmatprep.subr.mxu0 0.0
    %3179 = vmatpush1.msra.mxu0 0.0
    %3180 = vmatprep.subr.mxu0 0.0
    %3181 = vmatpush1.msra.mxu0 0.0
    %3182 = vmatprep.subr.mxu0 0.0
    %3183 = vmatpush1.msra.mxu0 0.0
    %3184 = vmatprep.subr.mxu0 0.0
    %3185 = vmatpush1.msra.mxu0 0.0
    %3186 = vmatprep.subr.mxu0 0.0
    %3187 = vmatpush1.msra.mxu0 0.0
    %3188 = vmatprep.subr.mxu0 0.0
    %3189 = vmatpush1.msra.mxu0 0.0
    %3190 = vmatprep.subr.mxu0 0.0
    %3191 = vmatpush1.msra.mxu0 0.0
    %3192 = vmatprep.subr.mxu0 0.0
    %3193 = vmatpush1.msra.mxu0 0.0
    %3194 = vmatprep.subr.mxu0 0.0
    %3195 = vmatpush1.msra.mxu0 0.0
    %3196 = vmatprep.subr.mxu0 0.0
    %3197 = vmatpush1.msra.mxu0 0.0
    %3198 = vmatprep.subr.mxu0 0.0
    %3199 = vmatpush1.msra.mxu0 0.0
    %3200 = vmatprep.subr.mxu0 0.0
    %3201 = vmatpush1.msra.mxu0 0.0
    %3202 = vmatprep.subr.mxu0 0.0
    %3203 = vmatpush1.msra.mxu0 0.0
    %3204 = vmatprep.subr.mxu0 0.0
    %3205 = vmatpush1.msra.mxu0 0.0
    %3206 = vmatprep.subr.mxu0 0.0
    %3207 = vmatpush1.msra.mxu0 0.0
    %3208 = vmatprep.subr.mxu0 0.0
    %3209 = vmatpush1.msra.mxu0 0.0
    %3210 = vmatprep.subr.mxu0 0.0
    %3211 = vmatpush1.msra.mxu0 0.0
    %3212 = vmatprep.subr.mxu0 0.0
    %3213 = vmatpush1.msra.mxu0 0.0
    %3214 = vmatprep.subr.mxu0 0.0
    %3215 = vmatpush1.msra.mxu0 0.0
    %3216 = vmatprep.subr.mxu0 0.0
    %3217 = vmatpush1.msra.mxu0 0.0
    %3218 = vmatprep.subr.mxu0 0.0
    %3219 = vmatpush1.msra.mxu0 0.0
    %3220 = vmatprep.subr.mxu0 0.0
    %3221 = vmatpush1.msra.mxu0 0.0
    %3222 = vmatprep.subr.mxu0 0.0
    %3223 = vmatpush1.msra.mxu0 0.0
    %3224 = vmatprep.mubr.f32.mxu0 0.0
    %3225 = vmatmul.mubr.f32.gmra.mrb[0].mxu0 %v3158
    %v3226 = vpop.f32.mrb[0].mxu0
    %v3227 = vadd.f32 0.0, %v3226
    %v3228 = vpop.f32.mrb[0].mxu0
    %3229 = vdwg.mxu0
    %v3230 = vadd.f32 %v3152, %v3227
    %v3231 = vxor.u32 %v3230, 2147483648
    %v3232 = vmul.f32 %v3231, 1.442695
    %v3233 = vpow.pop %v3232
    %v3234 = vadd.f32 %v3233, 1.0
    %v3235 = vrcp.pop %v3234
    %v3236 = vmul.f32 1.0, %v3235
    %3237 = vmatprep.subr.mxu0 0.0
    %3238 = vmatpush1.msra.mxu0 %v99
    %3239 = vmatprep.subr.mxu0 0.0
    %3240 = vmatpush1.msra.mxu0 %v100
    %3241 = vmatprep.subr.mxu0 0.0
    %3242 = vmatpush1.msra.mxu0 %v101
    %3243 = vmatprep.subr.mxu0 0.0
    %3244 = vmatpush1.msra.mxu0 %v102
    %3245 = vmatprep.subr.mxu0 0.0
    %3246 = vmatpush1.msra.mxu0 0.0
    %3247 = vmatprep.subr.mxu0 0.0
    %3248 = vmatpush1.msra.mxu0 0.0
    %3249 = vmatprep.subr.mxu0 0.0
    %3250 = vmatpush1.msra.mxu0 0.0
    %3251 = vmatprep.subr.mxu0 0.0
    %3252 = vmatpush1.msra.mxu0 0.0
    %3253 = vmatprep.subr.mxu0 0.0
    %3254 = vmatpush1.msra.mxu0 0.0
    %3255 = vmatprep.subr.mxu0 0.0
    %3256 = vmatpush1.msra.mxu0 0.0
    %3257 = vmatprep.subr.mxu0 0.0
    %3258 = vmatpush1.msra.mxu0 0.0
    %3259 = vmatprep.subr.mxu0 0.0
    %3260 = vmatpush1.msra.mxu0 0.0
    %3261 = vmatprep.subr.mxu0 0.0
    %3262 = vmatpush1.msra.mxu0 0.0
    %3263 = vmatprep.subr.mxu0 0.0
    %3264 = vmatpush1.msra.mxu0 0.0
    %3265 = vmatprep.subr.mxu0 0.0
    %3266 = vmatpush1.msra.mxu0 0.0
    %3267 = vmatprep.subr.mxu0 0.0
    %3268 = vmatpush1.msra.mxu0 0.0
    %3269 = vmatprep.subr.mxu0 0.0
    %3270 = vmatpush1.msra.mxu0 0.0
    %3271 = vmatprep.subr.mxu0 0.0
    %3272 = vmatpush1.msra.mxu0 0.0
    %3273 = vmatprep.subr.mxu0 0.0
    %3274 = vmatpush1.msra.mxu0 0.0
    %3275 = vmatprep.subr.mxu0 0.0
    %3276 = vmatpush1.msra.mxu0 0.0
    %3277 = vmatprep.subr.mxu0 0.0
    %3278 = vmatpush1.msra.mxu0 0.0
    %3279 = vmatprep.subr.mxu0 0.0
    %3280 = vmatpush1.msra.mxu0 0.0
    %3281 = vmatprep.subr.mxu0 0.0
    %3282 = vmatpush1.msra.mxu0 0.0
    %3283 = vmatprep.subr.mxu0 0.0
    %3284 = vmatpush1.msra.mxu0 0.0
    %3285 = vmatprep.subr.mxu0 0.0
    %3286 = vmatpush1.msra.mxu0 0.0
    %3287 = vmatprep.subr.mxu0 0.0
    %3288 = vmatpush1.msra.mxu0 0.0
    %3289 = vmatprep.subr.mxu0 0.0
    %3290 = vmatpush1.msra.mxu0 0.0
    %3291 = vmatprep.subr.mxu0 0.0
    %3292 = vmatpush1.msra.mxu0 0.0
    %3293 = vmatprep.subr.mxu0 0.0
    %3294 = vmatpush1.msra.mxu0 0.0
    %3295 = vmatprep.subr.mxu0 0.0
    %3296 = vmatpush1.msra.mxu0 0.0
    %3297 = vmatprep.subr.mxu0 0.0
    %3298 = vmatpush1.msra.mxu0 0.0
    %3299 = vmatprep.subr.mxu0 0.0
    %3300 = vmatpush1.msra.mxu0 0.0
    %3301 = vmatprep.mubr.f32.mxu0 0.0
    %3302 = vmatmul.mubr.f32.gmra.mrb[0].mxu0 %v3158
    %v3303 = vpop.f32.mrb[0].mxu0
    %v3304 = vadd.f32 0.0, %v3303
    %v3305 = vpop.f32.mrb[0].mxu0
    %3306 = vdwg.mxu0
    %v3307 = vadd.f32 %v3154, %v3304
    %v3308 = vxor.u32 %v3307, 2147483648
    %v3309 = vmul.f32 %v3308, 1.442695
    %v3310 = vpow.pop %v3309
    %v3311 = vadd.f32 %v3310, 1.0
    %v3312 = vrcp.pop %v3311
    %v3313 = vmul.f32 1.0, %v3312
    %3314 = vmatprep.subr.mxu0 0.0
    %3315 = vmatpush1.msra.mxu0 %v104
    %3316 = vmatprep.subr.mxu0 0.0
    %3317 = vmatpush1.msra.mxu0 %v105
    %3318 = vmatprep.subr.mxu0 0.0
    %3319 = vmatpush1.msra.mxu0 %v106
    %3320 = vmatprep.subr.mxu0 0.0
    %3321 = vmatpush1.msra.mxu0 %v107
    %3322 = vmatprep.subr.mxu0 0.0
    %3323 = vmatpush1.msra.mxu0 0.0
    %3324 = vmatprep.subr.mxu0 0.0
    %3325 = vmatpush1.msra.mxu0 0.0
    %3326 = vmatprep.subr.mxu0 0.0
    %3327 = vmatpush1.msra.mxu0 0.0
    %3328 = vmatprep.subr.mxu0 0.0
    %3329 = vmatpush1.msra.mxu0 0.0
    %3330 = vmatprep.subr.mxu0 0.0
    %3331 = vmatpush1.msra.mxu0 0.0
    %3332 = vmatprep.subr.mxu0 0.0
    %3333 = vmatpush1.msra.mxu0 0.0
    %3334 = vmatprep.subr.mxu0 0.0
    %3335 = vmatpush1.msra.mxu0 0.0
    %3336 = vmatprep.subr.mxu0 0.0
    %3337 = vmatpush1.msra.mxu0 0.0
    %3338 = vmatprep.subr.mxu0 0.0
    %3339 = vmatpush1.msra.mxu0 0.0
    %3340 = vmatprep.subr.mxu0 0.0
    %3341 = vmatpush1.msra.mxu0 0.0
    %3342 = vmatprep.subr.mxu0 0.0
    %3343 = vmatpush1.msra.mxu0 0.0
    %3344 = vmatprep.subr.mxu0 0.0
    %3345 = vmatpush1.msra.mxu0 0.0
    %3346 = vmatprep.subr.mxu0 0.0
    %3347 = vmatpush1.msra.mxu0 0.0
    %3348 = vmatprep.subr.mxu0 0.0
    %3349 = vmatpush1.msra.mxu0 0.0
    %3350 = vmatprep.subr.mxu0 0.0
    %3351 = vmatpush1.msra.mxu0 0.0
    %3352 = vmatprep.subr.mxu0 0.0
    %3353 = vmatpush1.msra.mxu0 0.0
    %3354 = vmatprep.subr.mxu0 0.0
    %3355 = vmatpush1.msra.mxu0 0.0
    %3356 = vmatprep.subr.mxu0 0.0
    %3357 = vmatpush1.msra.mxu0 0.0
    %3358 = vmatprep.subr.mxu0 0.0
    %3359 = vmatpush1.msra.mxu0 0.0
    %3360 = vmatprep.subr.mxu0 0.0
    %3361 = vmatpush1.msra.mxu0 0.0
    %3362 = vmatprep.subr.mxu0 0.0
    %3363 = vmatpush1.msra.mxu0 0.0
    %3364 = vmatprep.subr.mxu0 0.0
    %3365 = vmatpush1.msra.mxu0 0.0
    %3366 = vmatprep.subr.mxu0 0.0
    %3367 = vmatpush1.msra.mxu0 0.0
    %3368 = vmatprep.subr.mxu0 0.0
    %3369 = vmatpush1.msra.mxu0 0.0
    %3370 = vmatprep.subr.mxu0 0.0
    %3371 = vmatpush1.msra.mxu0 0.0
    %3372 = vmatprep.subr.mxu0 0.0
    %3373 = vmatpush1.msra.mxu0 0.0
    %3374 = vmatprep.subr.mxu0 0.0
    %3375 = vmatpush1.msra.mxu0 0.0
    %3376 = vmatprep.subr.mxu0 0.0
    %3377 = vmatpush1.msra.mxu0 0.0
    %3378 = vmatprep.mubr.f32.mxu0 0.0
    %3379 = vmatmul.mubr.f32.gmra.mrb[0].mxu0 %v3158
    %v3380 = vpop.f32.mrb[0].mxu0
    %v3381 = vadd.f32 %v295, %v3380
    %v3382 = vpop.f32.mrb[0].mxu0
    %3383 = vdwg.mxu0
    %v3384 = vmul.f32 %v3236, %v3381
    %v3385 = vadd.f32 %v3156, %v3384
    %v3386 = vtanh.pop %v3385
    %v3387 = vsub.f32 1.0, %v3313
    %v3388 = vmul.f32 %v3387, %v3386
    %v3389 = vmul.f32 %v3313, %v3149
    %v3390 = vadd.f32 %v3388, %v3389
    %s3391 = scalar_lea.vmem [#allocation7], 144
    %v3392 = vld [vmem:[%s3391] sm:$0xff]
    %s3393 = scalar_lea.vmem [#allocation7], 152
    %v3394 = vld [vmem:[%s3393] sm:$0xff]
    %s3395 = scalar_lea.vmem [#allocation7], 160
    %v3396 = vld [vmem:[%s3395] sm:$0xff]
    %v3398 = vsel %vm133, %v3150, 0
    %3400 = vmatprep.subr.mxu0 0.0
    %3401 = vmatpush1.msra.mxu0 %v108
    %3402 = vmatprep.subr.mxu0 0.0
    %3403 = vmatpush1.msra.mxu0 %v109
    %3404 = vmatprep.subr.mxu0 0.0
    %3405 = vmatpush1.msra.mxu0 %v110
    %3406 = vmatprep.subr.mxu0 0.0
    %3407 = vmatpush1.msra.mxu0 %v111
    %3408 = vmatprep.subr.mxu0 0.0
    %3409 = vmatpush1.msra.mxu0 0.0
    %3410 = vmatprep.subr.mxu0 0.0
    %3411 = vmatpush1.msra.mxu0 0.0
    %3412 = vmatprep.subr.mxu0 0.0
    %3413 = vmatpush1.msra.mxu0 0.0
    %3414 = vmatprep.subr.mxu0 0.0
    %3415 = vmatpush1.msra.mxu0 0.0
    %3416 = vmatprep.subr.mxu0 0.0
    %3417 = vmatpush1.msra.mxu0 0.0
    %3418 = vmatprep.subr.mxu0 0.0
    %3419 = vmatpush1.msra.mxu0 0.0
    %3420 = vmatprep.subr.mxu0 0.0
    %3421 = vmatpush1.msra.mxu0 0.0
    %3422 = vmatprep.subr.mxu0 0.0
    %3423 = vmatpush1.msra.mxu0 0.0
    %3424 = vmatprep.subr.mxu0 0.0
    %3425 = vmatpush1.msra.mxu0 0.0
    %3426 = vmatprep.subr.mxu0 0.0
    %3427 = vmatpush1.msra.mxu0 0.0
    %3428 = vmatprep.subr.mxu0 0.0
    %3429 = vmatpush1.msra.mxu0 0.0
    %3430 = vmatprep.subr.mxu0 0.0
    %3431 = vmatpush1.msra.mxu0 0.0
    %3432 = vmatprep.subr.mxu0 0.0
    %3433 = vmatpush1.msra.mxu0 0.0
    %3434 = vmatprep.subr.mxu0 0.0
    %3435 = vmatpush1.msra.mxu0 0.0
    %3436 = vmatprep.subr.mxu0 0.0
    %3437 = vmatpush1.msra.mxu0 0.0
    %3438 = vmatprep.subr.mxu0 0.0
    %3439 = vmatpush1.msra.mxu0 0.0
    %3440 = vmatprep.subr.mxu0 0.0
    %3441 = vmatpush1.msra.mxu0 0.0
    %3442 = vmatprep.subr.mxu0 0.0
    %3443 = vmatpush1.msra.mxu0 0.0
    %3444 = vmatprep.subr.mxu0 0.0
    %3445 = vmatpush1.msra.mxu0 0.0
    %3446 = vmatprep.subr.mxu0 0.0
    %3447 = vmatpush1.msra.mxu0 0.0
    %3448 = vmatprep.subr.mxu0 0.0
    %3449 = vmatpush1.msra.mxu0 0.0
    %3450 = vmatprep.subr.mxu0 0.0
    %3451 = vmatpush1.msra.mxu0 0.0
    %3452 = vmatprep.subr.mxu0 0.0
    %3453 = vmatpush1.msra.mxu0 0.0
    %3454 = vmatprep.subr.mxu0 0.0
    %3455 = vmatpush1.msra.mxu0 0.0
    %3456 = vmatprep.subr.mxu0 0.0
    %3457 = vmatpush1.msra.mxu0 0.0
    %3458 = vmatprep.subr.mxu0 0.0
    %3459 = vmatpush1.msra.mxu0 0.0
    %3460 = vmatprep.subr.mxu0 0.0
    %3461 = vmatpush1.msra.mxu0 0.0
    %3462 = vmatprep.subr.mxu0 0.0
    %3463 = vmatpush1.msra.mxu0 0.0
    %3464 = vmatprep.mubr.f32.mxu0 0.0
    %3465 = vmatmul.mubr.f32.gmra.mrb[0].mxu0 %v3398
    %v3466 = vpop.f32.mrb[0].mxu0
    %v3467 = vadd.f32 0.0, %v3466
    %v3468 = vpop.f32.mrb[0].mxu0
    %3469 = vdwg.mxu0
    %v3470 = vadd.f32 %v3392, %v3467
    %v3471 = vxor.u32 %v3470, 2147483648
    %v3472 = vmul.f32 %v3471, 1.442695
    %v3473 = vpow.pop %v3472
    %v3474 = vadd.f32 %v3473, 1.0
    %v3475 = vrcp.pop %v3474
    %v3476 = vmul.f32 1.0, %v3475
    %3477 = vmatprep.subr.mxu0 0.0
    %3478 = vmatpush1.msra.mxu0 %v113
    %3479 = vmatprep.subr.mxu0 0.0
    %3480 = vmatpush1.msra.mxu0 %v114
    %3481 = vmatprep.subr.mxu0 0.0
    %3482 = vmatpush1.msra.mxu0 %v115
    %3483 = vmatprep.subr.mxu0 0.0
    %3484 = vmatpush1.msra.mxu0 %v116
    %3485 = vmatprep.subr.mxu0 0.0
    %3486 = vmatpush1.msra.mxu0 0.0
    %3487 = vmatprep.subr.mxu0 0.0
    %3488 = vmatpush1.msra.mxu0 0.0
    %3489 = vmatprep.subr.mxu0 0.0
    %3490 = vmatpush1.msra.mxu0 0.0
    %3491 = vmatprep.subr.mxu0 0.0
    %3492 = vmatpush1.msra.mxu0 0.0
    %3493 = vmatprep.subr.mxu0 0.0
    %3494 = vmatpush1.msra.mxu0 0.0
    %3495 = vmatprep.subr.mxu0 0.0
    %3496 = vmatpush1.msra.mxu0 0.0
    %3497 = vmatprep.subr.mxu0 0.0
    %3498 = vmatpush1.msra.mxu0 0.0
    %3499 = vmatprep.subr.mxu0 0.0
    %3500 = vmatpush1.msra.mxu0 0.0
    %3501 = vmatprep.subr.mxu0 0.0
    %3502 = vmatpush1.msra.mxu0 0.0
    %3503 = vmatprep.subr.mxu0 0.0
    %3504 = vmatpush1.msra.mxu0 0.0
    %3505 = vmatprep.subr.mxu0 0.0
    %3506 = vmatpush1.msra.mxu0 0.0
    %3507 = vmatprep.subr.mxu0 0.0
    %3508 = vmatpush1.msra.mxu0 0.0
    %3509 = vmatprep.subr.mxu0 0.0
    %3510 = vmatpush1.msra.mxu0 0.0
    %3511 = vmatprep.subr.mxu0 0.0
    %3512 = vmatpush1.msra.mxu0 0.0
    %3513 = vmatprep.subr.mxu0 0.0
    %3514 = vmatpush1.msra.mxu0 0.0
    %3515 = vmatprep.subr.mxu0 0.0
    %3516 = vmatpush1.msra.mxu0 0.0
    %3517 = vmatprep.subr.mxu0 0.0
    %3518 = vmatpush1.msra.mxu0 0.0
    %3519 = vmatprep.subr.mxu0 0.0
    %3520 = vmatpush1.msra.mxu0 0.0
    %3521 = vmatprep.subr.mxu0 0.0
    %3522 = vmatpush1.msra.mxu0 0.0
    %3523 = vmatprep.subr.mxu0 0.0
    %3524 = vmatpush1.msra.mxu0 0.0
    %3525 = vmatprep.subr.mxu0 0.0
    %3526 = vmatpush1.msra.mxu0 0.0
    %3527 = vmatprep.subr.mxu0 0.0
    %3528 = vmatpush1.msra.mxu0 0.0
    %3529 = vmatprep.subr.mxu0 0.0
    %3530 = vmatpush1.msra.mxu0 0.0
    %3531 = vmatprep.subr.mxu0 0.0
    %3532 = vmatpush1.msra.mxu0 0.0
    %3533 = vmatprep.subr.mxu0 0.0
    %3534 = vmatpush1.msra.mxu0 0.0
    %3535 = vmatprep.subr.mxu0 0.0
    %3536 = vmatpush1.msra.mxu0 0.0
    %3537 = vmatprep.subr.mxu0 0.0
    %3538 = vmatpush1.msra.mxu0 0.0
    %3539 = vmatprep.subr.mxu0 0.0
    %3540 = vmatpush1.msra.mxu0 0.0
    %3541 = vmatprep.mubr.f32.mxu0 0.0
    %3542 = vmatmul.mubr.f32.gmra.mrb[0].mxu0 %v3398
    %v3543 = vpop.f32.mrb[0].mxu0
    %v3544 = vadd.f32 0.0, %v3543
    %v3545 = vpop.f32.mrb[0].mxu0
    %3546 = vdwg.mxu0
    %v3547 = vadd.f32 %v3394, %v3544
    %v3548 = vxor.u32 %v3547, 2147483648
    %v3549 = vmul.f32 %v3548, 1.442695
    %v3550 = vpow.pop %v3549
    %v3551 = vadd.f32 %v3550, 1.0
    %v3552 = vrcp.pop %v3551
    %v3553 = vmul.f32 1.0, %v3552
    %3554 = vmatprep.subr.mxu0 0.0
    %3555 = vmatpush1.msra.mxu0 %v118
    %3556 = vmatprep.subr.mxu0 0.0
    %3557 = vmatpush1.msra.mxu0 %v119
    %3558 = vmatprep.subr.mxu0 0.0
    %3559 = vmatpush1.msra.mxu0 %v120
    %3560 = vmatprep.subr.mxu0 0.0
    %3561 = vmatpush1.msra.mxu0 %v121
    %3562 = vmatprep.subr.mxu0 0.0
    %3563 = vmatpush1.msra.mxu0 0.0
    %3564 = vmatprep.subr.mxu0 0.0
    %3565 = vmatpush1.msra.mxu0 0.0
    %3566 = vmatprep.subr.mxu0 0.0
    %3567 = vmatpush1.msra.mxu0 0.0
    %3568 = vmatprep.subr.mxu0 0.0
    %3569 = vmatpush1.msra.mxu0 0.0
    %3570 = vmatprep.subr.mxu0 0.0
    %3571 = vmatpush1.msra.mxu0 0.0
    %3572 = vmatprep.subr.mxu0 0.0
    %3573 = vmatpush1.msra.mxu0 0.0
    %3574 = vmatprep.subr.mxu0 0.0
    %3575 = vmatpush1.msra.mxu0 0.0
    %3576 = vmatprep.subr.mxu0 0.0
    %3577 = vmatpush1.msra.mxu0 0.0
    %3578 = vmatprep.subr.mxu0 0.0
    %3579 = vmatpush1.msra.mxu0 0.0
    %3580 = vmatprep.subr.mxu0 0.0
    %3581 = vmatpush1.msra.mxu0 0.0
    %3582 = vmatprep.subr.mxu0 0.0
    %3583 = vmatpush1.msra.mxu0 0.0
    %3584 = vmatprep.subr.mxu0 0.0
    %3585 = vmatpush1.msra.mxu0 0.0
    %3586 = vmatprep.subr.mxu0 0.0
    %3587 = vmatpush1.msra.mxu0 0.0
    %3588 = vmatprep.subr.mxu0 0.0
    %3589 = vmatpush1.msra.mxu0 0.0
    %3590 = vmatprep.subr.mxu0 0.0
    %3591 = vmatpush1.msra.mxu0 0.0
    %3592 = vmatprep.subr.mxu0 0.0
    %3593 = vmatpush1.msra.mxu0 0.0
    %3594 = vmatprep.subr.mxu0 0.0
    %3595 = vmatpush1.msra.mxu0 0.0
    %3596 = vmatprep.subr.mxu0 0.0
    %3597 = vmatpush1.msra.mxu0 0.0
    %3598 = vmatprep.subr.mxu0 0.0
    %3599 = vmatpush1.msra.mxu0 0.0
    %3600 = vmatprep.subr.mxu0 0.0
    %3601 = vmatpush1.msra.mxu0 0.0
    %3602 = vmatprep.subr.mxu0 0.0
    %3603 = vmatpush1.msra.mxu0 0.0
    %3604 = vmatprep.subr.mxu0 0.0
    %3605 = vmatpush1.msra.mxu0 0.0
    %3606 = vmatprep.subr.mxu0 0.0
    %3607 = vmatpush1.msra.mxu0 0.0
    %3608 = vmatprep.subr.mxu0 0.0
    %3609 = vmatpush1.msra.mxu0 0.0
    %3610 = vmatprep.subr.mxu0 0.0
    %3611 = vmatpush1.msra.mxu0 0.0
    %3612 = vmatprep.subr.mxu0 0.0
    %3613 = vmatpush1.msra.mxu0 0.0
    %3614 = vmatprep.subr.mxu0 0.0
    %3615 = vmatpush1.msra.mxu0 0.0
    %3616 = vmatprep.subr.mxu0 0.0
    %3617 = vmatpush1.msra.mxu0 0.0
    %3618 = vmatprep.mubr.f32.mxu0 0.0
    %3619 = vmatmul.mubr.f32.gmra.mrb[0].mxu0 %v3398
    %v3620 = vpop.f32.mrb[0].mxu0
    %v3621 = vadd.f32 %v540, %v3620
    %v3622 = vpop.f32.mrb[0].mxu0
    %3623 = vdwg.mxu0
    %v3624 = vmul.f32 %v3476, %v3621
    %v3625 = vadd.f32 %v3396, %v3624
    %v3626 = vtanh.pop %v3625
    %v3627 = vsub.f32 1.0, %v3553
    %v3628 = vmul.f32 %v3627, %v3626
    %v3629 = vmul.f32 %v3553, %v3150
    %v3630 = vadd.f32 %v3628, %v3629
    %v3631 = vstv %s3147
    %vm3632 = vcmp.lt.s32.totalorder %v3631, %v93
    %v3633 = vsel %vm3632, 1, 0
    %3634 = vset.pattern.permute.xlu0 0
    %3635 = vperm.xlu0 %3634, %v3633
    %v3636 = vpop.permute.xlu0 %3635
    %vm3637 = vcmp.eq.s32.totalorder %v3636, 1
    %v3638 = vsel %vm3637, %v3390, %v3149
    %3639 = vst.msk [vmem:[#allocation2] sm:$0xff] %vm133, %v3638
    %v3640 = vstv %s3148
    %vm3641 = vcmp.lt.s32.totalorder %v3640, %v93
    %v3642 = vsel %vm3641, 1, 0
    %3643 = vset.pattern.permute.xlu0 0
    %3644 = vperm.xlu0 %3643, %v3642
    %v3645 = vpop.permute.xlu0 %3644
    %vm3646 = vcmp.eq.s32.totalorder %v3645, 1
    %v3647 = vsel %vm3646, %v3630, %v3150
    %3648 = vst.msk [vmem:[#allocation3] sm:$0xff] %vm133, %v3647
    %s3649 = sadd.s32 %s82, 7
    %s3650 = ssub.s32 0, %s82
    %v3651 = vld [vmem:[#allocation2] sm:$0xff]
    %v3652 = vld [vmem:[#allocation3] sm:$0xff]
    %s3653 = scalar_lea.vmem [#allocation4], 168
    %v3654 = vld [vmem:[%s3653] sm:$0xff]
    %s3655 = scalar_lea.vmem [#allocation4], 176
    %v3656 = vld [vmem:[%s3655] sm:$0xff]
    %s3657 = scalar_lea.vmem [#allocation4], 184
    %v3658 = vld [vmem:[%s3657] sm:$0xff]
    %v3660 = vsel %vm133, %v3651, 0
    %3662 = vmatprep.subr.mxu0 0.0
    %3663 = vmatpush1.msra.mxu0 %v94
    %3664 = vmatprep.subr.mxu0 0.0
    %3665 = vmatpush1.msra.mxu0 %v95
    %3666 = vmatprep.subr.mxu0 0.0
    %3667 = vmatpush1.msra.mxu0 %v96
    %3668 = vmatprep.subr.mxu0 0.0
    %3669 = vmatpush1.msra.mxu0 %v97
    %3670 = vmatprep.subr.mxu0 0.0
    %3671 = vmatpush1.msra.mxu0 0.0
    %3672 = vmatprep.subr.mxu0 0.0
    %3673 = vmatpush1.msra.mxu0 0.0
    %3674 = vmatprep.subr.mxu0 0.0
    %3675 = vmatpush1.msra.mxu0 0.0
    %3676 = vmatprep.subr.mxu0 0.0
    %3677 = vmatpush1.msra.mxu0 0.0
    %3678 = vmatprep.subr.mxu0 0.0
    %3679 = vmatpush1.msra.mxu0 0.0
    %3680 = vmatprep.subr.mxu0 0.0
    %3681 = vmatpush1.msra.mxu0 0.0
    %3682 = vmatprep.subr.mxu0 0.0
    %3683 = vmatpush1.msra.mxu0 0.0
    %3684 = vmatprep.subr.mxu0 0.0
    %3685 = vmatpush1.msra.mxu0 0.0
    %3686 = vmatprep.subr.mxu0 0.0
    %3687 = vmatpush1.msra.mxu0 0.0
    %3688 = vmatprep.subr.mxu0 0.0
    %3689 = vmatpush1.msra.mxu0 0.0
    %3690 = vmatprep.subr.mxu0 0.0
    %3691 = vmatpush1.msra.mxu0 0.0
    %3692 = vmatprep.subr.mxu0 0.0
    %3693 = vmatpush1.msra.mxu0 0.0
    %3694 = vmatprep.subr.mxu0 0.0
    %3695 = vmatpush1.msra.mxu0 0.0
    %3696 = vmatprep.subr.mxu0 0.0
    %3697 = vmatpush1.msra.mxu0 0.0
    %3698 = vmatprep.subr.mxu0 0.0
    %3699 = vmatpush1.msra.mxu0 0.0
    %3700 = vmatprep.subr.mxu0 0.0
    %3701 = vmatpush1.msra.mxu0 0.0
    %3702 = vmatprep.subr.mxu0 0.0
    %3703 = vmatpush1.msra.mxu0 0.0
    %3704 = vmatprep.subr.mxu0 0.0
    %3705 = vmatpush1.msra.mxu0 0.0
    %3706 = vmatprep.subr.mxu0 0.0
    %3707 = vmatpush1.msra.mxu0 0.0
    %3708 = vmatprep.subr.mxu0 0.0
    %3709 = vmatpush1.msra.mxu0 0.0
    %3710 = vmatprep.subr.mxu0 0.0
    %3711 = vmatpush1.msra.mxu0 0.0
    %3712 = vmatprep.subr.mxu0 0.0
    %3713 = vmatpush1.msra.mxu0 0.0
    %3714 = vmatprep.subr.mxu0 0.0
    %3715 = vmatpush1.msra.mxu0 0.0
    %3716 = vmatprep.subr.mxu0 0.0
    %3717 = vmatpush1.msra.mxu0 0.0
    %3718 = vmatprep.subr.mxu0 0.0
    %3719 = vmatpush1.msra.mxu0 0.0
    %3720 = vmatprep.subr.mxu0 0.0
    %3721 = vmatpush1.msra.mxu0 0.0
    %3722 = vmatprep.subr.mxu0 0.0
    %3723 = vmatpush1.msra.mxu0 0.0
    %3724 = vmatprep.subr.mxu0 0.0
    %3725 = vmatpush1.msra.mxu0 0.0
    %3726 = vmatprep.mubr.f32.mxu0 0.0
    %3727 = vmatmul.mubr.f32.gmra.mrb[0].mxu0 %v3660
    %v3728 = vpop.f32.mrb[0].mxu0
    %v3729 = vadd.f32 0.0, %v3728
    %v3730 = vpop.f32.mrb[0].mxu0
    %3731 = vdwg.mxu0
    %v3732 = vadd.f32 %v3654, %v3729
    %v3733 = vxor.u32 %v3732, 2147483648
    %v3734 = vmul.f32 %v3733, 1.442695
    %v3735 = vpow.pop %v3734
    %v3736 = vadd.f32 %v3735, 1.0
    %v3737 = vrcp.pop %v3736
    %v3738 = vmul.f32 1.0, %v3737
    %3739 = vmatprep.subr.mxu0 0.0
    %3740 = vmatpush1.msra.mxu0 %v99
    %3741 = vmatprep.subr.mxu0 0.0
    %3742 = vmatpush1.msra.mxu0 %v100
    %3743 = vmatprep.subr.mxu0 0.0
    %3744 = vmatpush1.msra.mxu0 %v101
    %3745 = vmatprep.subr.mxu0 0.0
    %3746 = vmatpush1.msra.mxu0 %v102
    %3747 = vmatprep.subr.mxu0 0.0
    %3748 = vmatpush1.msra.mxu0 0.0
    %3749 = vmatprep.subr.mxu0 0.0
    %3750 = vmatpush1.msra.mxu0 0.0
    %3751 = vmatprep.subr.mxu0 0.0
    %3752 = vmatpush1.msra.mxu0 0.0
    %3753 = vmatprep.subr.mxu0 0.0
    %3754 = vmatpush1.msra.mxu0 0.0
    %3755 = vmatprep.subr.mxu0 0.0
    %3756 = vmatpush1.msra.mxu0 0.0
    %3757 = vmatprep.subr.mxu0 0.0
    %3758 = vmatpush1.msra.mxu0 0.0
    %3759 = vmatprep.subr.mxu0 0.0
    %3760 = vmatpush1.msra.mxu0 0.0
    %3761 = vmatprep.subr.mxu0 0.0
    %3762 = vmatpush1.msra.mxu0 0.0
    %3763 = vmatprep.subr.mxu0 0.0
    %3764 = vmatpush1.msra.mxu0 0.0
    %3765 = vmatprep.subr.mxu0 0.0
    %3766 = vmatpush1.msra.mxu0 0.0
    %3767 = vmatprep.subr.mxu0 0.0
    %3768 = vmatpush1.msra.mxu0 0.0
    %3769 = vmatprep.subr.mxu0 0.0
    %3770 = vmatpush1.msra.mxu0 0.0
    %3771 = vmatprep.subr.mxu0 0.0
    %3772 = vmatpush1.msra.mxu0 0.0
    %3773 = vmatprep.subr.mxu0 0.0
    %3774 = vmatpush1.msra.mxu0 0.0
    %3775 = vmatprep.subr.mxu0 0.0
    %3776 = vmatpush1.msra.mxu0 0.0
    %3777 = vmatprep.subr.mxu0 0.0
    %3778 = vmatpush1.msra.mxu0 0.0
    %3779 = vmatprep.subr.mxu0 0.0
    %3780 = vmatpush1.msra.mxu0 0.0
    %3781 = vmatprep.subr.mxu0 0.0
    %3782 = vmatpush1.msra.mxu0 0.0
    %3783 = vmatprep.subr.mxu0 0.0
    %3784 = vmatpush1.msra.mxu0 0.0
    %3785 = vmatprep.subr.mxu0 0.0
    %3786 = vmatpush1.msra.mxu0 0.0
    %3787 = vmatprep.subr.mxu0 0.0
    %3788 = vmatpush1.msra.mxu0 0.0
    %3789 = vmatprep.subr.mxu0 0.0
    %3790 = vmatpush1.msra.mxu0 0.0
    %3791 = vmatprep.subr.mxu0 0.0
    %3792 = vmatpush1.msra.mxu0 0.0
    %3793 = vmatprep.subr.mxu0 0.0
    %3794 = vmatpush1.msra.mxu0 0.0
    %3795 = vmatprep.subr.mxu0 0.0
    %3796 = vmatpush1.msra.mxu0 0.0
    %3797 = vmatprep.subr.mxu0 0.0
    %3798 = vmatpush1.msra.mxu0 0.0
    %3799 = vmatprep.subr.mxu0 0.0
    %3800 = vmatpush1.msra.mxu0 0.0
    %3801 = vmatprep.subr.mxu0 0.0
    %3802 = vmatpush1.msra.mxu0 0.0
    %3803 = vmatprep.mubr.f32.mxu0 0.0
    %3804 = vmatmul.mubr.f32.gmra.mrb[0].mxu0 %v3660
    %v3805 = vpop.f32.mrb[0].mxu0
    %v3806 = vadd.f32 0.0, %v3805
    %v3807 = vpop.f32.mrb[0].mxu0
    %3808 = vdwg.mxu0
    %v3809 = vadd.f32 %v3656, %v3806
    %v3810 = vxor.u32 %v3809, 2147483648
    %v3811 = vmul.f32 %v3810, 1.442695
    %v3812 = vpow.pop %v3811
    %v3813 = vadd.f32 %v3812, 1.0
    %v3814 = vrcp.pop %v3813
    %v3815 = vmul.f32 1.0, %v3814
    %3816 = vmatprep.subr.mxu0 0.0
    %3817 = vmatpush1.msra.mxu0 %v104
    %3818 = vmatprep.subr.mxu0 0.0
    %3819 = vmatpush1.msra.mxu0 %v105
    %3820 = vmatprep.subr.mxu0 0.0
    %3821 = vmatpush1.msra.mxu0 %v106
    %3822 = vmatprep.subr.mxu0 0.0
    %3823 = vmatpush1.msra.mxu0 %v107
    %3824 = vmatprep.subr.mxu0 0.0
    %3825 = vmatpush1.msra.mxu0 0.0
    %3826 = vmatprep.subr.mxu0 0.0
    %3827 = vmatpush1.msra.mxu0 0.0
    %3828 = vmatprep.subr.mxu0 0.0
    %3829 = vmatpush1.msra.mxu0 0.0
    %3830 = vmatprep.subr.mxu0 0.0
    %3831 = vmatpush1.msra.mxu0 0.0
    %3832 = vmatprep.subr.mxu0 0.0
    %3833 = vmatpush1.msra.mxu0 0.0
    %3834 = vmatprep.subr.mxu0 0.0
    %3835 = vmatpush1.msra.mxu0 0.0
    %3836 = vmatprep.subr.mxu0 0.0
    %3837 = vmatpush1.msra.mxu0 0.0
    %3838 = vmatprep.subr.mxu0 0.0
    %3839 = vmatpush1.msra.mxu0 0.0
    %3840 = vmatprep.subr.mxu0 0.0
    %3841 = vmatpush1.msra.mxu0 0.0
    %3842 = vmatprep.subr.mxu0 0.0
    %3843 = vmatpush1.msra.mxu0 0.0
    %3844 = vmatprep.subr.mxu0 0.0
    %3845 = vmatpush1.msra.mxu0 0.0
    %3846 = vmatprep.subr.mxu0 0.0
    %3847 = vmatpush1.msra.mxu0 0.0
    %3848 = vmatprep.subr.mxu0 0.0
    %3849 = vmatpush1.msra.mxu0 0.0
    %3850 = vmatprep.subr.mxu0 0.0
    %3851 = vmatpush1.msra.mxu0 0.0
    %3852 = vmatprep.subr.mxu0 0.0
    %3853 = vmatpush1.msra.mxu0 0.0
    %3854 = vmatprep.subr.mxu0 0.0
    %3855 = vmatpush1.msra.mxu0 0.0
    %3856 = vmatprep.subr.mxu0 0.0
    %3857 = vmatpush1.msra.mxu0 0.0
    %3858 = vmatprep.subr.mxu0 0.0
    %3859 = vmatpush1.msra.mxu0 0.0
    %3860 = vmatprep.subr.mxu0 0.0
    %3861 = vmatpush1.msra.mxu0 0.0
    %3862 = vmatprep.subr.mxu0 0.0
    %3863 = vmatpush1.msra.mxu0 0.0
    %3864 = vmatprep.subr.mxu0 0.0
    %3865 = vmatpush1.msra.mxu0 0.0
    %3866 = vmatprep.subr.mxu0 0.0
    %3867 = vmatpush1.msra.mxu0 0.0
    %3868 = vmatprep.subr.mxu0 0.0
    %3869 = vmatpush1.msra.mxu0 0.0
    %3870 = vmatprep.subr.mxu0 0.0
    %3871 = vmatpush1.msra.mxu0 0.0
    %3872 = vmatprep.subr.mxu0 0.0
    %3873 = vmatpush1.msra.mxu0 0.0
    %3874 = vmatprep.subr.mxu0 0.0
    %3875 = vmatpush1.msra.mxu0 0.0
    %3876 = vmatprep.subr.mxu0 0.0
    %3877 = vmatpush1.msra.mxu0 0.0
    %3878 = vmatprep.subr.mxu0 0.0
    %3879 = vmatpush1.msra.mxu0 0.0
    %3880 = vmatprep.mubr.f32.mxu0 0.0
    %3881 = vmatmul.mubr.f32.gmra.mrb[0].mxu0 %v3660
    %v3882 = vpop.f32.mrb[0].mxu0
    %v3883 = vadd.f32 %v295, %v3882
    %v3884 = vpop.f32.mrb[0].mxu0
    %3885 = vdwg.mxu0
    %v3886 = vmul.f32 %v3738, %v3883
    %v3887 = vadd.f32 %v3658, %v3886
    %v3888 = vtanh.pop %v3887
    %v3889 = vsub.f32 1.0, %v3815
    %v3890 = vmul.f32 %v3889, %v3888
    %v3891 = vmul.f32 %v3815, %v3651
    %v3892 = vadd.f32 %v3890, %v3891
    %s3893 = scalar_lea.vmem [#allocation7], 168
    %v3894 = vld [vmem:[%s3893] sm:$0xff]
    %s3895 = scalar_lea.vmem [#allocation7], 176
    %v3896 = vld [vmem:[%s3895] sm:$0xff]
    %s3897 = scalar_lea.vmem [#allocation7], 184
    %v3898 = vld [vmem:[%s3897] sm:$0xff]
    %v3900 = vsel %vm133, %v3652, 0
    %3902 = vmatprep.subr.mxu0 0.0
    %3903 = vmatpush1.msra.mxu0 %v108
    %3904 = vmatprep.subr.mxu0 0.0
    %3905 = vmatpush1.msra.mxu0 %v109
    %3906 = vmatprep.subr.mxu0 0.0
    %3907 = vmatpush1.msra.mxu0 %v110
    %3908 = vmatprep.subr.mxu0 0.0
    %3909 = vmatpush1.msra.mxu0 %v111
    %3910 = vmatprep.subr.mxu0 0.0
    %3911 = vmatpush1.msra.mxu0 0.0
    %3912 = vmatprep.subr.mxu0 0.0
    %3913 = vmatpush1.msra.mxu0 0.0
    %3914 = vmatprep.subr.mxu0 0.0
    %3915 = vmatpush1.msra.mxu0 0.0
    %3916 = vmatprep.subr.mxu0 0.0
    %3917 = vmatpush1.msra.mxu0 0.0
    %3918 = vmatprep.subr.mxu0 0.0
    %3919 = vmatpush1.msra.mxu0 0.0
    %3920 = vmatprep.subr.mxu0 0.0
    %3921 = vmatpush1.msra.mxu0 0.0
    %3922 = vmatprep.subr.mxu0 0.0
    %3923 = vmatpush1.msra.mxu0 0.0
    %3924 = vmatprep.subr.mxu0 0.0
    %3925 = vmatpush1.msra.mxu0 0.0
    %3926 = vmatprep.subr.mxu0 0.0
    %3927 = vmatpush1.msra.mxu0 0.0
    %3928 = vmatprep.subr.mxu0 0.0
    %3929 = vmatpush1.msra.mxu0 0.0
    %3930 = vmatprep.subr.mxu0 0.0
    %3931 = vmatpush1.msra.mxu0 0.0
    %3932 = vmatprep.subr.mxu0 0.0
    %3933 = vmatpush1.msra.mxu0 0.0
    %3934 = vmatprep.subr.mxu0 0.0
    %3935 = vmatpush1.msra.mxu0 0.0
    %3936 = vmatprep.subr.mxu0 0.0
    %3937 = vmatpush1.msra.mxu0 0.0
    %3938 = vmatprep.subr.mxu0 0.0
    %3939 = vmatpush1.msra.mxu0 0.0
    %3940 = vmatprep.subr.mxu0 0.0
    %3941 = vmatpush1.msra.mxu0 0.0
    %3942 = vmatprep.subr.mxu0 0.0
    %3943 = vmatpush1.msra.mxu0 0.0
    %3944 = vmatprep.subr.mxu0 0.0
    %3945 = vmatpush1.msra.mxu0 0.0
    %3946 = vmatprep.subr.mxu0 0.0
    %3947 = vmatpush1.msra.mxu0 0.0
    %3948 = vmatprep.subr.mxu0 0.0
    %3949 = vmatpush1.msra.mxu0 0.0
    %3950 = vmatprep.subr.mxu0 0.0
    %3951 = vmatpush1.msra.mxu0 0.0
    %3952 = vmatprep.subr.mxu0 0.0
    %3953 = vmatpush1.msra.mxu0 0.0
    %3954 = vmatprep.subr.mxu0 0.0
    %3955 = vmatpush1.msra.mxu0 0.0
    %3956 = vmatprep.subr.mxu0 0.0
    %3957 = vmatpush1.msra.mxu0 0.0
    %3958 = vmatprep.subr.mxu0 0.0
    %3959 = vmatpush1.msra.mxu0 0.0
    %3960 = vmatprep.subr.mxu0 0.0
    %3961 = vmatpush1.msra.mxu0 0.0
    %3962 = vmatprep.subr.mxu0 0.0
    %3963 = vmatpush1.msra.mxu0 0.0
    %3964 = vmatprep.subr.mxu0 0.0
    %3965 = vmatpush1.msra.mxu0 0.0
    %3966 = vmatprep.mubr.f32.mxu0 0.0
    %3967 = vmatmul.mubr.f32.gmra.mrb[0].mxu0 %v3900
    %v3968 = vpop.f32.mrb[0].mxu0
    %v3969 = vadd.f32 0.0, %v3968
    %v3970 = vpop.f32.mrb[0].mxu0
    %3971 = vdwg.mxu0
    %v3972 = vadd.f32 %v3894, %v3969
    %v3973 = vxor.u32 %v3972, 2147483648
    %v3974 = vmul.f32 %v3973, 1.442695
    %v3975 = vpow.pop %v3974
    %v3976 = vadd.f32 %v3975, 1.0
    %v3977 = vrcp.pop %v3976
    %v3978 = vmul.f32 1.0, %v3977
    %3979 = vmatprep.subr.mxu0 0.0
    %3980 = vmatpush1.msra.mxu0 %v113
    %3981 = vmatprep.subr.mxu0 0.0
    %3982 = vmatpush1.msra.mxu0 %v114
    %3983 = vmatprep.subr.mxu0 0.0
    %3984 = vmatpush1.msra.mxu0 %v115
    %3985 = vmatprep.subr.mxu0 0.0
    %3986 = vmatpush1.msra.mxu0 %v116
    %3987 = vmatprep.subr.mxu0 0.0
    %3988 = vmatpush1.msra.mxu0 0.0
    %3989 = vmatprep.subr.mxu0 0.0
    %3990 = vmatpush1.msra.mxu0 0.0
    %3991 = vmatprep.subr.mxu0 0.0
    %3992 = vmatpush1.msra.mxu0 0.0
    %3993 = vmatprep.subr.mxu0 0.0
    %3994 = vmatpush1.msra.mxu0 0.0
    %3995 = vmatprep.subr.mxu0 0.0
    %3996 = vmatpush1.msra.mxu0 0.0
    %3997 = vmatprep.subr.mxu0 0.0
    %3998 = vmatpush1.msra.mxu0 0.0
    %3999 = vmatprep.subr.mxu0 0.0
    %4000 = vmatpush1.msra.mxu0 0.0
    %4001 = vmatprep.subr.mxu0 0.0
    %4002 = vmatpush1.msra.mxu0 0.0
    %4003 = vmatprep.subr.mxu0 0.0
    %4004 = vmatpush1.msra.mxu0 0.0
    %4005 = vmatprep.subr.mxu0 0.0
    %4006 = vmatpush1.msra.mxu0 0.0
    %4007 = vmatprep.subr.mxu0 0.0
    %4008 = vmatpush1.msra.mxu0 0.0
    %4009 = vmatprep.subr.mxu0 0.0
    %4010 = vmatpush1.msra.mxu0 0.0
    %4011 = vmatprep.subr.mxu0 0.0
    %4012 = vmatpush1.msra.mxu0 0.0
    %4013 = vmatprep.subr.mxu0 0.0
    %4014 = vmatpush1.msra.mxu0 0.0
    %4015 = vmatprep.subr.mxu0 0.0
    %4016 = vmatpush1.msra.mxu0 0.0
    %4017 = vmatprep.subr.mxu0 0.0
    %4018 = vmatpush1.msra.mxu0 0.0
    %4019 = vmatprep.subr.mxu0 0.0
    %4020 = vmatpush1.msra.mxu0 0.0
    %4021 = vmatprep.subr.mxu0 0.0
    %4022 = vmatpush1.msra.mxu0 0.0
    %4023 = vmatprep.subr.mxu0 0.0
    %4024 = vmatpush1.msra.mxu0 0.0
    %4025 = vmatprep.subr.mxu0 0.0
    %4026 = vmatpush1.msra.mxu0 0.0
    %4027 = vmatprep.subr.mxu0 0.0
    %4028 = vmatpush1.msra.mxu0 0.0
    %4029 = vmatprep.subr.mxu0 0.0
    %4030 = vmatpush1.msra.mxu0 0.0
    %4031 = vmatprep.subr.mxu0 0.0
    %4032 = vmatpush1.msra.mxu0 0.0
    %4033 = vmatprep.subr.mxu0 0.0
    %4034 = vmatpush1.msra.mxu0 0.0
    %4035 = vmatprep.subr.mxu0 0.0
    %4036 = vmatpush1.msra.mxu0 0.0
    %4037 = vmatprep.subr.mxu0 0.0
    %4038 = vmatpush1.msra.mxu0 0.0
    %4039 = vmatprep.subr.mxu0 0.0
    %4040 = vmatpush1.msra.mxu0 0.0
    %4041 = vmatprep.subr.mxu0 0.0
    %4042 = vmatpush1.msra.mxu0 0.0
    %4043 = vmatprep.mubr.f32.mxu0 0.0
    %4044 = vmatmul.mubr.f32.gmra.mrb[0].mxu0 %v3900
    %v4045 = vpop.f32.mrb[0].mxu0
    %v4046 = vadd.f32 0.0, %v4045
    %v4047 = vpop.f32.mrb[0].mxu0
    %4048 = vdwg.mxu0
    %v4049 = vadd.f32 %v3896, %v4046
    %v4050 = vxor.u32 %v4049, 2147483648
    %v4051 = vmul.f32 %v4050, 1.442695
    %v4052 = vpow.pop %v4051
    %v4053 = vadd.f32 %v4052, 1.0
    %v4054 = vrcp.pop %v4053
    %v4055 = vmul.f32 1.0, %v4054
    %4056 = vmatprep.subr.mxu0 0.0
    %4057 = vmatpush1.msra.mxu0 %v118
    %4058 = vmatprep.subr.mxu0 0.0
    %4059 = vmatpush1.msra.mxu0 %v119
    %4060 = vmatprep.subr.mxu0 0.0
    %4061 = vmatpush1.msra.mxu0 %v120
    %4062 = vmatprep.subr.mxu0 0.0
    %4063 = vmatpush1.msra.mxu0 %v121
    %4064 = vmatprep.subr.mxu0 0.0
    %4065 = vmatpush1.msra.mxu0 0.0
    %4066 = vmatprep.subr.mxu0 0.0
    %4067 = vmatpush1.msra.mxu0 0.0
    %4068 = vmatprep.subr.mxu0 0.0
    %4069 = vmatpush1.msra.mxu0 0.0
    %4070 = vmatprep.subr.mxu0 0.0
    %4071 = vmatpush1.msra.mxu0 0.0
    %4072 = vmatprep.subr.mxu0 0.0
    %4073 = vmatpush1.msra.mxu0 0.0
    %4074 = vmatprep.subr.mxu0 0.0
    %4075 = vmatpush1.msra.mxu0 0.0
    %4076 = vmatprep.subr.mxu0 0.0
    %4077 = vmatpush1.msra.mxu0 0.0
    %4078 = vmatprep.subr.mxu0 0.0
    %4079 = vmatpush1.msra.mxu0 0.0
    %4080 = vmatprep.subr.mxu0 0.0
    %4081 = vmatpush1.msra.mxu0 0.0
    %4082 = vmatprep.subr.mxu0 0.0
    %4083 = vmatpush1.msra.mxu0 0.0
    %4084 = vmatprep.subr.mxu0 0.0
    %4085 = vmatpush1.msra.mxu0 0.0
    %4086 = vmatprep.subr.mxu0 0.0
    %4087 = vmatpush1.msra.mxu0 0.0
    %4088 = vmatprep.subr.mxu0 0.0
    %4089 = vmatpush1.msra.mxu0 0.0
    %4090 = vmatprep.subr.mxu0 0.0
    %4091 = vmatpush1.msra.mxu0 0.0
    %4092 = vmatprep.subr.mxu0 0.0
    %4093 = vmatpush1.msra.mxu0 0.0
    %4094 = vmatprep.subr.mxu0 0.0
    %4095 = vmatpush1.msra.mxu0 0.0
    %4096 = vmatprep.subr.mxu0 0.0
    %4097 = vmatpush1.msra.mxu0 0.0
    %4098 = vmatprep.subr.mxu0 0.0
    %4099 = vmatpush1.msra.mxu0 0.0
    %4100 = vmatprep.subr.mxu0 0.0
    %4101 = vmatpush1.msra.mxu0 0.0
    %4102 = vmatprep.subr.mxu0 0.0
    %4103 = vmatpush1.msra.mxu0 0.0
    %4104 = vmatprep.subr.mxu0 0.0
    %4105 = vmatpush1.msra.mxu0 0.0
    %4106 = vmatprep.subr.mxu0 0.0
    %4107 = vmatpush1.msra.mxu0 0.0
    %4108 = vmatprep.subr.mxu0 0.0
    %4109 = vmatpush1.msra.mxu0 0.0
    %4110 = vmatprep.subr.mxu0 0.0
    %4111 = vmatpush1.msra.mxu0 0.0
    %4112 = vmatprep.subr.mxu0 0.0
    %4113 = vmatpush1.msra.mxu0 0.0
    %4114 = vmatprep.subr.mxu0 0.0
    %4115 = vmatpush1.msra.mxu0 0.0
    %4116 = vmatprep.subr.mxu0 0.0
    %4117 = vmatpush1.msra.mxu0 0.0
    %4118 = vmatprep.subr.mxu0 0.0
    %4119 = vmatpush1.msra.mxu0 0.0
    %4120 = vmatprep.mubr.f32.mxu0 0.0
    %4121 = vmatmul.mubr.f32.gmra.mrb[0].mxu0 %v3900
    %v4122 = vpop.f32.mrb[0].mxu0
    %v4123 = vadd.f32 %v540, %v4122
    %v4124 = vpop.f32.mrb[0].mxu0
    %4125 = vdwg.mxu0
    %v4126 = vmul.f32 %v3978, %v4123
    %v4127 = vadd.f32 %v3898, %v4126
    %v4128 = vtanh.pop %v4127
    %v4129 = vsub.f32 1.0, %v4055
    %v4130 = vmul.f32 %v4129, %v4128
    %v4131 = vmul.f32 %v4055, %v3652
    %v4132 = vadd.f32 %v4130, %v4131
    %v4133 = vstv %s3649
    %vm4134 = vcmp.lt.s32.totalorder %v4133, %v93
    %v4135 = vsel %vm4134, 1, 0
    %4136 = vset.pattern.permute.xlu0 0
    %4137 = vperm.xlu0 %4136, %v4135
    %v4138 = vpop.permute.xlu0 %4137
    %vm4139 = vcmp.eq.s32.totalorder %v4138, 1
    %v4140 = vsel %vm4139, %v3892, %v3651
    %4141 = vst.msk [vmem:[#allocation2] sm:$0xff] %vm133, %v4140
    %v4142 = vstv %s3650
    %vm4143 = vcmp.lt.s32.totalorder %v4142, %v93
    %v4144 = vsel %vm4143, 1, 0
    %4145 = vset.pattern.permute.xlu0 0
    %4146 = vperm.xlu0 %4145, %v4144
    %v4147 = vpop.permute.xlu0 %4146
    %vm4148 = vcmp.eq.s32.totalorder %v4147, 1
    %v4149 = vsel %vm4148, %v4132, %v3652
    %4150 = vst.msk [vmem:[#allocation3] sm:$0xff] %vm133, %v4149
    // Predicated region
    $region50: #{tpu_custom_call.1} parent=1 // pred_check
      %p4151 = pneg %p83
    $region51: #{tpu_custom_call.1} parent=1 // pred_check_branch
      %4153 = sbr.rel (%p4151) target = $region53
    $region52: #{tpu_custom_call.1} parent=1 // pred_region
      %v4154 = vld [vmem:[#allocation2] sm:$0xff]
      %v4155 = vld [vmem:[#allocation3] sm:$0xff]
      %v4156 = vadd.f32 %v4154, %v4155
      %v4157 = vtanh.pop %v4156
      %4158 = vst.msk [vmem:[#allocation12] sm:$0xff] %vm133, %v4157
    $region53: #{tpu_custom_call.1} parent=1 // pred_fallthru
      _
    // Predicated region
    $region54: #{tpu_custom_call.1} parent=1 // pred_check
      _
    $region55: #{tpu_custom_call.1} parent=1 // pred_check_branch
      %4160 = sbr.rel (0) target = $region57
    $region56: #{tpu_custom_call.1} parent=1 // pred_region
      %s4162 = ssub.s32 128, 128
      %4163 = vsyncadd [#allocation6], %s4162
      %s4165 = sshll.u32 [#allocation12], 4
      %s4166 = int_to_ptr.vmem [resolvable:$true] %s4165
      %4168 = dma.vmem_to_hbm [thread:$0]  %s4166, 128, %s7, [#allocation6]
    $region57: #{tpu_custom_call.1} parent=1 // pred_fallthru
      _
    // Predicated region
    $region58: #{tpu_custom_call.1} parent=1 // pred_check
      _
    $region59: #{tpu_custom_call.1} parent=1 // pred_check_branch
      %4170 = sbr.rel (0) target = $region61
    $region60: #{tpu_custom_call.1} parent=1 // pred_region
      %4171 = dma.done [#allocation6], 128
    $region61: #{tpu_custom_call.1} parent=1 // pred_fallthru
      _
    %4172 = vsyncpa [#allocation5], 1
    %4173 = vsyncpa [#allocation8], 1
    %4174 = vsyncpa [#allocation11], 1
    %4175 = vsyncpa [#allocation6], 1

</llo_original>
